<compile_context>
chip_gen: v6e
topology: v6e:2x2x1
jax: 0.10.0
libtpu: 0.0.40
codegen_flags: <defaults>
</compile_context>

<pallas_src>
import functools

import jax
import jax.numpy as jnp
from jax.experimental import pallas as pl
from jax.experimental.pallas import tpu as pltpu


def _double_conv_kernel(H, W, x_ref, w1_ref, b1_ref, w2_ref, b2_ref, o_ref,
                        xpad_ref, ypad_ref):
    # x_ref:    (1, Cin, H*W)     input, NCHW with flattened spatial (lane-dense)
    # w1_ref:   (9*Cin, Cout)     conv1 weights, rows ordered (dy, dx, cin)
    # b1_ref:   (1, Cout)
    # w2_ref:   (9*Cout, Cout)    conv2 weights, rows ordered (dy, dx, cmid)
    # b2_ref:   (1, Cout)
    # o_ref:    (1, Cout, H*W)    output, NCHW with flattened spatial (lane-dense)
    # xpad_ref: (H+2, W+2, Cin)   VMEM scratch: zero halo + interior = input
    # ypad_ref: (H+2, W+2, Cout)  VMEM scratch: zero halo + interior = conv1 act
    Cin = x_ref.shape[1]
    Cout = o_ref.shape[1]

    # ---- in-VMEM zero padding of the input halo (no jnp.pad in HBM) ----
    xpad_ref[...] = jnp.zeros_like(xpad_ref)
    x_hwc = x_ref[0].T.reshape(H, W, Cin)          # (Cin, HW) -> (H, W, Cin)
    xpad_ref[1:H + 1, 1:W + 1, :] = x_hwc

    def conv3x3_relu(pad_ref, w_flat, b, cin):
        # im2col once in VMEM -> single MXU contraction with K = 9*cin.
        xp = pad_ref[...]
        taps = [xp[dy:dy + H, dx:dx + W, :]
                for dy in range(3) for dx in range(3)]
        col = jnp.concatenate(taps, axis=-1).reshape(H * W, 9 * cin)
        acc = jnp.dot(col, w_flat, preferred_element_type=jnp.float32)
        return jnp.maximum(acc + b, 0.0)            # (H*W, Cout), f32

    # ---- conv1 + ReLU; intermediate stays in VMEM (never written to HBM) ----
    y = conv3x3_relu(xpad_ref, w1_ref[...], b1_ref[...], Cin)

    ypad_ref[...] = jnp.zeros_like(ypad_ref)
    ypad_ref[1:H + 1, 1:W + 1, :] = y.reshape(H, W, Cout)

    # ---- conv2 + ReLU ----
    z = conv3x3_relu(ypad_ref, w2_ref[...], b2_ref[...], Cout)

    # (H*W, Cout) -> (Cout, H*W): NCHW-flat store, last dim is lane-dense.
    o_ref[0] = z.T.astype(o_ref.dtype)


def _default_vmem_limit_bytes(H, W, Cin, Cout):
    """Generous upper bound on the fused kernel's VMEM footprint
    (double-buffered I/O blocks, weights, padded halo scratch, im2col
    temporaries, incl. 128-lane padding), clamped well inside the smallest
    physical VMEM (64 MiB on v7x)."""
    lane = 128
    hw = H * W
    ci = max(Cin, lane)
    co = max(Cout, lane)
    est = 4 * (
        2 * hw * (Cin + Cout)                    # double-buffered in/out blocks
        + 9 * (Cin + Cout) * Cout + 2 * Cout     # weights + biases
        + (H + 2) * (W + 2) * (ci + co)          # zero-padded halo scratch
        + 2 * hw * (ci + co)                     # im2col / relayout temporaries
    )
    return int(min(max(2 * est, 8 << 20), 48 << 20))


def double_conv(x_nchw, w1_hwio, b1, w2_hwio, b2, *, vmem_limit_bytes=None):
    """Fused DoubleConv forward. x_nchw: (N, Cin, H, W) float32 -> (N, Cout, H, W)."""
    N, Cin, H, W = x_nchw.shape
    Cout = w1_hwio.shape[-1]
    HW = H * W

    # Free (metadata-only) reshapes outside the kernel: no transposes, no pad.
    x_flat = x_nchw.reshape(N, Cin, HW)
    w1f = w1_hwio.reshape(9 * Cin, Cout)          # rows ordered (dy, dx, cin)
    w2f = w2_hwio.reshape(9 * Cout, Cout)
    b1r = b1.reshape(1, Cout)
    b2r = b2.reshape(1, Cout)

    if vmem_limit_bytes is None:
        vmem_limit_bytes = _default_vmem_limit_bytes(H, W, Cin, Cout)

    kernel = functools.partial(_double_conv_kernel, H, W)

    out_flat = pl.pallas_call(
        kernel,
        out_shape=jax.ShapeDtypeStruct((N, Cout, HW), x_nchw.dtype),
        grid_spec=pltpu.PrefetchScalarGridSpec(
            num_scalar_prefetch=0,
            grid=(N,),
            in_specs=[
                pl.BlockSpec((1, Cin, HW), lambda n: (n, 0, 0)),
                pl.BlockSpec((9 * Cin, Cout), lambda n: (0, 0)),
                pl.BlockSpec((1, Cout), lambda n: (0, 0)),
                pl.BlockSpec((9 * Cout, Cout), lambda n: (0, 0)),
                pl.BlockSpec((1, Cout), lambda n: (0, 0)),
            ],
            out_specs=pl.BlockSpec((1, Cout, HW), lambda n: (n, 0, 0)),
            scratch_shapes=[
                pltpu.VMEM((H + 2, W + 2, Cin), jnp.float32),
                pltpu.VMEM((H + 2, W + 2, Cout), jnp.float32),
            ],
        ),
        compiler_params=pltpu.CompilerParams(
            dimension_semantics=("parallel",),
            vmem_limit_bytes=vmem_limit_bytes,
        ),
    )(x_flat, w1f, b1r, w2f, b2r)

    return out_flat.reshape(N, Cout, H, W)


class DoubleConvPallas:
    """JAX/Pallas equivalent of the PyTorch DoubleConv module (NCHW in/out)."""

    def __init__(self, in_channels, out_channels, key):
        k1, k2, k3, k4 = jax.random.split(key, 4)
        # Deterministic init mirroring nn.Conv2d(in, out, 3, padding=1).
        # Weights stored as HWIO.
        fan_in1 = in_channels * 9
        fan_in2 = out_channels * 9
        s1 = 1.0 / jnp.sqrt(fan_in1)
        s2 = 1.0 / jnp.sqrt(fan_in2)
        self.w1 = jax.random.uniform(
            k1, (3, 3, in_channels, out_channels), jnp.float32, -s1, s1)
        self.b1 = jax.random.uniform(k2, (out_channels,), jnp.float32, -s1, s1)
        self.w2 = jax.random.uniform(
            k3, (3, 3, out_channels, out_channels), jnp.float32, -s2, s2)
        self.b2 = jax.random.uniform(k4, (out_channels,), jnp.float32, -s2, s2)

    def __call__(self, x_nchw):
        return double_conv(x_nchw, self.w1, self.b1, self.w2, self.b2)


def _reference_double_conv(x_nchw, mod):
    """Pure-JAX reference (lax conv) for a correctness check."""
    def conv(x, w_hwio, b):
        y = jax.lax.conv_general_dilated(
            x, w_hwio, window_strides=(1, 1), padding="SAME",
            dimension_numbers=("NCHW", "HWIO", "NCHW"),
        )
        return jax.nn.relu(y + b.reshape(1, -1, 1, 1))

    y = conv(x_nchw, mod.w1, mod.b1)
    y = conv(y, mod.w2, mod.b2)
    return y


if __name__ == "__main__":
    key = jax.random.PRNGKey(0)
    k_x, k_p = jax.random.split(key)

    N, Cin, H, W = 2, 4, 16, 16
    Cout = 8
    x = jax.random.normal(k_x, (N, Cin, H, W), jnp.float32)

    model = DoubleConvPallas(Cin, Cout, k_p)

    out = jax.block_until_ready(model(x))

    ref = _reference_double_conv(x, model)
    assert out.shape == (N, Cout, H, W), out.shape
    max_err = float(jnp.max(jnp.abs(out - ref)))
    assert jnp.allclose(out, ref, atol=5e-4, rtol=5e-4), max_err
    print("KERNEL_OK")
</pallas_src>

<mosaic_0001>
module attributes {stable_mosaic.version = 11 : i64} {
  func.func @_double_conv_kernel(%arg0: i32, %arg1: memref<1x4x256xf32, #tpu.memory_space<vmem>>, %arg2: memref<36x8xf32, #tpu.memory_space<vmem>>, %arg3: memref<1x8xf32, #tpu.memory_space<vmem>>, %arg4: memref<72x8xf32, #tpu.memory_space<vmem>>, %arg5: memref<1x8xf32, #tpu.memory_space<vmem>>, %arg6: memref<1x8x256xf32, #tpu.memory_space<vmem>>, %arg7: memref<18x18x4xf32, #tpu.memory_space<vmem>>, %arg8: memref<18x18x8xf32, #tpu.memory_space<vmem>>) attributes {dimension_semantics = [#tpu.dimension_semantics<parallel>], iteration_bounds = array<i64: 2>, scalar_prefetch = 0 : i64, scratch_operands = 2 : i64, tpu.core_type = #tpu.core_type<tc>, window_params = [{transform_indices = @transform_0, window_bounds = array<i64: 1, 4, 256>}, {pipeline_mode = #tpu.pipeline_mode<synchronous>, transform_indices = @transform_1, window_bounds = array<i64: 36, 8>}, {pipeline_mode = #tpu.pipeline_mode<synchronous>, transform_indices = @transform_2, window_bounds = array<i64: 1, 8>}, {pipeline_mode = #tpu.pipeline_mode<synchronous>, transform_indices = @transform_3, window_bounds = array<i64: 72, 8>}, {pipeline_mode = #tpu.pipeline_mode<synchronous>, transform_indices = @transform_4, window_bounds = array<i64: 1, 8>}, {transform_indices = @transform_5, window_bounds = array<i64: 1, 8, 256>}]} {
    %cst = arith.constant 0.000000e+00 : f32
    %0 = vector.broadcast %cst : f32 to vector<18x18x4xf32>
    %c0 = arith.constant 0 : index
    %c0_0 = arith.constant 0 : index
    %c0_1 = arith.constant 0 : index
    %1 = vector.load %arg7[%c0, %c0_0, %c0_1] : memref<18x18x4xf32, #tpu.memory_space<vmem>>, vector<18x18x4xf32>
    tpu.vector_store %arg7[%c0, %c0_0, %c0_1], %0 {strides = array<i32>} : memref<18x18x4xf32, #tpu.memory_space<vmem>>, vector<18x18x4xf32>,
    %c0_2 = arith.constant 0 : index
    %c0_3 = arith.constant 0 : index
    %c0_4 = arith.constant 0 : index
    %2 = vector.load %arg1[%c0_2, %c0_3, %c0_4] : memref<1x4x256xf32, #tpu.memory_space<vmem>>, vector<1x4x256xf32>
    %3 = vector.shape_cast %2 : vector<1x4x256xf32> to vector<4x256xf32>
    %4 = tpu.transpose %3, [1, 0] : vector<4x256xf32> -> vector<256x4xf32>
    %5 = vector.shape_cast %4 : vector<256x4xf32> to vector<16x16x4xf32>
    %c1 = arith.constant 1 : index
    %c1_5 = arith.constant 1 : index
    %c0_6 = arith.constant 0 : index
    %6 = vector.load %arg7[%c1, %c1_5, %c0_6] : memref<18x18x4xf32, #tpu.memory_space<vmem>>, vector<16x16x4xf32>
    tpu.vector_store %arg7[%c1, %c1_5, %c0_6], %5 {strides = array<i32>} : memref<18x18x4xf32, #tpu.memory_space<vmem>>, vector<16x16x4xf32>,
    %c0_7 = arith.constant 0 : index
    %c0_8 = arith.constant 0 : index
    %7 = vector.load %arg2[%c0_7, %c0_8] : memref<36x8xf32, #tpu.memory_space<vmem>>, vector<36x8xf32>
    %c0_9 = arith.constant 0 : index
    %c0_10 = arith.constant 0 : index
    %8 = vector.load %arg3[%c0_9, %c0_10] : memref<1x8xf32, #tpu.memory_space<vmem>>, vector<1x8xf32>
    %c0_11 = arith.constant 0 : index
    %c0_12 = arith.constant 0 : index
    %c0_13 = arith.constant 0 : index
    %9 = vector.load %arg7[%c0_11, %c0_12, %c0_13] : memref<18x18x4xf32, #tpu.memory_space<vmem>>, vector<18x18x4xf32>
    %10 = vector.extract_strided_slice %9 {offsets = [0, 0, 0], sizes = [16, 16, 4], strides = [1, 1, 1]} : vector<18x18x4xf32> to vector<16x16x4xf32>
    %11 = vector.extract_strided_slice %9 {offsets = [0, 1, 0], sizes = [16, 16, 4], strides = [1, 1, 1]} : vector<18x18x4xf32> to vector<16x16x4xf32>
    %12 = vector.extract_strided_slice %9 {offsets = [0, 2, 0], sizes = [16, 16, 4], strides = [1, 1, 1]} : vector<18x18x4xf32> to vector<16x16x4xf32>
    %13 = vector.extract_strided_slice %9 {offsets = [1, 0, 0], sizes = [16, 16, 4], strides = [1, 1, 1]} : vector<18x18x4xf32> to vector<16x16x4xf32>
    %14 = vector.extract_strided_slice %9 {offsets = [1, 1, 0], sizes = [16, 16, 4], strides = [1, 1, 1]} : vector<18x18x4xf32> to vector<16x16x4xf32>
    %15 = vector.extract_strided_slice %9 {offsets = [1, 2, 0], sizes = [16, 16, 4], strides = [1, 1, 1]} : vector<18x18x4xf32> to vector<16x16x4xf32>
    %16 = vector.extract_strided_slice %9 {offsets = [2, 0, 0], sizes = [16, 16, 4], strides = [1, 1, 1]} : vector<18x18x4xf32> to vector<16x16x4xf32>
    %17 = vector.extract_strided_slice %9 {offsets = [2, 1, 0], sizes = [16, 16, 4], strides = [1, 1, 1]} : vector<18x18x4xf32> to vector<16x16x4xf32>
    %18 = vector.extract_strided_slice %9 {offsets = [2, 2, 0], sizes = [16, 16, 4], strides = [1, 1, 1]} : vector<18x18x4xf32> to vector<16x16x4xf32>
    %19 = tpu.concatenate %10, %11, %12, %13, %14, %15, %16, %17, %18 in 2 : vector<16x16x4xf32>, vector<16x16x4xf32>, vector<16x16x4xf32>, vector<16x16x4xf32>, vector<16x16x4xf32>, vector<16x16x4xf32>, vector<16x16x4xf32>, vector<16x16x4xf32>, vector<16x16x4xf32> -> vector<16x16x36xf32>
    %20 = vector.shape_cast %19 : vector<16x16x36xf32> to vector<256x36xf32>
    %cst_14 = arith.constant dense<0.000000e+00> : vector<256x8xf32>
    %21 = tpu.matmul %20, %7, %cst_14 {dimension_numbers = #tpu.dot_dimension_numbers<[1], [0], [0], [1], [0, 0, 1, 1], [], []>} : vector<256x36xf32>, vector<36x8xf32>, vector<256x8xf32> -> vector<256x8xf32>
    %22 = vector.broadcast %8 : vector<1x8xf32> to vector<256x8xf32>
    %23 = arith.addf %21, %22 : vector<256x8xf32>
    %cst_15 = arith.constant 0.000000e+00 : f32
    %24 = vector.broadcast %cst_15 : f32 to vector<256x8xf32>
    %25 = arith.maximumf %23, %24 : vector<256x8xf32>
    %cst_16 = arith.constant 0.000000e+00 : f32
    %26 = vector.broadcast %cst_16 : f32 to vector<18x18x8xf32>
    %c0_17 = arith.constant 0 : index
    %c0_18 = arith.constant 0 : index
    %c0_19 = arith.constant 0 : index
    %27 = vector.load %arg8[%c0_17, %c0_18, %c0_19] : memref<18x18x8xf32, #tpu.memory_space<vmem>>, vector<18x18x8xf32>
    tpu.vector_store %arg8[%c0_17, %c0_18, %c0_19], %26 {strides = array<i32>} : memref<18x18x8xf32, #tpu.memory_space<vmem>>, vector<18x18x8xf32>,
    %28 = vector.shape_cast %25 : vector<256x8xf32> to vector<16x16x8xf32>
    %c1_20 = arith.constant 1 : index
    %c1_21 = arith.constant 1 : index
    %c0_22 = arith.constant 0 : index
    %29 = vector.load %arg8[%c1_20, %c1_21, %c0_22] : memref<18x18x8xf32, #tpu.memory_space<vmem>>, vector<16x16x8xf32>
    tpu.vector_store %arg8[%c1_20, %c1_21, %c0_22], %28 {strides = array<i32>} : memref<18x18x8xf32, #tpu.memory_space<vmem>>, vector<16x16x8xf32>,
    %c0_23 = arith.constant 0 : index
    %c0_24 = arith.constant 0 : index
    %30 = vector.load %arg4[%c0_23, %c0_24] : memref<72x8xf32, #tpu.memory_space<vmem>>, vector<72x8xf32>
    %c0_25 = arith.constant 0 : index
    %c0_26 = arith.constant 0 : index
    %31 = vector.load %arg5[%c0_25, %c0_26] : memref<1x8xf32, #tpu.memory_space<vmem>>, vector<1x8xf32>
    %c0_27 = arith.constant 0 : index
    %c0_28 = arith.constant 0 : index
    %c0_29 = arith.constant 0 : index
    %32 = vector.load %arg8[%c0_27, %c0_28, %c0_29] : memref<18x18x8xf32, #tpu.memory_space<vmem>>, vector<18x18x8xf32>
    %33 = vector.extract_strided_slice %32 {offsets = [0, 0, 0], sizes = [16, 16, 8], strides = [1, 1, 1]} : vector<18x18x8xf32> to vector<16x16x8xf32>
    %34 = vector.extract_strided_slice %32 {offsets = [0, 1, 0], sizes = [16, 16, 8], strides = [1, 1, 1]} : vector<18x18x8xf32> to vector<16x16x8xf32>
    %35 = vector.extract_strided_slice %32 {offsets = [0, 2, 0], sizes = [16, 16, 8], strides = [1, 1, 1]} : vector<18x18x8xf32> to vector<16x16x8xf32>
    %36 = vector.extract_strided_slice %32 {offsets = [1, 0, 0], sizes = [16, 16, 8], strides = [1, 1, 1]} : vector<18x18x8xf32> to vector<16x16x8xf32>
    %37 = vector.extract_strided_slice %32 {offsets = [1, 1, 0], sizes = [16, 16, 8], strides = [1, 1, 1]} : vector<18x18x8xf32> to vector<16x16x8xf32>
    %38 = vector.extract_strided_slice %32 {offsets = [1, 2, 0], sizes = [16, 16, 8], strides = [1, 1, 1]} : vector<18x18x8xf32> to vector<16x16x8xf32>
    %39 = vector.extract_strided_slice %32 {offsets = [2, 0, 0], sizes = [16, 16, 8], strides = [1, 1, 1]} : vector<18x18x8xf32> to vector<16x16x8xf32>
    %40 = vector.extract_strided_slice %32 {offsets = [2, 1, 0], sizes = [16, 16, 8], strides = [1, 1, 1]} : vector<18x18x8xf32> to vector<16x16x8xf32>
    %41 = vector.extract_strided_slice %32 {offsets = [2, 2, 0], sizes = [16, 16, 8], strides = [1, 1, 1]} : vector<18x18x8xf32> to vector<16x16x8xf32>
    %42 = tpu.concatenate %33, %34, %35, %36, %37, %38, %39, %40, %41 in 2 : vector<16x16x8xf32>, vector<16x16x8xf32>, vector<16x16x8xf32>, vector<16x16x8xf32>, vector<16x16x8xf32>, vector<16x16x8xf32>, vector<16x16x8xf32>, vector<16x16x8xf32>, vector<16x16x8xf32> -> vector<16x16x72xf32>
    %43 = vector.shape_cast %42 : vector<16x16x72xf32> to vector<256x72xf32>
    %cst_30 = arith.constant dense<0.000000e+00> : vector<256x8xf32>
    %44 = tpu.matmul %43, %30, %cst_30 {dimension_numbers = #tpu.dot_dimension_numbers<[1], [0], [0], [1], [0, 0, 1, 1], [], []>} : vector<256x72xf32>, vector<72x8xf32>, vector<256x8xf32> -> vector<256x8xf32>
    %45 = vector.broadcast %31 : vector<1x8xf32> to vector<256x8xf32>
    %46 = arith.addf %44, %45 : vector<256x8xf32>
    %cst_31 = arith.constant 0.000000e+00 : f32
    %47 = vector.broadcast %cst_31 : f32 to vector<256x8xf32>
    %48 = arith.maximumf %46, %47 : vector<256x8xf32>
    %49 = tpu.transpose %48, [1, 0] : vector<256x8xf32> -> vector<8x256xf32>
    %c0_32 = arith.constant 0 : index
    %c0_33 = arith.constant 0 : index
    %c0_34 = arith.constant 0 : index
    %50 = vector.load %arg6[%c0_32, %c0_33, %c0_34] : memref<1x8x256xf32, #tpu.memory_space<vmem>>, vector<1x8x256xf32>
    %51 = vector.shape_cast %50 : vector<1x8x256xf32> to vector<8x256xf32>
    %52 = vector.shape_cast %49 : vector<8x256xf32> to vector<1x8x256xf32>
    tpu.vector_store %arg6[%c0_32, %c0_33, %c0_34], %52 {strides = array<i32>} : memref<1x8x256xf32, #tpu.memory_space<vmem>>, vector<1x8x256xf32>,
    return
  }
  func.func @transform_0(%arg0: i32) -> (i32, i32, i32) {
    %c0_i32 = arith.constant 0 : i32
    %c0_i32_0 = arith.constant 0 : i32
    %c0_i32_1 = arith.constant 0 : i32
    return %arg0, %c0_i32, %c0_i32_0 : i32, i32, i32
  }
  func.func @transform_1(%arg0: i32) -> (i32, i32) {
    %c0_i32 = arith.constant 0 : i32
    %c0_i32_0 = arith.constant 0 : i32
    %c0_i32_1 = arith.constant 0 : i32
    return %c0_i32, %c0_i32_0 : i32, i32
  }
  func.func @transform_2(%arg0: i32) -> (i32, i32) {
    %c0_i32 = arith.constant 0 : i32
    %c0_i32_0 = arith.constant 0 : i32
    %c0_i32_1 = arith.constant 0 : i32
    return %c0_i32, %c0_i32_0 : i32, i32
  }
  func.func @transform_3(%arg0: i32) -> (i32, i32) {
    %c0_i32 = arith.constant 0 : i32
    %c0_i32_0 = arith.constant 0 : i32
    %c0_i32_1 = arith.constant 0 : i32
    return %c0_i32, %c0_i32_0 : i32, i32
  }
  func.func @transform_4(%arg0: i32) -> (i32, i32) {
    %c0_i32 = arith.constant 0 : i32
    %c0_i32_0 = arith.constant 0 : i32
    %c0_i32_1 = arith.constant 0 : i32
    return %c0_i32, %c0_i32_0 : i32, i32
  }
  func.func @transform_5(%arg0: i32) -> (i32, i32, i32) {
    %c0_i32 = arith.constant 0 : i32
    %c0_i32_0 = arith.constant 0 : i32
    %c0_i32_1 = arith.constant 0 : i32
    return %arg0, %c0_i32, %c0_i32_0 : i32, i32, i32
  }
}

</mosaic_0001>

<llo_original>
// kernel: tpu_custom_call.1
$region0: #{tpu_custom_call.1}
  #allocation0 [shape = 'u32[]', space=smem, size = 0x4, offset = 0x4, fixed_abs, tag = 'smem constant byte address 0x4 - core index']
  #allocation1 [shape = 'u32[144,128]{1,0:T(1,128)}', space=vmem, size = 0x12000, scoped, tag = 'internal scratch']
  #allocation2 [shape = 'f32[18,18,4]{2,1,0:T(8,128)}', space=vmem, size = 0x36000, scoped, tag = 'scratch operand']
  #allocation3 [shape = 'f32[18,18,8]{2,1,0:T(8,128)}', space=vmem, size = 0x36000, scoped, tag = 'scratch operand']
  %s0 = inlined_call_operand.vmem [shape: f32[2,4,256], index: 0, kind: input, shape index: {}]
  %s1 = inlined_call_operand.vmem [shape: f32[36,8], index: 1, kind: input, shape index: {}]
  %s2 = inlined_call_operand.vmem [shape: f32[1,8], index: 2, kind: input, shape index: {}]
  %s3 = inlined_call_operand.vmem [shape: f32[72,8], index: 3, kind: input, shape index: {}]
  %s4 = inlined_call_operand.vmem [shape: f32[1,8], index: 4, kind: input, shape index: {}]
  %s5 = inlined_call_operand.hbm [shape: f32[2,8,256], index: 5, kind: output, shape index: {}]
  %s6 = sld [smem:[#allocation0]]
  $region53: #{tpu_custom_call.1} parent=0
    _
  %s8 = ssub.s32 1, %s6
  %s9 = scalar_select 0, %s8, %s6
  $region1: #{tpu_custom_call.1} parent=0
    #allocation4 [shape = 'u8[16384]{0}', space=vmem, size = 0x4000, scoped, tag = 'output window, operand 0']
    #allocation5 [shape = 's32[2]{0}', space=sflag, size = 0x8, scoped, tag = 'scoped memory for tpu_custom_call.1']
    %10 = vsyncpa [#allocation5], 0
    %s11 = scalar_lea.sflag [#allocation5], 1
    %12 = vsyncpa %s11, 0
    loop: start=0, step=1, limit=4
    $region2: #{tpu_custom_call.1} parent=1 // loop_pre_header
      _
    $region3: #{tpu_custom_call.1} parent=1 // loop_header
      %s14 = sphi 0, %s18
      %p15 = scmp.ge.s32.totalorder %s14, 4
      %s24 = sphi 0, %s26
      %s27 = sphi 0, %s24
      %s28 = sphi 0, %s27
      %s44 = sphi 0, %s28
      %s48 = sphi 0, %s48
      %s50 = sphi 0, %s48
      %s51 = sphi 0, %s50
      %s65 = sphi 0, %s51
      %s69 = sphi 0, %s69
      %s71 = sphi 0, %s69
      %s72 = sphi 0, %s71
      %s86 = sphi 0, %s72
      %s90 = sphi 0, %s90
      %s92 = sphi 0, %s90
      %s93 = sphi 0, %s92
      %s107 = sphi 0, %s93
      %s111 = sphi 0, %s111
      %s113 = sphi 0, %s111
      %s114 = sphi 0, %s113
      %s128 = sphi 0, %s114
      %s134 = sphi 0, %s136
      %s137 = sphi 0, %s134
      %s138 = sphi 0, %s137
      %s154 = sphi 0, %s138
    $region4: #{tpu_custom_call.1} parent=1 // loop_header_branch
      %17 = sbr.rel (%p15) target = $region8
    $region5: #{tpu_custom_call.1} parent=1 // loop_body
      %s19 = ssub.s32 %s14, 1
      %s20 = ssub.s32 %s14, 2
      %s21 = sadd.s32 %s14, 1
      %s22 = ssub.s32 %s14, %s21
      %p23 = scmp.eq.s32.totalorder %s22, 0
      %s25 = sadd.s32 %s24, 1
      %s26 = scalar_select %p23, %s24, %s25
      %p29 = pneg %p23
      %p30 = scmp.eq.s32.totalorder %s14, 1
      %p31 = por %p29, %p30
      %p32 = scmp.ne.s32.totalorder %s24, %s27
      %p33 = scmp.eq.s32.totalorder %s14, 0
      %p34 = por %p32, %p33
      %p35 = scmp.ne.s32.totalorder %s24, %s27
      %p36 = scmp.eq.s32.totalorder %s19, 1
      %p37 = por %p35, %p36
      %p38 = scmp.ne.s32.totalorder %s27, %s28
      %p39 = scmp.eq.s32.totalorder %s19, 0
      %p40 = por %p38, %p39
      %p41 = scmp.ne.s32.totalorder %s27, %s28
      %p42 = scmp.eq.s32.totalorder %s20, 1
      %p43 = por %p41, %p42
      %p45 = scmp.ne.s32.totalorder %s28, %s44
      %p46 = scmp.eq.s32.totalorder %s20, 0
      %p47 = por %p45, %p46
      %s49 = sadd.s32 %s48, 1
      %p52 = scmp.eq.s32.totalorder %s14, 1
      %p53 = scmp.ne.s32.totalorder %s48, %s50
      %p54 = scmp.eq.s32.totalorder %s14, 0
      %p55 = por %p53, %p54
      %p56 = scmp.ne.s32.totalorder %s48, %s50
      %p57 = scmp.eq.s32.totalorder %s19, 1
      %p58 = por %p56, %p57
      %p59 = scmp.ne.s32.totalorder %s50, %s51
      %p60 = scmp.eq.s32.totalorder %s19, 0
      %p61 = por %p59, %p60
      %p62 = scmp.ne.s32.totalorder %s50, %s51
      %p63 = scmp.eq.s32.totalorder %s20, 1
      %p64 = por %p62, %p63
      %p66 = scmp.ne.s32.totalorder %s51, %s65
      %p67 = scmp.eq.s32.totalorder %s20, 0
      %p68 = por %p66, %p67
      %s70 = sadd.s32 %s69, 1
      %p73 = scmp.eq.s32.totalorder %s14, 1
      %p74 = scmp.ne.s32.totalorder %s69, %s71
      %p75 = scmp.eq.s32.totalorder %s14, 0
      %p76 = por %p74, %p75
      %p77 = scmp.ne.s32.totalorder %s69, %s71
      %p78 = scmp.eq.s32.totalorder %s19, 1
      %p79 = por %p77, %p78
      %p80 = scmp.ne.s32.totalorder %s71, %s72
      %p81 = scmp.eq.s32.totalorder %s19, 0
      %p82 = por %p80, %p81
      %p83 = scmp.ne.s32.totalorder %s71, %s72
      %p84 = scmp.eq.s32.totalorder %s20, 1
      %p85 = por %p83, %p84
      %p87 = scmp.ne.s32.totalorder %s72, %s86
      %p88 = scmp.eq.s32.totalorder %s20, 0
      %p89 = por %p87, %p88
      %s91 = sadd.s32 %s90, 1
      %p94 = scmp.eq.s32.totalorder %s14, 1
      %p95 = scmp.ne.s32.totalorder %s90, %s92
      %p96 = scmp.eq.s32.totalorder %s14, 0
      %p97 = por %p95, %p96
      %p98 = scmp.ne.s32.totalorder %s90, %s92
      %p99 = scmp.eq.s32.totalorder %s19, 1
      %p100 = por %p98, %p99
      %p101 = scmp.ne.s32.totalorder %s92, %s93
      %p102 = scmp.eq.s32.totalorder %s19, 0
      %p103 = por %p101, %p102
      %p104 = scmp.ne.s32.totalorder %s92, %s93
      %p105 = scmp.eq.s32.totalorder %s20, 1
      %p106 = por %p104, %p105
      %p108 = scmp.ne.s32.totalorder %s93, %s107
      %p109 = scmp.eq.s32.totalorder %s20, 0
      %p110 = por %p108, %p109
      %s112 = sadd.s32 %s111, 1
      %p115 = scmp.eq.s32.totalorder %s14, 1
      %p116 = scmp.ne.s32.totalorder %s111, %s113
      %p117 = scmp.eq.s32.totalorder %s14, 0
      %p118 = por %p116, %p117
      %p119 = scmp.ne.s32.totalorder %s111, %s113
      %p120 = scmp.eq.s32.totalorder %s19, 1
      %p121 = por %p119, %p120
      %p122 = scmp.ne.s32.totalorder %s113, %s114
      %p123 = scmp.eq.s32.totalorder %s19, 0
      %p124 = por %p122, %p123
      %p125 = scmp.ne.s32.totalorder %s113, %s114
      %p126 = scmp.eq.s32.totalorder %s20, 1
      %p127 = por %p125, %p126
      %p129 = scmp.ne.s32.totalorder %s114, %s128
      %p130 = scmp.eq.s32.totalorder %s20, 0
      %p131 = por %p129, %p130
      %s132 = ssub.s32 %s14, %s21
      %p133 = scmp.eq.s32.totalorder %s132, 0
      %s135 = sadd.s32 %s134, 1
      %s136 = scalar_select %p133, %s134, %s135
      %p139 = pneg %p133
      %p140 = scmp.eq.s32.totalorder %s14, 1
      %p141 = por %p139, %p140
      %p142 = scmp.ne.s32.totalorder %s134, %s137
      %p143 = scmp.eq.s32.totalorder %s14, 0
      %p144 = por %p142, %p143
      %p145 = scmp.ne.s32.totalorder %s134, %s137
      %p146 = scmp.eq.s32.totalorder %s19, 1
      %p147 = por %p145, %p146
      %p148 = scmp.ne.s32.totalorder %s137, %s138
      %p149 = scmp.eq.s32.totalorder %s19, 0
      %p150 = por %p148, %p149
      %p151 = scmp.ne.s32.totalorder %s137, %s138
      %p152 = scmp.eq.s32.totalorder %s20, 1
      %p153 = por %p151, %p152
      %p155 = scmp.ne.s32.totalorder %s138, %s154
      %p156 = scmp.eq.s32.totalorder %s20, 0
      %p157 = por %p155, %p156
      %p158 = scmp.le.s32.totalorder 1, %s14
      %p159 = scmp.lt.s32.totalorder %s14, 3
      %p160 = pnand %p158, %p159
      %p161 = pneg %p160
      // Predicated region
      $region9: #{tpu_custom_call.1} parent=5 // pred_check
        _
      $region10: #{tpu_custom_call.1} parent=5 // pred_check_branch
        %163 = sbr.rel (%p160) target = $region12
      $region11: #{tpu_custom_call.1} parent=5 // pred_region
        %s164 = ssub.s32 %s14, 1
        // Predicated region
        $region13: #{tpu_custom_call.1} parent=11 // pred_check
          %p165 = pneg %p61
        $region14: #{tpu_custom_call.1} parent=11 // pred_check_branch
          %167 = sbr.rel (%p165) target = $region16
        $region15: #{tpu_custom_call.1} parent=11 // pred_region
          _
        $region16: #{tpu_custom_call.1} parent=11 // pred_fallthru
          _
        // Predicated region
        $region17: #{tpu_custom_call.1} parent=11 // pred_check
          %p168 = pneg %p82
        $region18: #{tpu_custom_call.1} parent=11 // pred_check_branch
          %170 = sbr.rel (%p168) target = $region20
        $region19: #{tpu_custom_call.1} parent=11 // pred_region
          _
        $region20: #{tpu_custom_call.1} parent=11 // pred_fallthru
          _
        // Predicated region
        $region21: #{tpu_custom_call.1} parent=11 // pred_check
          %p171 = pneg %p103
        $region22: #{tpu_custom_call.1} parent=11 // pred_check_branch
          %173 = sbr.rel (%p171) target = $region24
        $region23: #{tpu_custom_call.1} parent=11 // pred_region
          _
        $region24: #{tpu_custom_call.1} parent=11 // pred_fallthru
          _
        // Predicated region
        $region25: #{tpu_custom_call.1} parent=11 // pred_check
          %p174 = pneg %p124
        $region26: #{tpu_custom_call.1} parent=11 // pred_check_branch
          %176 = sbr.rel (%p174) target = $region28
        $region27: #{tpu_custom_call.1} parent=11 // pred_region
          _
        $region28: #{tpu_custom_call.1} parent=11 // pred_fallthru
          _
      $region12: #{tpu_custom_call.1} parent=5 // pred_fallthru
        _
      %p177 = scmp.lt.s32.totalorder %s14, 2
      // Predicated region
      $region29: #{tpu_custom_call.1} parent=5 // pred_check
        %p178 = pneg %p177
      $region30: #{tpu_custom_call.1} parent=5 // pred_check_branch
        %180 = sbr.rel (%p178) target = $region32
      $region31: #{tpu_custom_call.1} parent=5 // pred_region
        // Predicated region
        $region33: #{tpu_custom_call.1} parent=31 // pred_check
          %p181 = pneg %p34
        $region34: #{tpu_custom_call.1} parent=31 // pred_check_branch
          %183 = sbr.rel (%p181) target = $region36
        $region35: #{tpu_custom_call.1} parent=31 // pred_region
          %p184 = scmp.lt.s32.totalorder %s14, 1
          %s185 = scalar_select %p184, %s14, 1
          %s186 = smul.addr %s185, 2
          %s187 = smul.addr %s186, 4
          %s188 = scalar_lea.vmem %s0, %s187
        $region36: #{tpu_custom_call.1} parent=31 // pred_fallthru
          _
      $region32: #{tpu_custom_call.1} parent=5 // pred_fallthru
        _
      %p189 = scmp.le.s32.totalorder 1, %s14
      %p190 = scmp.lt.s32.totalorder %s14, 3
      %p191 = pnand %p189, %p190
      %p192 = pneg %p191
      // Predicated region
      $region37: #{tpu_custom_call.1} parent=5 // pred_check
        _
      $region38: #{tpu_custom_call.1} parent=5 // pred_check_branch
        %194 = sbr.rel (%p191) target = $region40
      $region39: #{tpu_custom_call.1} parent=5 // pred_region
        %s195 = ssub.s32 %s14, 1
        %p196 = scmp.lt.s32.totalorder %s19, 1
        %s197 = scalar_select %p196, %s19, 1
        %s198 = smul.addr %s197, 2
        %s199 = smul.addr %s198, 4
        %s200 = scalar_lea.vmem %s0, %s199
        %p201 = pneg %p40
        %p202 = pneg %p37
        %p203 = pneg %p61
        %p204 = pneg %p58
        %p205 = pneg %p82
        %p206 = pneg %p79
        %p207 = pneg %p103
        %p208 = pneg %p100
        %p209 = pneg %p124
        %p210 = pneg %p121
        %p211 = pneg %p150
        %p212 = pneg %p147
        %s213 = sand.u32 %s137, 1
        %s214 = scalar_lea.sflag [#allocation5], %s213
        %s215 = sand.u32 %s137, 1
        %s216 = smul.addr %s215, 16
        %s217 = scalar_lea.vmem [#allocation4], %s216
        %p218 = scmp.lt.s32.totalorder %s19, 1
        %s219 = scalar_select %p218, %s19, 1
        %s220 = smul.addr %s219, 2
        %s221 = smul.addr %s220, 4
        %s222 = scalar_lea.vmem %s0, %s221
        %vm223 = vcmask 31744
        %224 = vst.msk [vmem:[#allocation2] sm:$0xff] %vm223, 0.0
        %225 = vst.msk [vmem:[#allocation2 + $0x8] sm:$0xff] %vm223, 0.0
        %vm226 = vcmask 25600
        %227 = vst.msk [vmem:[#allocation2 + $0x10] sm:$0x3] %vm226, 0.0
        %228 = vst.msk [vmem:[#allocation2 + $0x18] sm:$0xff] %vm223, 0.0
        %229 = vst.msk [vmem:[#allocation2 + $0x20] sm:$0xff] %vm223, 0.0
        %230 = vst.msk [vmem:[#allocation2 + $0x28] sm:$0x3] %vm226, 0.0
        %231 = vst.msk [vmem:[#allocation2 + $0x30] sm:$0xff] %vm223, 0.0
        %232 = vst.msk [vmem:[#allocation2 + $0x38] sm:$0xff] %vm223, 0.0
        %233 = vst.msk [vmem:[#allocation2 + $0x40] sm:$0x3] %vm226, 0.0
        %234 = vst.msk [vmem:[#allocation2 + $0x48] sm:$0xff] %vm223, 0.0
        %235 = vst.msk [vmem:[#allocation2 + $0x50] sm:$0xff] %vm223, 0.0
        %236 = vst.msk [vmem:[#allocation2 + $0x58] sm:$0x3] %vm226, 0.0
        %237 = vst.msk [vmem:[#allocation2 + $0x60] sm:$0xff] %vm223, 0.0
        %238 = vst.msk [vmem:[#allocation2 + $0x68] sm:$0xff] %vm223, 0.0
        %239 = vst.msk [vmem:[#allocation2 + $0x70] sm:$0x3] %vm226, 0.0
        %240 = vst.msk [vmem:[#allocation2 + $0x78] sm:$0xff] %vm223, 0.0
        %241 = vst.msk [vmem:[#allocation2 + $0x80] sm:$0xff] %vm223, 0.0
        %242 = vst.msk [vmem:[#allocation2 + $0x88] sm:$0x3] %vm226, 0.0
        %243 = vst.msk [vmem:[#allocation2 + $0x90] sm:$0xff] %vm223, 0.0
        %244 = vst.msk [vmem:[#allocation2 + $0x98] sm:$0xff] %vm223, 0.0
        %245 = vst.msk [vmem:[#allocation2 + $0xa0] sm:$0x3] %vm226, 0.0
        %246 = vst.msk [vmem:[#allocation2 + $0xa8] sm:$0xff] %vm223, 0.0
        %247 = vst.msk [vmem:[#allocation2 + $0xb0] sm:$0xff] %vm223, 0.0
        %248 = vst.msk [vmem:[#allocation2 + $0xb8] sm:$0x3] %vm226, 0.0
        %249 = vst.msk [vmem:[#allocation2 + $0xc0] sm:$0xff] %vm223, 0.0
        %250 = vst.msk [vmem:[#allocation2 + $0xc8] sm:$0xff] %vm223, 0.0
        %251 = vst.msk [vmem:[#allocation2 + $0xd0] sm:$0x3] %vm226, 0.0
        %252 = vst.msk [vmem:[#allocation2 + $0xd8] sm:$0xff] %vm223, 0.0
        %253 = vst.msk [vmem:[#allocation2 + $0xe0] sm:$0xff] %vm223, 0.0
        %254 = vst.msk [vmem:[#allocation2 + $0xe8] sm:$0x3] %vm226, 0.0
        %255 = vst.msk [vmem:[#allocation2 + $0xf0] sm:$0xff] %vm223, 0.0
        %256 = vst.msk [vmem:[#allocation2 + $0xf8] sm:$0xff] %vm223, 0.0
        %257 = vst.msk [vmem:[#allocation2 + $0x100] sm:$0x3] %vm226, 0.0
        %258 = vst.msk [vmem:[#allocation2 + $0x108] sm:$0xff] %vm223, 0.0
        %259 = vst.msk [vmem:[#allocation2 + $0x110] sm:$0xff] %vm223, 0.0
        %260 = vst.msk [vmem:[#allocation2 + $0x118] sm:$0x3] %vm226, 0.0
        %261 = vst.msk [vmem:[#allocation2 + $0x120] sm:$0xff] %vm223, 0.0
        %262 = vst.msk [vmem:[#allocation2 + $0x128] sm:$0xff] %vm223, 0.0
        %263 = vst.msk [vmem:[#allocation2 + $0x130] sm:$0x3] %vm226, 0.0
        %264 = vst.msk [vmem:[#allocation2 + $0x138] sm:$0xff] %vm223, 0.0
        %265 = vst.msk [vmem:[#allocation2 + $0x140] sm:$0xff] %vm223, 0.0
        %266 = vst.msk [vmem:[#allocation2 + $0x148] sm:$0x3] %vm226, 0.0
        %267 = vst.msk [vmem:[#allocation2 + $0x150] sm:$0xff] %vm223, 0.0
        %268 = vst.msk [vmem:[#allocation2 + $0x158] sm:$0xff] %vm223, 0.0
        %269 = vst.msk [vmem:[#allocation2 + $0x160] sm:$0x3] %vm226, 0.0
        %270 = vst.msk [vmem:[#allocation2 + $0x168] sm:$0xff] %vm223, 0.0
        %271 = vst.msk [vmem:[#allocation2 + $0x170] sm:$0xff] %vm223, 0.0
        %272 = vst.msk [vmem:[#allocation2 + $0x178] sm:$0x3] %vm226, 0.0
        %273 = vst.msk [vmem:[#allocation2 + $0x180] sm:$0xff] %vm223, 0.0
        %274 = vst.msk [vmem:[#allocation2 + $0x188] sm:$0xff] %vm223, 0.0
        %275 = vst.msk [vmem:[#allocation2 + $0x190] sm:$0x3] %vm226, 0.0
        %276 = vst.msk [vmem:[#allocation2 + $0x198] sm:$0xff] %vm223, 0.0
        %277 = vst.msk [vmem:[#allocation2 + $0x1a0] sm:$0xff] %vm223, 0.0
        %278 = vst.msk [vmem:[#allocation2 + $0x1a8] sm:$0x3] %vm226, 0.0
        %v279 = vld [vmem:[%s222] sm:$0xff]
        %v281 = vcombine.high %v279, %v279
        %283 = vxpose.xlu0.b32.start [1/16] %v279, 128
        %284 = vxpose.xlu0.b32.cont [2/16] 0.0, 128
        %285 = vxpose.xlu0.b32.cont [3/16] 0.0, 128
        %286 = vxpose.xlu0.b32.cont [4/16] 0.0, 128
        %287 = vxpose.xlu0.b32.cont [5/16] 0.0, 128
        %288 = vxpose.xlu0.b32.cont [6/16] 0.0, 128
        %289 = vxpose.xlu0.b32.cont [7/16] 0.0, 128
        %290 = vxpose.xlu0.b32.cont [8/16] 0.0, 128
        %291 = vxpose.xlu0.b32.cont [9/16] 0.0, 128
        %292 = vxpose.xlu0.b32.cont [10/16] 0.0, 128
        %293 = vxpose.xlu0.b32.cont [11/16] 0.0, 128
        %294 = vxpose.xlu0.b32.cont [12/16] 0.0, 128
        %295 = vxpose.xlu0.b32.cont [13/16] 0.0, 128
        %296 = vxpose.xlu0.b32.cont [14/16] 0.0, 128
        %297 = vxpose.xlu0.b32.cont [15/16] 0.0, 128
        %298 = vxpose.xlu0.b32.end [16/16] 0.0, 128
        %v299 = vpop.trf.xlu0
        %v300 = vpop.trf.xlu0
        %v301 = vpop.trf.xlu0
        %v302 = vpop.trf.xlu0
        %v303 = vpop.trf.xlu0
        %v304 = vpop.trf.xlu0
        %v305 = vpop.trf.xlu0
        %v306 = vpop.trf.xlu0
        %v307 = vpop.trf.xlu0
        %v308 = vpop.trf.xlu0
        %v309 = vpop.trf.xlu0
        %v310 = vpop.trf.xlu0
        %v311 = vpop.trf.xlu0
        %v312 = vpop.trf.xlu0
        %v313 = vpop.trf.xlu0
        %v314 = vpop.trf.xlu0
        %315 = vxpose.xlu0.b32.start [1/16] %v281, 128
        %316 = vxpose.xlu0.b32.cont [2/16] 0.0, 128
        %317 = vxpose.xlu0.b32.cont [3/16] 0.0, 128
        %318 = vxpose.xlu0.b32.cont [4/16] 0.0, 128
        %319 = vxpose.xlu0.b32.cont [5/16] 0.0, 128
        %320 = vxpose.xlu0.b32.cont [6/16] 0.0, 128
        %321 = vxpose.xlu0.b32.cont [7/16] 0.0, 128
        %322 = vxpose.xlu0.b32.cont [8/16] 0.0, 128
        %323 = vxpose.xlu0.b32.cont [9/16] 0.0, 128
        %324 = vxpose.xlu0.b32.cont [10/16] 0.0, 128
        %325 = vxpose.xlu0.b32.cont [11/16] 0.0, 128
        %326 = vxpose.xlu0.b32.cont [12/16] 0.0, 128
        %327 = vxpose.xlu0.b32.cont [13/16] 0.0, 128
        %328 = vxpose.xlu0.b32.cont [14/16] 0.0, 128
        %329 = vxpose.xlu0.b32.cont [15/16] 0.0, 128
        %330 = vxpose.xlu0.b32.end [16/16] 0.0, 128
        %v331 = vpop.trf.xlu0
        %v332 = vpop.trf.xlu0
        %v333 = vpop.trf.xlu0
        %v334 = vpop.trf.xlu0
        %v335 = vpop.trf.xlu0
        %v336 = vpop.trf.xlu0
        %v337 = vpop.trf.xlu0
        %v338 = vpop.trf.xlu0
        %v339 = vpop.trf.xlu0
        %v340 = vpop.trf.xlu0
        %v341 = vpop.trf.xlu0
        %v342 = vpop.trf.xlu0
        %v343 = vpop.trf.xlu0
        %v344 = vpop.trf.xlu0
        %v345 = vpop.trf.xlu0
        %v346 = vpop.trf.xlu0
        %s347 = scalar_lea.vmem [#allocation2], 24
        %348 = vst.msk [vmem:[%s347 + $0x1] sm:$0xff] %vm223, %v299
        %349 = vst.msk [vmem:[%s347 + $0x9] sm:$0xff] %vm223, %v300
        %350 = vst.msk [vmem:[%s347 + $0x19] sm:$0xff] %vm223, %v301
        %351 = vst.msk [vmem:[%s347 + $0x21] sm:$0xff] %vm223, %v302
        %352 = vst.msk [vmem:[%s347 + $0x31] sm:$0xff] %vm223, %v303
        %353 = vst.msk [vmem:[%s347 + $0x39] sm:$0xff] %vm223, %v304
        %354 = vst.msk [vmem:[%s347 + $0x49] sm:$0xff] %vm223, %v305
        %355 = vst.msk [vmem:[%s347 + $0x51] sm:$0xff] %vm223, %v306
        %356 = vst.msk [vmem:[%s347 + $0x61] sm:$0xff] %vm223, %v307
        %357 = vst.msk [vmem:[%s347 + $0x69] sm:$0xff] %vm223, %v308
        %358 = vst.msk [vmem:[%s347 + $0x79] sm:$0xff] %vm223, %v309
        %359 = vst.msk [vmem:[%s347 + $0x81] sm:$0xff] %vm223, %v310
        %360 = vst.msk [vmem:[%s347 + $0x91] sm:$0xff] %vm223, %v311
        %361 = vst.msk [vmem:[%s347 + $0x99] sm:$0xff] %vm223, %v312
        %362 = vst.msk [vmem:[%s347 + $0xa9] sm:$0xff] %vm223, %v313
        %363 = vst.msk [vmem:[%s347 + $0xb1] sm:$0xff] %vm223, %v314
        %364 = vst.msk [vmem:[%s347 + $0xc1] sm:$0xff] %vm223, %v331
        %365 = vst.msk [vmem:[%s347 + $0xc9] sm:$0xff] %vm223, %v332
        %366 = vst.msk [vmem:[%s347 + $0xd9] sm:$0xff] %vm223, %v333
        %367 = vst.msk [vmem:[%s347 + $0xe1] sm:$0xff] %vm223, %v334
        %368 = vst.msk [vmem:[%s347 + $0xf1] sm:$0xff] %vm223, %v335
        %369 = vst.msk [vmem:[%s347 + $0xf9] sm:$0xff] %vm223, %v336
        %370 = vst.msk [vmem:[%s347 + $0x109] sm:$0xff] %vm223, %v337
        %371 = vst.msk [vmem:[%s347 + $0x111] sm:$0xff] %vm223, %v338
        %372 = vst.msk [vmem:[%s347 + $0x121] sm:$0xff] %vm223, %v339
        %373 = vst.msk [vmem:[%s347 + $0x129] sm:$0xff] %vm223, %v340
        %374 = vst.msk [vmem:[%s347 + $0x139] sm:$0xff] %vm223, %v341
        %375 = vst.msk [vmem:[%s347 + $0x141] sm:$0xff] %vm223, %v342
        %376 = vst.msk [vmem:[%s347 + $0x151] sm:$0xff] %vm223, %v343
        %377 = vst.msk [vmem:[%s347 + $0x159] sm:$0xff] %vm223, %v344
        %378 = vst.msk [vmem:[%s347 + $0x169] sm:$0xff] %vm223, %v345
        %379 = vst.msk [vmem:[%s347 + $0x171] sm:$0xff] %vm223, %v346
        %v380 = vld [vmem:[%s1] sm:$0xff]
        %v381 = vld [vmem:[%s1 + $0x8] sm:$0xff]
        %v382 = vld [vmem:[%s1 + $0x10] sm:$0xff]
        %v383 = vld [vmem:[%s1 + $0x18] sm:$0xff]
        %v384 = vld [vmem:[%s1 + $0x20] sm:$0xf]
        %v385 = vld [vmem:[%s2] sm:$0x1]
        %v386 = vld [vmem:[#allocation2] sm:$0xff]
        %v387 = vld [vmem:[#allocation2 + $0x8] sm:$0xff]
        %v388 = vld [vmem:[#allocation2 + $0x10] sm:$0x3]
        %v389 = vld [vmem:[#allocation2 + $0x18] sm:$0xff]
        %v390 = vld [vmem:[#allocation2 + $0x20] sm:$0xff]
        %v391 = vld [vmem:[#allocation2 + $0x28] sm:$0x3]
        %v392 = vld [vmem:[#allocation2 + $0x30] sm:$0xff]
        %v393 = vld [vmem:[#allocation2 + $0x38] sm:$0xff]
        %v394 = vld [vmem:[#allocation2 + $0x40] sm:$0x3]
        %v395 = vld [vmem:[#allocation2 + $0x48] sm:$0xff]
        %v396 = vld [vmem:[#allocation2 + $0x50] sm:$0xff]
        %v397 = vld [vmem:[#allocation2 + $0x58] sm:$0x3]
        %v398 = vld [vmem:[#allocation2 + $0x60] sm:$0xff]
        %v399 = vld [vmem:[#allocation2 + $0x68] sm:$0xff]
        %v400 = vld [vmem:[#allocation2 + $0x70] sm:$0x3]
        %v401 = vld [vmem:[#allocation2 + $0x78] sm:$0xff]
        %v402 = vld [vmem:[#allocation2 + $0x80] sm:$0xff]
        %v403 = vld [vmem:[#allocation2 + $0x88] sm:$0x3]
        %v404 = vld [vmem:[#allocation2 + $0x90] sm:$0xff]
        %v405 = vld [vmem:[#allocation2 + $0x98] sm:$0xff]
        %v406 = vld [vmem:[#allocation2 + $0xa0] sm:$0x3]
        %v407 = vld [vmem:[#allocation2 + $0xa8] sm:$0xff]
        %v408 = vld [vmem:[#allocation2 + $0xb0] sm:$0xff]
        %v409 = vld [vmem:[#allocation2 + $0xb8] sm:$0x3]
        %v410 = vld [vmem:[#allocation2 + $0xc0] sm:$0xff]
        %v411 = vld [vmem:[#allocation2 + $0xc8] sm:$0xff]
        %v412 = vld [vmem:[#allocation2 + $0xd0] sm:$0x3]
        %v413 = vld [vmem:[#allocation2 + $0xd8] sm:$0xff]
        %v414 = vld [vmem:[#allocation2 + $0xe0] sm:$0xff]
        %v415 = vld [vmem:[#allocation2 + $0xe8] sm:$0x3]
        %v416 = vld [vmem:[#allocation2 + $0xf0] sm:$0xff]
        %v417 = vld [vmem:[#allocation2 + $0xf8] sm:$0xff]
        %v418 = vld [vmem:[#allocation2 + $0x100] sm:$0x3]
        %v419 = vld [vmem:[#allocation2 + $0x108] sm:$0xff]
        %v420 = vld [vmem:[#allocation2 + $0x110] sm:$0xff]
        %v421 = vld [vmem:[#allocation2 + $0x118] sm:$0x3]
        %v422 = vld [vmem:[#allocation2 + $0x120] sm:$0xff]
        %v423 = vld [vmem:[#allocation2 + $0x128] sm:$0xff]
        %v424 = vld [vmem:[#allocation2 + $0x130] sm:$0x3]
        %v425 = vld [vmem:[#allocation2 + $0x138] sm:$0xff]
        %v426 = vld [vmem:[#allocation2 + $0x140] sm:$0xff]
        %v427 = vld [vmem:[#allocation2 + $0x148] sm:$0x3]
        %v428 = vld [vmem:[#allocation2 + $0x150] sm:$0xff]
        %v429 = vld [vmem:[#allocation2 + $0x158] sm:$0xff]
        %v430 = vld [vmem:[#allocation2 + $0x160] sm:$0x3]
        %v431 = vld [vmem:[#allocation2 + $0x168] sm:$0xff]
        %v432 = vld [vmem:[#allocation2 + $0x170] sm:$0xff]
        %v433 = vld [vmem:[#allocation2 + $0x178] sm:$0x3]
        %v434 = vld [vmem:[#allocation2 + $0x180] sm:$0xff]
        %v435 = vld [vmem:[#allocation2 + $0x188] sm:$0xff]
        %v436 = vld [vmem:[#allocation2 + $0x190] sm:$0x3]
        %v437 = vld [vmem:[#allocation2 + $0x198] sm:$0xff]
        %v438 = vld [vmem:[#allocation2 + $0x1a0] sm:$0xff]
        %v439 = vld [vmem:[#allocation2 + $0x1a8] sm:$0x3]
        %vm488 = vcmask 1046528
        %v489 = vrot.slane %v386, 1
        %v490 = vrot.slane %v387, 1
        %v491 = vsel %vm488, %v489, %v490
        %v492 = vrot.slane %v388, 1
        %v493 = vsel %vm488, %v490, %v492
        %v494 = vrot.slane %v389, 1
        %v495 = vrot.slane %v390, 1
        %v496 = vsel %vm488, %v494, %v495
        %v497 = vrot.slane %v391, 1
        %v498 = vsel %vm488, %v495, %v497
        %v499 = vrot.slane %v392, 1
        %v500 = vrot.slane %v393, 1
        %v501 = vsel %vm488, %v499, %v500
        %v502 = vrot.slane %v394, 1
        %v503 = vsel %vm488, %v500, %v502
        %v504 = vrot.slane %v395, 1
        %v505 = vrot.slane %v396, 1
        %v506 = vsel %vm488, %v504, %v505
        %v507 = vrot.slane %v397, 1
        %v508 = vsel %vm488, %v505, %v507
        %v509 = vrot.slane %v398, 1
        %v510 = vrot.slane %v399, 1
        %v511 = vsel %vm488, %v509, %v510
        %v512 = vrot.slane %v400, 1
        %v513 = vsel %vm488, %v510, %v512
        %v514 = vrot.slane %v401, 1
        %v515 = vrot.slane %v402, 1
        %v516 = vsel %vm488, %v514, %v515
        %v517 = vrot.slane %v403, 1
        %v518 = vsel %vm488, %v515, %v517
        %v519 = vrot.slane %v404, 1
        %v520 = vrot.slane %v405, 1
        %v521 = vsel %vm488, %v519, %v520
        %v522 = vrot.slane %v406, 1
        %v523 = vsel %vm488, %v520, %v522
        %v524 = vrot.slane %v407, 1
        %v525 = vrot.slane %v408, 1
        %v526 = vsel %vm488, %v524, %v525
        %v527 = vrot.slane %v409, 1
        %v528 = vsel %vm488, %v525, %v527
        %v529 = vrot.slane %v410, 1
        %v530 = vrot.slane %v411, 1
        %v531 = vsel %vm488, %v529, %v530
        %v532 = vrot.slane %v412, 1
        %v533 = vsel %vm488, %v530, %v532
        %v534 = vrot.slane %v413, 1
        %v535 = vrot.slane %v414, 1
        %v536 = vsel %vm488, %v534, %v535
        %v537 = vrot.slane %v415, 1
        %v538 = vsel %vm488, %v535, %v537
        %v539 = vrot.slane %v416, 1
        %v540 = vrot.slane %v417, 1
        %v541 = vsel %vm488, %v539, %v540
        %v542 = vrot.slane %v418, 1
        %v543 = vsel %vm488, %v540, %v542
        %v544 = vrot.slane %v419, 1
        %v545 = vrot.slane %v420, 1
        %v546 = vsel %vm488, %v544, %v545
        %v547 = vrot.slane %v421, 1
        %v548 = vsel %vm488, %v545, %v547
        %v549 = vrot.slane %v422, 1
        %v550 = vrot.slane %v423, 1
        %v551 = vsel %vm488, %v549, %v550
        %v552 = vrot.slane %v424, 1
        %v553 = vsel %vm488, %v550, %v552
        %v554 = vrot.slane %v425, 1
        %v555 = vrot.slane %v426, 1
        %v556 = vsel %vm488, %v554, %v555
        %v557 = vrot.slane %v427, 1
        %v558 = vsel %vm488, %v555, %v557
        %v559 = vrot.slane %v428, 1
        %v560 = vrot.slane %v429, 1
        %v561 = vsel %vm488, %v559, %v560
        %v562 = vrot.slane %v430, 1
        %v563 = vsel %vm488, %v560, %v562
        %v564 = vrot.slane %v431, 1
        %v565 = vrot.slane %v432, 1
        %v566 = vsel %vm488, %v564, %v565
        %v567 = vrot.slane %v433, 1
        %v568 = vsel %vm488, %v565, %v567
        %569 = vrot.lane.b32.xlu0 %v491, 4
        %v570 = vpop.permute.xlu0 %569
        %571 = vrot.lane.b32.xlu0 %v493, 4
        %v572 = vpop.permute.xlu0 %571
        %573 = vrot.lane.b32.xlu0 %v496, 4
        %v574 = vpop.permute.xlu0 %573
        %575 = vrot.lane.b32.xlu0 %v498, 4
        %v576 = vpop.permute.xlu0 %575
        %577 = vrot.lane.b32.xlu0 %v501, 4
        %v578 = vpop.permute.xlu0 %577
        %579 = vrot.lane.b32.xlu0 %v503, 4
        %v580 = vpop.permute.xlu0 %579
        %581 = vrot.lane.b32.xlu0 %v506, 4
        %v582 = vpop.permute.xlu0 %581
        %583 = vrot.lane.b32.xlu0 %v508, 4
        %v584 = vpop.permute.xlu0 %583
        %585 = vrot.lane.b32.xlu0 %v511, 4
        %v586 = vpop.permute.xlu0 %585
        %587 = vrot.lane.b32.xlu0 %v513, 4
        %v588 = vpop.permute.xlu0 %587
        %589 = vrot.lane.b32.xlu0 %v516, 4
        %v590 = vpop.permute.xlu0 %589
        %591 = vrot.lane.b32.xlu0 %v518, 4
        %v592 = vpop.permute.xlu0 %591
        %593 = vrot.lane.b32.xlu0 %v521, 4
        %v594 = vpop.permute.xlu0 %593
        %595 = vrot.lane.b32.xlu0 %v523, 4
        %v596 = vpop.permute.xlu0 %595
        %597 = vrot.lane.b32.xlu0 %v526, 4
        %v598 = vpop.permute.xlu0 %597
        %599 = vrot.lane.b32.xlu0 %v528, 4
        %v600 = vpop.permute.xlu0 %599
        %601 = vrot.lane.b32.xlu0 %v531, 4
        %v602 = vpop.permute.xlu0 %601
        %603 = vrot.lane.b32.xlu0 %v533, 4
        %v604 = vpop.permute.xlu0 %603
        %605 = vrot.lane.b32.xlu0 %v536, 4
        %v606 = vpop.permute.xlu0 %605
        %607 = vrot.lane.b32.xlu0 %v538, 4
        %v608 = vpop.permute.xlu0 %607
        %609 = vrot.lane.b32.xlu0 %v541, 4
        %v610 = vpop.permute.xlu0 %609
        %611 = vrot.lane.b32.xlu0 %v543, 4
        %v612 = vpop.permute.xlu0 %611
        %613 = vrot.lane.b32.xlu0 %v546, 4
        %v614 = vpop.permute.xlu0 %613
        %615 = vrot.lane.b32.xlu0 %v548, 4
        %v616 = vpop.permute.xlu0 %615
        %617 = vrot.lane.b32.xlu0 %v551, 4
        %v618 = vpop.permute.xlu0 %617
        %619 = vrot.lane.b32.xlu0 %v553, 4
        %v620 = vpop.permute.xlu0 %619
        %621 = vrot.lane.b32.xlu0 %v556, 4
        %v622 = vpop.permute.xlu0 %621
        %623 = vrot.lane.b32.xlu0 %v558, 4
        %v624 = vpop.permute.xlu0 %623
        %625 = vrot.lane.b32.xlu0 %v561, 4
        %v626 = vpop.permute.xlu0 %625
        %627 = vrot.lane.b32.xlu0 %v563, 4
        %v628 = vpop.permute.xlu0 %627
        %629 = vrot.lane.b32.xlu0 %v566, 4
        %v630 = vpop.permute.xlu0 %629
        %631 = vrot.lane.b32.xlu0 %v568, 4
        %v632 = vpop.permute.xlu0 %631
        %vm665 = vcmask 1045504
        %v666 = vrot.slane %v386, 2
        %v667 = vrot.slane %v387, 2
        %v668 = vsel %vm665, %v666, %v667
        %v669 = vrot.slane %v388, 2
        %v670 = vsel %vm665, %v667, %v669
        %v671 = vrot.slane %v389, 2
        %v672 = vrot.slane %v390, 2
        %v673 = vsel %vm665, %v671, %v672
        %v674 = vrot.slane %v391, 2
        %v675 = vsel %vm665, %v672, %v674
        %v676 = vrot.slane %v392, 2
        %v677 = vrot.slane %v393, 2
        %v678 = vsel %vm665, %v676, %v677
        %v679 = vrot.slane %v394, 2
        %v680 = vsel %vm665, %v677, %v679
        %v681 = vrot.slane %v395, 2
        %v682 = vrot.slane %v396, 2
        %v683 = vsel %vm665, %v681, %v682
        %v684 = vrot.slane %v397, 2
        %v685 = vsel %vm665, %v682, %v684
        %v686 = vrot.slane %v398, 2
        %v687 = vrot.slane %v399, 2
        %v688 = vsel %vm665, %v686, %v687
        %v689 = vrot.slane %v400, 2
        %v690 = vsel %vm665, %v687, %v689
        %v691 = vrot.slane %v401, 2
        %v692 = vrot.slane %v402, 2
        %v693 = vsel %vm665, %v691, %v692
        %v694 = vrot.slane %v403, 2
        %v695 = vsel %vm665, %v692, %v694
        %v696 = vrot.slane %v404, 2
        %v697 = vrot.slane %v405, 2
        %v698 = vsel %vm665, %v696, %v697
        %v699 = vrot.slane %v406, 2
        %v700 = vsel %vm665, %v697, %v699
        %v701 = vrot.slane %v407, 2
        %v702 = vrot.slane %v408, 2
        %v703 = vsel %vm665, %v701, %v702
        %v704 = vrot.slane %v409, 2
        %v705 = vsel %vm665, %v702, %v704
        %v706 = vrot.slane %v410, 2
        %v707 = vrot.slane %v411, 2
        %v708 = vsel %vm665, %v706, %v707
        %v709 = vrot.slane %v412, 2
        %v710 = vsel %vm665, %v707, %v709
        %v711 = vrot.slane %v413, 2
        %v712 = vrot.slane %v414, 2
        %v713 = vsel %vm665, %v711, %v712
        %v714 = vrot.slane %v415, 2
        %v715 = vsel %vm665, %v712, %v714
        %v716 = vrot.slane %v416, 2
        %v717 = vrot.slane %v417, 2
        %v718 = vsel %vm665, %v716, %v717
        %v719 = vrot.slane %v418, 2
        %v720 = vsel %vm665, %v717, %v719
        %v721 = vrot.slane %v419, 2
        %v722 = vrot.slane %v420, 2
        %v723 = vsel %vm665, %v721, %v722
        %v724 = vrot.slane %v421, 2
        %v725 = vsel %vm665, %v722, %v724
        %v726 = vrot.slane %v422, 2
        %v727 = vrot.slane %v423, 2
        %v728 = vsel %vm665, %v726, %v727
        %v729 = vrot.slane %v424, 2
        %v730 = vsel %vm665, %v727, %v729
        %v731 = vrot.slane %v425, 2
        %v732 = vrot.slane %v426, 2
        %v733 = vsel %vm665, %v731, %v732
        %v734 = vrot.slane %v427, 2
        %v735 = vsel %vm665, %v732, %v734
        %v736 = vrot.slane %v428, 2
        %v737 = vrot.slane %v429, 2
        %v738 = vsel %vm665, %v736, %v737
        %v739 = vrot.slane %v430, 2
        %v740 = vsel %vm665, %v737, %v739
        %v741 = vrot.slane %v431, 2
        %v742 = vrot.slane %v432, 2
        %v743 = vsel %vm665, %v741, %v742
        %v744 = vrot.slane %v433, 2
        %v745 = vsel %vm665, %v742, %v744
        %746 = vrot.lane.b32.xlu0 %v668, 8
        %v747 = vpop.permute.xlu0 %746
        %748 = vrot.lane.b32.xlu0 %v670, 8
        %v749 = vpop.permute.xlu0 %748
        %750 = vrot.lane.b32.xlu0 %v673, 8
        %v751 = vpop.permute.xlu0 %750
        %752 = vrot.lane.b32.xlu0 %v675, 8
        %v753 = vpop.permute.xlu0 %752
        %754 = vrot.lane.b32.xlu0 %v678, 8
        %v755 = vpop.permute.xlu0 %754
        %756 = vrot.lane.b32.xlu0 %v680, 8
        %v757 = vpop.permute.xlu0 %756
        %758 = vrot.lane.b32.xlu0 %v683, 8
        %v759 = vpop.permute.xlu0 %758
        %760 = vrot.lane.b32.xlu0 %v685, 8
        %v761 = vpop.permute.xlu0 %760
        %762 = vrot.lane.b32.xlu0 %v688, 8
        %v763 = vpop.permute.xlu0 %762
        %764 = vrot.lane.b32.xlu0 %v690, 8
        %v765 = vpop.permute.xlu0 %764
        %766 = vrot.lane.b32.xlu0 %v693, 8
        %v767 = vpop.permute.xlu0 %766
        %768 = vrot.lane.b32.xlu0 %v695, 8
        %v769 = vpop.permute.xlu0 %768
        %770 = vrot.lane.b32.xlu0 %v698, 8
        %v771 = vpop.permute.xlu0 %770
        %772 = vrot.lane.b32.xlu0 %v700, 8
        %v773 = vpop.permute.xlu0 %772
        %774 = vrot.lane.b32.xlu0 %v703, 8
        %v775 = vpop.permute.xlu0 %774
        %776 = vrot.lane.b32.xlu0 %v705, 8
        %v777 = vpop.permute.xlu0 %776
        %778 = vrot.lane.b32.xlu0 %v708, 8
        %v779 = vpop.permute.xlu0 %778
        %780 = vrot.lane.b32.xlu0 %v710, 8
        %v781 = vpop.permute.xlu0 %780
        %782 = vrot.lane.b32.xlu0 %v713, 8
        %v783 = vpop.permute.xlu0 %782
        %784 = vrot.lane.b32.xlu0 %v715, 8
        %v785 = vpop.permute.xlu0 %784
        %786 = vrot.lane.b32.xlu0 %v718, 8
        %v787 = vpop.permute.xlu0 %786
        %788 = vrot.lane.b32.xlu0 %v720, 8
        %v789 = vpop.permute.xlu0 %788
        %790 = vrot.lane.b32.xlu0 %v723, 8
        %v791 = vpop.permute.xlu0 %790
        %792 = vrot.lane.b32.xlu0 %v725, 8
        %v793 = vpop.permute.xlu0 %792
        %794 = vrot.lane.b32.xlu0 %v728, 8
        %v795 = vpop.permute.xlu0 %794
        %796 = vrot.lane.b32.xlu0 %v730, 8
        %v797 = vpop.permute.xlu0 %796
        %798 = vrot.lane.b32.xlu0 %v733, 8
        %v799 = vpop.permute.xlu0 %798
        %800 = vrot.lane.b32.xlu0 %v735, 8
        %v801 = vpop.permute.xlu0 %800
        %802 = vrot.lane.b32.xlu0 %v738, 8
        %v803 = vpop.permute.xlu0 %802
        %804 = vrot.lane.b32.xlu0 %v740, 8
        %v805 = vpop.permute.xlu0 %804
        %806 = vrot.lane.b32.xlu0 %v743, 8
        %v807 = vpop.permute.xlu0 %806
        %808 = vrot.lane.b32.xlu0 %v745, 8
        %v809 = vpop.permute.xlu0 %808
        %844 = vrot.lane.b32.xlu0 %v389, 12
        %v845 = vpop.permute.xlu0 %844
        %846 = vrot.lane.b32.xlu0 %v390, 12
        %v847 = vpop.permute.xlu0 %846
        %848 = vrot.lane.b32.xlu0 %v392, 12
        %v849 = vpop.permute.xlu0 %848
        %850 = vrot.lane.b32.xlu0 %v393, 12
        %v851 = vpop.permute.xlu0 %850
        %852 = vrot.lane.b32.xlu0 %v395, 12
        %v853 = vpop.permute.xlu0 %852
        %854 = vrot.lane.b32.xlu0 %v396, 12
        %v855 = vpop.permute.xlu0 %854
        %856 = vrot.lane.b32.xlu0 %v398, 12
        %v857 = vpop.permute.xlu0 %856
        %858 = vrot.lane.b32.xlu0 %v399, 12
        %v859 = vpop.permute.xlu0 %858
        %860 = vrot.lane.b32.xlu0 %v401, 12
        %v861 = vpop.permute.xlu0 %860
        %862 = vrot.lane.b32.xlu0 %v402, 12
        %v863 = vpop.permute.xlu0 %862
        %864 = vrot.lane.b32.xlu0 %v404, 12
        %v865 = vpop.permute.xlu0 %864
        %866 = vrot.lane.b32.xlu0 %v405, 12
        %v867 = vpop.permute.xlu0 %866
        %868 = vrot.lane.b32.xlu0 %v407, 12
        %v869 = vpop.permute.xlu0 %868
        %870 = vrot.lane.b32.xlu0 %v408, 12
        %v871 = vpop.permute.xlu0 %870
        %872 = vrot.lane.b32.xlu0 %v410, 12
        %v873 = vpop.permute.xlu0 %872
        %874 = vrot.lane.b32.xlu0 %v411, 12
        %v875 = vpop.permute.xlu0 %874
        %876 = vrot.lane.b32.xlu0 %v413, 12
        %v877 = vpop.permute.xlu0 %876
        %878 = vrot.lane.b32.xlu0 %v414, 12
        %v879 = vpop.permute.xlu0 %878
        %880 = vrot.lane.b32.xlu0 %v416, 12
        %v881 = vpop.permute.xlu0 %880
        %882 = vrot.lane.b32.xlu0 %v417, 12
        %v883 = vpop.permute.xlu0 %882
        %884 = vrot.lane.b32.xlu0 %v419, 12
        %v885 = vpop.permute.xlu0 %884
        %886 = vrot.lane.b32.xlu0 %v420, 12
        %v887 = vpop.permute.xlu0 %886
        %888 = vrot.lane.b32.xlu0 %v422, 12
        %v889 = vpop.permute.xlu0 %888
        %890 = vrot.lane.b32.xlu0 %v423, 12
        %v891 = vpop.permute.xlu0 %890
        %892 = vrot.lane.b32.xlu0 %v425, 12
        %v893 = vpop.permute.xlu0 %892
        %894 = vrot.lane.b32.xlu0 %v426, 12
        %v895 = vpop.permute.xlu0 %894
        %896 = vrot.lane.b32.xlu0 %v428, 12
        %v897 = vpop.permute.xlu0 %896
        %898 = vrot.lane.b32.xlu0 %v429, 12
        %v899 = vpop.permute.xlu0 %898
        %900 = vrot.lane.b32.xlu0 %v431, 12
        %v901 = vpop.permute.xlu0 %900
        %902 = vrot.lane.b32.xlu0 %v432, 12
        %v903 = vpop.permute.xlu0 %902
        %904 = vrot.lane.b32.xlu0 %v434, 12
        %v905 = vpop.permute.xlu0 %904
        %906 = vrot.lane.b32.xlu0 %v435, 12
        %v907 = vpop.permute.xlu0 %906
        %v941 = vrot.slane %v434, 1
        %v942 = vrot.slane %v435, 1
        %v943 = vsel %vm488, %v941, %v942
        %v944 = vrot.slane %v436, 1
        %v945 = vsel %vm488, %v942, %v944
        %946 = vrot.lane.b32.xlu0 %v496, 16
        %v947 = vpop.permute.xlu0 %946
        %948 = vrot.lane.b32.xlu0 %v498, 16
        %v949 = vpop.permute.xlu0 %948
        %950 = vrot.lane.b32.xlu0 %v501, 16
        %v951 = vpop.permute.xlu0 %950
        %952 = vrot.lane.b32.xlu0 %v503, 16
        %v953 = vpop.permute.xlu0 %952
        %954 = vrot.lane.b32.xlu0 %v506, 16
        %v955 = vpop.permute.xlu0 %954
        %956 = vrot.lane.b32.xlu0 %v508, 16
        %v957 = vpop.permute.xlu0 %956
        %958 = vrot.lane.b32.xlu0 %v511, 16
        %v959 = vpop.permute.xlu0 %958
        %960 = vrot.lane.b32.xlu0 %v513, 16
        %v961 = vpop.permute.xlu0 %960
        %962 = vrot.lane.b32.xlu0 %v516, 16
        %v963 = vpop.permute.xlu0 %962
        %964 = vrot.lane.b32.xlu0 %v518, 16
        %v965 = vpop.permute.xlu0 %964
        %966 = vrot.lane.b32.xlu0 %v521, 16
        %v967 = vpop.permute.xlu0 %966
        %968 = vrot.lane.b32.xlu0 %v523, 16
        %v969 = vpop.permute.xlu0 %968
        %970 = vrot.lane.b32.xlu0 %v526, 16
        %v971 = vpop.permute.xlu0 %970
        %972 = vrot.lane.b32.xlu0 %v528, 16
        %v973 = vpop.permute.xlu0 %972
        %974 = vrot.lane.b32.xlu0 %v531, 16
        %v975 = vpop.permute.xlu0 %974
        %976 = vrot.lane.b32.xlu0 %v533, 16
        %v977 = vpop.permute.xlu0 %976
        %978 = vrot.lane.b32.xlu0 %v536, 16
        %v979 = vpop.permute.xlu0 %978
        %980 = vrot.lane.b32.xlu0 %v538, 16
        %v981 = vpop.permute.xlu0 %980
        %982 = vrot.lane.b32.xlu0 %v541, 16
        %v983 = vpop.permute.xlu0 %982
        %984 = vrot.lane.b32.xlu0 %v543, 16
        %v985 = vpop.permute.xlu0 %984
        %986 = vrot.lane.b32.xlu0 %v546, 16
        %v987 = vpop.permute.xlu0 %986
        %988 = vrot.lane.b32.xlu0 %v548, 16
        %v989 = vpop.permute.xlu0 %988
        %990 = vrot.lane.b32.xlu0 %v551, 16
        %v991 = vpop.permute.xlu0 %990
        %992 = vrot.lane.b32.xlu0 %v553, 16
        %v993 = vpop.permute.xlu0 %992
        %994 = vrot.lane.b32.xlu0 %v556, 16
        %v995 = vpop.permute.xlu0 %994
        %996 = vrot.lane.b32.xlu0 %v558, 16
        %v997 = vpop.permute.xlu0 %996
        %998 = vrot.lane.b32.xlu0 %v561, 16
        %v999 = vpop.permute.xlu0 %998
        %1000 = vrot.lane.b32.xlu0 %v563, 16
        %v1001 = vpop.permute.xlu0 %1000
        %1002 = vrot.lane.b32.xlu0 %v566, 16
        %v1003 = vpop.permute.xlu0 %1002
        %1004 = vrot.lane.b32.xlu0 %v568, 16
        %v1005 = vpop.permute.xlu0 %1004
        %1006 = vrot.lane.b32.xlu0 %v943, 16
        %v1007 = vpop.permute.xlu0 %1006
        %1008 = vrot.lane.b32.xlu0 %v945, 16
        %v1009 = vpop.permute.xlu0 %1008
        %v1042 = vrot.slane %v434, 2
        %v1043 = vrot.slane %v435, 2
        %v1044 = vsel %vm665, %v1042, %v1043
        %v1045 = vrot.slane %v436, 2
        %v1046 = vsel %vm665, %v1043, %v1045
        %1047 = vrot.lane.b32.xlu0 %v673, 20
        %v1048 = vpop.permute.xlu0 %1047
        %1049 = vrot.lane.b32.xlu0 %v675, 20
        %v1050 = vpop.permute.xlu0 %1049
        %1051 = vrot.lane.b32.xlu0 %v678, 20
        %v1052 = vpop.permute.xlu0 %1051
        %1053 = vrot.lane.b32.xlu0 %v680, 20
        %v1054 = vpop.permute.xlu0 %1053
        %1055 = vrot.lane.b32.xlu0 %v683, 20
        %v1056 = vpop.permute.xlu0 %1055
        %1057 = vrot.lane.b32.xlu0 %v685, 20
        %v1058 = vpop.permute.xlu0 %1057
        %1059 = vrot.lane.b32.xlu0 %v688, 20
        %v1060 = vpop.permute.xlu0 %1059
        %1061 = vrot.lane.b32.xlu0 %v690, 20
        %v1062 = vpop.permute.xlu0 %1061
        %1063 = vrot.lane.b32.xlu0 %v693, 20
        %v1064 = vpop.permute.xlu0 %1063
        %1065 = vrot.lane.b32.xlu0 %v695, 20
        %v1066 = vpop.permute.xlu0 %1065
        %1067 = vrot.lane.b32.xlu0 %v698, 20
        %v1068 = vpop.permute.xlu0 %1067
        %1069 = vrot.lane.b32.xlu0 %v700, 20
        %v1070 = vpop.permute.xlu0 %1069
        %1071 = vrot.lane.b32.xlu0 %v703, 20
        %v1072 = vpop.permute.xlu0 %1071
        %1073 = vrot.lane.b32.xlu0 %v705, 20
        %v1074 = vpop.permute.xlu0 %1073
        %1075 = vrot.lane.b32.xlu0 %v708, 20
        %v1076 = vpop.permute.xlu0 %1075
        %1077 = vrot.lane.b32.xlu0 %v710, 20
        %v1078 = vpop.permute.xlu0 %1077
        %1079 = vrot.lane.b32.xlu0 %v713, 20
        %v1080 = vpop.permute.xlu0 %1079
        %1081 = vrot.lane.b32.xlu0 %v715, 20
        %v1082 = vpop.permute.xlu0 %1081
        %1083 = vrot.lane.b32.xlu0 %v718, 20
        %v1084 = vpop.permute.xlu0 %1083
        %1085 = vrot.lane.b32.xlu0 %v720, 20
        %v1086 = vpop.permute.xlu0 %1085
        %1087 = vrot.lane.b32.xlu0 %v723, 20
        %v1088 = vpop.permute.xlu0 %1087
        %1089 = vrot.lane.b32.xlu0 %v725, 20
        %v1090 = vpop.permute.xlu0 %1089
        %1091 = vrot.lane.b32.xlu0 %v728, 20
        %v1092 = vpop.permute.xlu0 %1091
        %1093 = vrot.lane.b32.xlu0 %v730, 20
        %v1094 = vpop.permute.xlu0 %1093
        %1095 = vrot.lane.b32.xlu0 %v733, 20
        %v1096 = vpop.permute.xlu0 %1095
        %1097 = vrot.lane.b32.xlu0 %v735, 20
        %v1098 = vpop.permute.xlu0 %1097
        %1099 = vrot.lane.b32.xlu0 %v738, 20
        %v1100 = vpop.permute.xlu0 %1099
        %1101 = vrot.lane.b32.xlu0 %v740, 20
        %v1102 = vpop.permute.xlu0 %1101
        %1103 = vrot.lane.b32.xlu0 %v743, 20
        %v1104 = vpop.permute.xlu0 %1103
        %1105 = vrot.lane.b32.xlu0 %v745, 20
        %v1106 = vpop.permute.xlu0 %1105
        %1107 = vrot.lane.b32.xlu0 %v1044, 20
        %v1108 = vpop.permute.xlu0 %1107
        %1109 = vrot.lane.b32.xlu0 %v1046, 20
        %v1110 = vpop.permute.xlu0 %1109
        %1145 = vrot.lane.b32.xlu0 %v392, 24
        %v1146 = vpop.permute.xlu0 %1145
        %1147 = vrot.lane.b32.xlu0 %v393, 24
        %v1148 = vpop.permute.xlu0 %1147
        %1149 = vrot.lane.b32.xlu0 %v395, 24
        %v1150 = vpop.permute.xlu0 %1149
        %1151 = vrot.lane.b32.xlu0 %v396, 24
        %v1152 = vpop.permute.xlu0 %1151
        %1153 = vrot.lane.b32.xlu0 %v398, 24
        %v1154 = vpop.permute.xlu0 %1153
        %1155 = vrot.lane.b32.xlu0 %v399, 24
        %v1156 = vpop.permute.xlu0 %1155
        %1157 = vrot.lane.b32.xlu0 %v401, 24
        %v1158 = vpop.permute.xlu0 %1157
        %1159 = vrot.lane.b32.xlu0 %v402, 24
        %v1160 = vpop.permute.xlu0 %1159
        %1161 = vrot.lane.b32.xlu0 %v404, 24
        %v1162 = vpop.permute.xlu0 %1161
        %1163 = vrot.lane.b32.xlu0 %v405, 24
        %v1164 = vpop.permute.xlu0 %1163
        %1165 = vrot.lane.b32.xlu0 %v407, 24
        %v1166 = vpop.permute.xlu0 %1165
        %1167 = vrot.lane.b32.xlu0 %v408, 24
        %v1168 = vpop.permute.xlu0 %1167
        %1169 = vrot.lane.b32.xlu0 %v410, 24
        %v1170 = vpop.permute.xlu0 %1169
        %1171 = vrot.lane.b32.xlu0 %v411, 24
        %v1172 = vpop.permute.xlu0 %1171
        %1173 = vrot.lane.b32.xlu0 %v413, 24
        %v1174 = vpop.permute.xlu0 %1173
        %1175 = vrot.lane.b32.xlu0 %v414, 24
        %v1176 = vpop.permute.xlu0 %1175
        %1177 = vrot.lane.b32.xlu0 %v416, 24
        %v1178 = vpop.permute.xlu0 %1177
        %1179 = vrot.lane.b32.xlu0 %v417, 24
        %v1180 = vpop.permute.xlu0 %1179
        %1181 = vrot.lane.b32.xlu0 %v419, 24
        %v1182 = vpop.permute.xlu0 %1181
        %1183 = vrot.lane.b32.xlu0 %v420, 24
        %v1184 = vpop.permute.xlu0 %1183
        %1185 = vrot.lane.b32.xlu0 %v422, 24
        %v1186 = vpop.permute.xlu0 %1185
        %1187 = vrot.lane.b32.xlu0 %v423, 24
        %v1188 = vpop.permute.xlu0 %1187
        %1189 = vrot.lane.b32.xlu0 %v425, 24
        %v1190 = vpop.permute.xlu0 %1189
        %1191 = vrot.lane.b32.xlu0 %v426, 24
        %v1192 = vpop.permute.xlu0 %1191
        %1193 = vrot.lane.b32.xlu0 %v428, 24
        %v1194 = vpop.permute.xlu0 %1193
        %1195 = vrot.lane.b32.xlu0 %v429, 24
        %v1196 = vpop.permute.xlu0 %1195
        %1197 = vrot.lane.b32.xlu0 %v431, 24
        %v1198 = vpop.permute.xlu0 %1197
        %1199 = vrot.lane.b32.xlu0 %v432, 24
        %v1200 = vpop.permute.xlu0 %1199
        %1201 = vrot.lane.b32.xlu0 %v434, 24
        %v1202 = vpop.permute.xlu0 %1201
        %1203 = vrot.lane.b32.xlu0 %v435, 24
        %v1204 = vpop.permute.xlu0 %1203
        %1205 = vrot.lane.b32.xlu0 %v437, 24
        %v1206 = vpop.permute.xlu0 %1205
        %1207 = vrot.lane.b32.xlu0 %v438, 24
        %v1208 = vpop.permute.xlu0 %1207
        %v1242 = vrot.slane %v437, 1
        %v1243 = vrot.slane %v438, 1
        %v1244 = vsel %vm488, %v1242, %v1243
        %v1245 = vrot.slane %v439, 1
        %v1246 = vsel %vm488, %v1243, %v1245
        %1247 = vrot.lane.b32.xlu0 %v501, 28
        %v1248 = vpop.permute.xlu0 %1247
        %1249 = vrot.lane.b32.xlu0 %v503, 28
        %v1250 = vpop.permute.xlu0 %1249
        %1251 = vrot.lane.b32.xlu0 %v506, 28
        %v1252 = vpop.permute.xlu0 %1251
        %1253 = vrot.lane.b32.xlu0 %v508, 28
        %v1254 = vpop.permute.xlu0 %1253
        %1255 = vrot.lane.b32.xlu0 %v511, 28
        %v1256 = vpop.permute.xlu0 %1255
        %1257 = vrot.lane.b32.xlu0 %v513, 28
        %v1258 = vpop.permute.xlu0 %1257
        %1259 = vrot.lane.b32.xlu0 %v516, 28
        %v1260 = vpop.permute.xlu0 %1259
        %1261 = vrot.lane.b32.xlu0 %v518, 28
        %v1262 = vpop.permute.xlu0 %1261
        %1263 = vrot.lane.b32.xlu0 %v521, 28
        %v1264 = vpop.permute.xlu0 %1263
        %1265 = vrot.lane.b32.xlu0 %v523, 28
        %v1266 = vpop.permute.xlu0 %1265
        %1267 = vrot.lane.b32.xlu0 %v526, 28
        %v1268 = vpop.permute.xlu0 %1267
        %1269 = vrot.lane.b32.xlu0 %v528, 28
        %v1270 = vpop.permute.xlu0 %1269
        %1271 = vrot.lane.b32.xlu0 %v531, 28
        %v1272 = vpop.permute.xlu0 %1271
        %1273 = vrot.lane.b32.xlu0 %v533, 28
        %v1274 = vpop.permute.xlu0 %1273
        %1275 = vrot.lane.b32.xlu0 %v536, 28
        %v1276 = vpop.permute.xlu0 %1275
        %1277 = vrot.lane.b32.xlu0 %v538, 28
        %v1278 = vpop.permute.xlu0 %1277
        %1279 = vrot.lane.b32.xlu0 %v541, 28
        %v1280 = vpop.permute.xlu0 %1279
        %1281 = vrot.lane.b32.xlu0 %v543, 28
        %v1282 = vpop.permute.xlu0 %1281
        %1283 = vrot.lane.b32.xlu0 %v546, 28
        %v1284 = vpop.permute.xlu0 %1283
        %1285 = vrot.lane.b32.xlu0 %v548, 28
        %v1286 = vpop.permute.xlu0 %1285
        %1287 = vrot.lane.b32.xlu0 %v551, 28
        %v1288 = vpop.permute.xlu0 %1287
        %1289 = vrot.lane.b32.xlu0 %v553, 28
        %v1290 = vpop.permute.xlu0 %1289
        %1291 = vrot.lane.b32.xlu0 %v556, 28
        %v1292 = vpop.permute.xlu0 %1291
        %1293 = vrot.lane.b32.xlu0 %v558, 28
        %v1294 = vpop.permute.xlu0 %1293
        %1295 = vrot.lane.b32.xlu0 %v561, 28
        %v1296 = vpop.permute.xlu0 %1295
        %1297 = vrot.lane.b32.xlu0 %v563, 28
        %v1298 = vpop.permute.xlu0 %1297
        %1299 = vrot.lane.b32.xlu0 %v566, 28
        %v1300 = vpop.permute.xlu0 %1299
        %1301 = vrot.lane.b32.xlu0 %v568, 28
        %v1302 = vpop.permute.xlu0 %1301
        %1303 = vrot.lane.b32.xlu0 %v943, 28
        %v1304 = vpop.permute.xlu0 %1303
        %1305 = vrot.lane.b32.xlu0 %v945, 28
        %v1306 = vpop.permute.xlu0 %1305
        %1307 = vrot.lane.b32.xlu0 %v1244, 28
        %v1308 = vpop.permute.xlu0 %1307
        %1309 = vrot.lane.b32.xlu0 %v1246, 28
        %v1310 = vpop.permute.xlu0 %1309
        %v1343 = vrot.slane %v437, 2
        %v1344 = vrot.slane %v438, 2
        %v1345 = vsel %vm665, %v1343, %v1344
        %v1346 = vrot.slane %v439, 2
        %v1347 = vsel %vm665, %v1344, %v1346
        %1348 = vrot.lane.b32.xlu0 %v678, 32
        %v1349 = vpop.permute.xlu0 %1348
        %1350 = vrot.lane.b32.xlu0 %v680, 32
        %v1351 = vpop.permute.xlu0 %1350
        %1352 = vrot.lane.b32.xlu0 %v683, 32
        %v1353 = vpop.permute.xlu0 %1352
        %1354 = vrot.lane.b32.xlu0 %v685, 32
        %v1355 = vpop.permute.xlu0 %1354
        %1356 = vrot.lane.b32.xlu0 %v688, 32
        %v1357 = vpop.permute.xlu0 %1356
        %1358 = vrot.lane.b32.xlu0 %v690, 32
        %v1359 = vpop.permute.xlu0 %1358
        %1360 = vrot.lane.b32.xlu0 %v693, 32
        %v1361 = vpop.permute.xlu0 %1360
        %1362 = vrot.lane.b32.xlu0 %v695, 32
        %v1363 = vpop.permute.xlu0 %1362
        %1364 = vrot.lane.b32.xlu0 %v698, 32
        %v1365 = vpop.permute.xlu0 %1364
        %1366 = vrot.lane.b32.xlu0 %v700, 32
        %v1367 = vpop.permute.xlu0 %1366
        %1368 = vrot.lane.b32.xlu0 %v703, 32
        %v1369 = vpop.permute.xlu0 %1368
        %1370 = vrot.lane.b32.xlu0 %v705, 32
        %v1371 = vpop.permute.xlu0 %1370
        %1372 = vrot.lane.b32.xlu0 %v708, 32
        %v1373 = vpop.permute.xlu0 %1372
        %1374 = vrot.lane.b32.xlu0 %v710, 32
        %v1375 = vpop.permute.xlu0 %1374
        %1376 = vrot.lane.b32.xlu0 %v713, 32
        %v1377 = vpop.permute.xlu0 %1376
        %1378 = vrot.lane.b32.xlu0 %v715, 32
        %v1379 = vpop.permute.xlu0 %1378
        %1380 = vrot.lane.b32.xlu0 %v718, 32
        %v1381 = vpop.permute.xlu0 %1380
        %1382 = vrot.lane.b32.xlu0 %v720, 32
        %v1383 = vpop.permute.xlu0 %1382
        %1384 = vrot.lane.b32.xlu0 %v723, 32
        %v1385 = vpop.permute.xlu0 %1384
        %1386 = vrot.lane.b32.xlu0 %v725, 32
        %v1387 = vpop.permute.xlu0 %1386
        %1388 = vrot.lane.b32.xlu0 %v728, 32
        %v1389 = vpop.permute.xlu0 %1388
        %1390 = vrot.lane.b32.xlu0 %v730, 32
        %v1391 = vpop.permute.xlu0 %1390
        %1392 = vrot.lane.b32.xlu0 %v733, 32
        %v1393 = vpop.permute.xlu0 %1392
        %1394 = vrot.lane.b32.xlu0 %v735, 32
        %v1395 = vpop.permute.xlu0 %1394
        %1396 = vrot.lane.b32.xlu0 %v738, 32
        %v1397 = vpop.permute.xlu0 %1396
        %1398 = vrot.lane.b32.xlu0 %v740, 32
        %v1399 = vpop.permute.xlu0 %1398
        %1400 = vrot.lane.b32.xlu0 %v743, 32
        %v1401 = vpop.permute.xlu0 %1400
        %1402 = vrot.lane.b32.xlu0 %v745, 32
        %v1403 = vpop.permute.xlu0 %1402
        %1404 = vrot.lane.b32.xlu0 %v1044, 32
        %v1405 = vpop.permute.xlu0 %1404
        %1406 = vrot.lane.b32.xlu0 %v1046, 32
        %v1407 = vpop.permute.xlu0 %1406
        %1408 = vrot.lane.b32.xlu0 %v1345, 32
        %v1409 = vpop.permute.xlu0 %1408
        %1410 = vrot.lane.b32.xlu0 %v1347, 32
        %v1411 = vpop.permute.xlu0 %1410
        %v1444 = vsel %vm223, %v386, %v570
        %v1445 = vsel %vm223, %v387, %v572
        %v1446 = vsel %vm223, %v389, %v574
        %v1447 = vsel %vm223, %v390, %v576
        %v1448 = vsel %vm223, %v392, %v578
        %v1449 = vsel %vm223, %v393, %v580
        %v1450 = vsel %vm223, %v395, %v582
        %v1451 = vsel %vm223, %v396, %v584
        %v1452 = vsel %vm223, %v398, %v586
        %v1453 = vsel %vm223, %v399, %v588
        %v1454 = vsel %vm223, %v401, %v590
        %v1455 = vsel %vm223, %v402, %v592
        %v1456 = vsel %vm223, %v404, %v594
        %v1457 = vsel %vm223, %v405, %v596
        %v1458 = vsel %vm223, %v407, %v598
        %v1459 = vsel %vm223, %v408, %v600
        %v1460 = vsel %vm223, %v410, %v602
        %v1461 = vsel %vm223, %v411, %v604
        %v1462 = vsel %vm223, %v413, %v606
        %v1463 = vsel %vm223, %v414, %v608
        %v1464 = vsel %vm223, %v416, %v610
        %v1465 = vsel %vm223, %v417, %v612
        %v1466 = vsel %vm223, %v419, %v614
        %v1467 = vsel %vm223, %v420, %v616
        %v1468 = vsel %vm223, %v422, %v618
        %v1469 = vsel %vm223, %v423, %v620
        %v1470 = vsel %vm223, %v425, %v622
        %v1471 = vsel %vm223, %v426, %v624
        %v1472 = vsel %vm223, %v428, %v626
        %v1473 = vsel %vm223, %v429, %v628
        %v1474 = vsel %vm223, %v431, %v630
        %v1475 = vsel %vm223, %v432, %v632
        %vm1476 = vcmask 64512
        %v1477 = vsel %vm1476, %v1444, %v747
        %v1478 = vsel %vm1476, %v1445, %v749
        %v1479 = vsel %vm1476, %v1446, %v751
        %v1480 = vsel %vm1476, %v1447, %v753
        %v1481 = vsel %vm1476, %v1448, %v755
        %v1482 = vsel %vm1476, %v1449, %v757
        %v1483 = vsel %vm1476, %v1450, %v759
        %v1484 = vsel %vm1476, %v1451, %v761
        %v1485 = vsel %vm1476, %v1452, %v763
        %v1486 = vsel %vm1476, %v1453, %v765
        %v1487 = vsel %vm1476, %v1454, %v767
        %v1488 = vsel %vm1476, %v1455, %v769
        %v1489 = vsel %vm1476, %v1456, %v771
        %v1490 = vsel %vm1476, %v1457, %v773
        %v1491 = vsel %vm1476, %v1458, %v775
        %v1492 = vsel %vm1476, %v1459, %v777
        %v1493 = vsel %vm1476, %v1460, %v779
        %v1494 = vsel %vm1476, %v1461, %v781
        %v1495 = vsel %vm1476, %v1462, %v783
        %v1496 = vsel %vm1476, %v1463, %v785
        %v1497 = vsel %vm1476, %v1464, %v787
        %v1498 = vsel %vm1476, %v1465, %v789
        %v1499 = vsel %vm1476, %v1466, %v791
        %v1500 = vsel %vm1476, %v1467, %v793
        %v1501 = vsel %vm1476, %v1468, %v795
        %v1502 = vsel %vm1476, %v1469, %v797
        %v1503 = vsel %vm1476, %v1470, %v799
        %v1504 = vsel %vm1476, %v1471, %v801
        %v1505 = vsel %vm1476, %v1472, %v803
        %v1506 = vsel %vm1476, %v1473, %v805
        %v1507 = vsel %vm1476, %v1474, %v807
        %v1508 = vsel %vm1476, %v1475, %v809
        %vm1509 = vcmask 97280
        %v1510 = vsel %vm1509, %v1477, %v845
        %v1511 = vsel %vm1509, %v1478, %v847
        %v1512 = vsel %vm1509, %v1479, %v849
        %v1513 = vsel %vm1509, %v1480, %v851
        %v1514 = vsel %vm1509, %v1481, %v853
        %v1515 = vsel %vm1509, %v1482, %v855
        %v1516 = vsel %vm1509, %v1483, %v857
        %v1517 = vsel %vm1509, %v1484, %v859
        %v1518 = vsel %vm1509, %v1485, %v861
        %v1519 = vsel %vm1509, %v1486, %v863
        %v1520 = vsel %vm1509, %v1487, %v865
        %v1521 = vsel %vm1509, %v1488, %v867
        %v1522 = vsel %vm1509, %v1489, %v869
        %v1523 = vsel %vm1509, %v1490, %v871
        %v1524 = vsel %vm1509, %v1491, %v873
        %v1525 = vsel %vm1509, %v1492, %v875
        %v1526 = vsel %vm1509, %v1493, %v877
        %v1527 = vsel %vm1509, %v1494, %v879
        %v1528 = vsel %vm1509, %v1495, %v881
        %v1529 = vsel %vm1509, %v1496, %v883
        %v1530 = vsel %vm1509, %v1497, %v885
        %v1531 = vsel %vm1509, %v1498, %v887
        %v1532 = vsel %vm1509, %v1499, %v889
        %v1533 = vsel %vm1509, %v1500, %v891
        %v1534 = vsel %vm1509, %v1501, %v893
        %v1535 = vsel %vm1509, %v1502, %v895
        %v1536 = vsel %vm1509, %v1503, %v897
        %v1537 = vsel %vm1509, %v1504, %v899
        %v1538 = vsel %vm1509, %v1505, %v901
        %v1539 = vsel %vm1509, %v1506, %v903
        %v1540 = vsel %vm1509, %v1507, %v905
        %v1541 = vsel %vm1509, %v1508, %v907
        %vm1542 = vcmask 130048
        %v1543 = vsel %vm1542, %v1510, %v947
        %v1544 = vsel %vm1542, %v1511, %v949
        %v1545 = vsel %vm1542, %v1512, %v951
        %v1546 = vsel %vm1542, %v1513, %v953
        %v1547 = vsel %vm1542, %v1514, %v955
        %v1548 = vsel %vm1542, %v1515, %v957
        %v1549 = vsel %vm1542, %v1516, %v959
        %v1550 = vsel %vm1542, %v1517, %v961
        %v1551 = vsel %vm1542, %v1518, %v963
        %v1552 = vsel %vm1542, %v1519, %v965
        %v1553 = vsel %vm1542, %v1520, %v967
        %v1554 = vsel %vm1542, %v1521, %v969
        %v1555 = vsel %vm1542, %v1522, %v971
        %v1556 = vsel %vm1542, %v1523, %v973
        %v1557 = vsel %vm1542, %v1524, %v975
        %v1558 = vsel %vm1542, %v1525, %v977
        %v1559 = vsel %vm1542, %v1526, %v979
        %v1560 = vsel %vm1542, %v1527, %v981
        %v1561 = vsel %vm1542, %v1528, %v983
        %v1562 = vsel %vm1542, %v1529, %v985
        %v1563 = vsel %vm1542, %v1530, %v987
        %v1564 = vsel %vm1542, %v1531, %v989
        %v1565 = vsel %vm1542, %v1532, %v991
        %v1566 = vsel %vm1542, %v1533, %v993
        %v1567 = vsel %vm1542, %v1534, %v995
        %v1568 = vsel %vm1542, %v1535, %v997
        %v1569 = vsel %vm1542, %v1536, %v999
        %v1570 = vsel %vm1542, %v1537, %v1001
        %v1571 = vsel %vm1542, %v1538, %v1003
        %v1572 = vsel %vm1542, %v1539, %v1005
        %v1573 = vsel %vm1542, %v1540, %v1007
        %v1574 = vsel %vm1542, %v1541, %v1009
        %vm1575 = vcmask 162816
        %v1576 = vsel %vm1575, %v1543, %v1048
        %v1577 = vsel %vm1575, %v1544, %v1050
        %v1578 = vsel %vm1575, %v1545, %v1052
        %v1579 = vsel %vm1575, %v1546, %v1054
        %v1580 = vsel %vm1575, %v1547, %v1056
        %v1581 = vsel %vm1575, %v1548, %v1058
        %v1582 = vsel %vm1575, %v1549, %v1060
        %v1583 = vsel %vm1575, %v1550, %v1062
        %v1584 = vsel %vm1575, %v1551, %v1064
        %v1585 = vsel %vm1575, %v1552, %v1066
        %v1586 = vsel %vm1575, %v1553, %v1068
        %v1587 = vsel %vm1575, %v1554, %v1070
        %v1588 = vsel %vm1575, %v1555, %v1072
        %v1589 = vsel %vm1575, %v1556, %v1074
        %v1590 = vsel %vm1575, %v1557, %v1076
        %v1591 = vsel %vm1575, %v1558, %v1078
        %v1592 = vsel %vm1575, %v1559, %v1080
        %v1593 = vsel %vm1575, %v1560, %v1082
        %v1594 = vsel %vm1575, %v1561, %v1084
        %v1595 = vsel %vm1575, %v1562, %v1086
        %v1596 = vsel %vm1575, %v1563, %v1088
        %v1597 = vsel %vm1575, %v1564, %v1090
        %v1598 = vsel %vm1575, %v1565, %v1092
        %v1599 = vsel %vm1575, %v1566, %v1094
        %v1600 = vsel %vm1575, %v1567, %v1096
        %v1601 = vsel %vm1575, %v1568, %v1098
        %v1602 = vsel %vm1575, %v1569, %v1100
        %v1603 = vsel %vm1575, %v1570, %v1102
        %v1604 = vsel %vm1575, %v1571, %v1104
        %v1605 = vsel %vm1575, %v1572, %v1106
        %v1606 = vsel %vm1575, %v1573, %v1108
        %v1607 = vsel %vm1575, %v1574, %v1110
        %vm1608 = vcmask 195584
        %v1609 = vsel %vm1608, %v1576, %v1146
        %v1610 = vsel %vm1608, %v1577, %v1148
        %v1611 = vsel %vm1608, %v1578, %v1150
        %v1612 = vsel %vm1608, %v1579, %v1152
        %v1613 = vsel %vm1608, %v1580, %v1154
        %v1614 = vsel %vm1608, %v1581, %v1156
        %v1615 = vsel %vm1608, %v1582, %v1158
        %v1616 = vsel %vm1608, %v1583, %v1160
        %v1617 = vsel %vm1608, %v1584, %v1162
        %v1618 = vsel %vm1608, %v1585, %v1164
        %v1619 = vsel %vm1608, %v1586, %v1166
        %v1620 = vsel %vm1608, %v1587, %v1168
        %v1621 = vsel %vm1608, %v1588, %v1170
        %v1622 = vsel %vm1608, %v1589, %v1172
        %v1623 = vsel %vm1608, %v1590, %v1174
        %v1624 = vsel %vm1608, %v1591, %v1176
        %v1625 = vsel %vm1608, %v1592, %v1178
        %v1626 = vsel %vm1608, %v1593, %v1180
        %v1627 = vsel %vm1608, %v1594, %v1182
        %v1628 = vsel %vm1608, %v1595, %v1184
        %v1629 = vsel %vm1608, %v1596, %v1186
        %v1630 = vsel %vm1608, %v1597, %v1188
        %v1631 = vsel %vm1608, %v1598, %v1190
        %v1632 = vsel %vm1608, %v1599, %v1192
        %v1633 = vsel %vm1608, %v1600, %v1194
        %v1634 = vsel %vm1608, %v1601, %v1196
        %v1635 = vsel %vm1608, %v1602, %v1198
        %v1636 = vsel %vm1608, %v1603, %v1200
        %v1637 = vsel %vm1608, %v1604, %v1202
        %v1638 = vsel %vm1608, %v1605, %v1204
        %v1639 = vsel %vm1608, %v1606, %v1206
        %v1640 = vsel %vm1608, %v1607, %v1208
        %vm1641 = vcmask 228352
        %v1642 = vsel %vm1641, %v1609, %v1248
        %v1643 = vsel %vm1641, %v1610, %v1250
        %v1644 = vsel %vm1641, %v1611, %v1252
        %v1645 = vsel %vm1641, %v1612, %v1254
        %v1646 = vsel %vm1641, %v1613, %v1256
        %v1647 = vsel %vm1641, %v1614, %v1258
        %v1648 = vsel %vm1641, %v1615, %v1260
        %v1649 = vsel %vm1641, %v1616, %v1262
        %v1650 = vsel %vm1641, %v1617, %v1264
        %v1651 = vsel %vm1641, %v1618, %v1266
        %v1652 = vsel %vm1641, %v1619, %v1268
        %v1653 = vsel %vm1641, %v1620, %v1270
        %v1654 = vsel %vm1641, %v1621, %v1272
        %v1655 = vsel %vm1641, %v1622, %v1274
        %v1656 = vsel %vm1641, %v1623, %v1276
        %v1657 = vsel %vm1641, %v1624, %v1278
        %v1658 = vsel %vm1641, %v1625, %v1280
        %v1659 = vsel %vm1641, %v1626, %v1282
        %v1660 = vsel %vm1641, %v1627, %v1284
        %v1661 = vsel %vm1641, %v1628, %v1286
        %v1662 = vsel %vm1641, %v1629, %v1288
        %v1663 = vsel %vm1641, %v1630, %v1290
        %v1664 = vsel %vm1641, %v1631, %v1292
        %v1665 = vsel %vm1641, %v1632, %v1294
        %v1666 = vsel %vm1641, %v1633, %v1296
        %v1667 = vsel %vm1641, %v1634, %v1298
        %v1668 = vsel %vm1641, %v1635, %v1300
        %v1669 = vsel %vm1641, %v1636, %v1302
        %v1670 = vsel %vm1641, %v1637, %v1304
        %v1671 = vsel %vm1641, %v1638, %v1306
        %v1672 = vsel %vm1641, %v1639, %v1308
        %v1673 = vsel %vm1641, %v1640, %v1310
        %vm1674 = vcmask 261120
        %v1675 = vsel %vm1674, %v1642, %v1349
        %v1676 = vsel %vm1674, %v1643, %v1351
        %v1677 = vsel %vm1674, %v1644, %v1353
        %v1678 = vsel %vm1674, %v1645, %v1355
        %v1679 = vsel %vm1674, %v1646, %v1357
        %v1680 = vsel %vm1674, %v1647, %v1359
        %v1681 = vsel %vm1674, %v1648, %v1361
        %v1682 = vsel %vm1674, %v1649, %v1363
        %v1683 = vsel %vm1674, %v1650, %v1365
        %v1684 = vsel %vm1674, %v1651, %v1367
        %v1685 = vsel %vm1674, %v1652, %v1369
        %v1686 = vsel %vm1674, %v1653, %v1371
        %v1687 = vsel %vm1674, %v1654, %v1373
        %v1688 = vsel %vm1674, %v1655, %v1375
        %v1689 = vsel %vm1674, %v1656, %v1377
        %v1690 = vsel %vm1674, %v1657, %v1379
        %v1691 = vsel %vm1674, %v1658, %v1381
        %v1692 = vsel %vm1674, %v1659, %v1383
        %v1693 = vsel %vm1674, %v1660, %v1385
        %v1694 = vsel %vm1674, %v1661, %v1387
        %v1695 = vsel %vm1674, %v1662, %v1389
        %v1696 = vsel %vm1674, %v1663, %v1391
        %v1697 = vsel %vm1674, %v1664, %v1393
        %v1698 = vsel %vm1674, %v1665, %v1395
        %v1699 = vsel %vm1674, %v1666, %v1397
        %v1700 = vsel %vm1674, %v1667, %v1399
        %v1701 = vsel %vm1674, %v1668, %v1401
        %v1702 = vsel %vm1674, %v1669, %v1403
        %v1703 = vsel %vm1674, %v1670, %v1405
        %v1704 = vsel %vm1674, %v1671, %v1407
        %v1705 = vsel %vm1674, %v1672, %v1409
        %v1706 = vsel %vm1674, %v1673, %v1411
        %v1708 = vlaneseq
        %v1709 = vshrl.u32 %v1708, 7
        %v1710 = vsub.s32 0, %v1709
        %v1711 = vrot.slane %v385, %v1710
        %vm1713 = vcmask 293888
        %v1715 = vsel %vm1713, %v1675, 0
        %v1718 = vsel %vm1713, %v1676, 0
        %v1721 = vsel %vm1713, %v1677, 0
        %v1724 = vsel %vm1713, %v1678, 0
        %v1727 = vsel %vm1713, %v1679, 0
        %v1730 = vsel %vm1713, %v1680, 0
        %v1733 = vsel %vm1713, %v1681, 0
        %v1736 = vsel %vm1713, %v1682, 0
        %v1739 = vsel %vm1713, %v1683, 0
        %v1742 = vsel %vm1713, %v1684, 0
        %v1745 = vsel %vm1713, %v1685, 0
        %v1748 = vsel %vm1713, %v1686, 0
        %v1751 = vsel %vm1713, %v1687, 0
        %v1754 = vsel %vm1713, %v1688, 0
        %v1757 = vsel %vm1713, %v1689, 0
        %v1760 = vsel %vm1713, %v1690, 0
        %v1763 = vsel %vm1713, %v1691, 0
        %v1766 = vsel %vm1713, %v1692, 0
        %v1769 = vsel %vm1713, %v1693, 0
        %v1772 = vsel %vm1713, %v1694, 0
        %v1775 = vsel %vm1713, %v1695, 0
        %v1778 = vsel %vm1713, %v1696, 0
        %v1781 = vsel %vm1713, %v1697, 0
        %v1784 = vsel %vm1713, %v1698, 0
        %v1787 = vsel %vm1713, %v1699, 0
        %v1790 = vsel %vm1713, %v1700, 0
        %v1793 = vsel %vm1713, %v1701, 0
        %v1796 = vsel %vm1713, %v1702, 0
        %v1799 = vsel %vm1713, %v1703, 0
        %v1802 = vsel %vm1713, %v1704, 0
        %v1805 = vsel %vm1713, %v1705, 0
        %v1808 = vsel %vm1713, %v1706, 0
        %vm1810 = vcmask 1043456
        %v1812 = vsel %vm1810, %v384, 0
        %1814 = vmatprep.subr.mxu0 0.0
        %1815 = vmatpush1.msra.mxu0 0.0
        %1816 = vmatprep.subr.mxu0 0.0
        %1817 = vmatpush1.msra.mxu0 0.0
        %1818 = vmatprep.subr.mxu0 0.0
        %1819 = vmatpush1.msra.mxu0 0.0
        %1820 = vmatprep.subr.mxu0 0.0
        %1821 = vmatpush1.msra.mxu0 0.0
        %1822 = vmatprep.subr.mxu0 0.0
        %1823 = vmatpush1.msra.mxu0 0.0
        %1824 = vmatprep.subr.mxu0 0.0
        %1825 = vmatpush1.msra.mxu0 0.0
        %1826 = vmatprep.subr.mxu0 0.0
        %1827 = vmatpush1.msra.mxu0 0.0
        %1828 = vmatprep.subr.mxu0 0.0
        %1829 = vmatpush1.msra.mxu0 0.0
        %1830 = vmatprep.subr.mxu0 0.0
        %1831 = vmatpush1.msra.mxu0 0.0
        %1832 = vmatprep.subr.mxu0 0.0
        %1833 = vmatpush1.msra.mxu0 0.0
        %1834 = vmatprep.subr.mxu0 0.0
        %1835 = vmatpush1.msra.mxu0 0.0
        %1836 = vmatprep.subr.mxu0 0.0
        %1837 = vmatpush1.msra.mxu0 %v1812
        %1838 = vmatprep.subr.mxu0 0.0
        %1839 = vmatpush1.msra.mxu0 %v383
        %1840 = vmatprep.subr.mxu0 0.0
        %1841 = vmatpush1.msra.mxu0 %v382
        %1842 = vmatprep.subr.mxu0 0.0
        %1843 = vmatpush1.msra.mxu0 %v381
        %1844 = vmatprep.subr.mxu0 0.0
        %1845 = vmatpush1.msra.mxu0 %v380
        %1846 = vmatprep.subr.mxu0 0.0
        %1847 = vmatpush2.msra.mxu0 0.0
        %1848 = vmatprep.subr.mxu0 0.0
        %1849 = vmatpush2.msra.mxu0 0.0
        %1850 = vmatprep.subr.mxu0 0.0
        %1851 = vmatpush2.msra.mxu0 0.0
        %1852 = vmatprep.subr.mxu0 0.0
        %1853 = vmatpush2.msra.mxu0 0.0
        %1854 = vmatprep.subr.mxu0 0.0
        %1855 = vmatpush2.msra.mxu0 0.0
        %1856 = vmatprep.subr.mxu0 0.0
        %1857 = vmatpush2.msra.mxu0 0.0
        %1858 = vmatprep.subr.mxu0 0.0
        %1859 = vmatpush2.msra.mxu0 0.0
        %1860 = vmatprep.subr.mxu0 0.0
        %1861 = vmatpush2.msra.mxu0 0.0
        %1862 = vmatprep.subr.mxu0 0.0
        %1863 = vmatpush2.msra.mxu0 0.0
        %1864 = vmatprep.subr.mxu0 0.0
        %1865 = vmatpush2.msra.mxu0 0.0
        %1866 = vmatprep.subr.mxu0 0.0
        %1867 = vmatpush2.msra.mxu0 0.0
        %1868 = vmatprep.subr.mxu0 0.0
        %1869 = vmatpush2.msra.mxu0 0.0
        %1870 = vmatprep.subr.mxu0 0.0
        %1871 = vmatpush2.msra.mxu0 0.0
        %1872 = vmatprep.subr.mxu0 0.0
        %1873 = vmatpush2.msra.mxu0 0.0
        %1874 = vmatprep.subr.mxu0 0.0
        %1875 = vmatpush2.msra.mxu0 0.0
        %1876 = vmatprep.subr.mxu0 0.0
        %1877 = vmatpush2.msra.mxu0 0.0
        %1878 = vmatprep.mubr.f32.mxu0 0.0
        %1879 = vmatmul.mubr.f32.gmra.mxu0 %v1715
        %v1880 = vpop.f32.mrf.mxu0
        %v1881 = vadd.f32 %v1711, %v1880
        %v1882 = vpop.f32.mrf.mxu0
        %1883 = vmatprep.mubr.f32.mxu0 0.0
        %1884 = vmatmul.mubr.f32.gmra.mxu0 %v1718
        %v1885 = vpop.f32.mrf.mxu0
        %v1886 = vadd.f32 %v1711, %v1885
        %v1887 = vpop.f32.mrf.mxu0
        %1888 = vmatprep.mubr.f32.mxu0 0.0
        %1889 = vmatmul.mubr.f32.gmra.mxu0 %v1721
        %v1890 = vpop.f32.mrf.mxu0
        %v1891 = vadd.f32 %v1711, %v1890
        %v1892 = vpop.f32.mrf.mxu0
        %1893 = vmatprep.mubr.f32.mxu0 0.0
        %1894 = vmatmul.mubr.f32.gmra.mxu0 %v1724
        %v1895 = vpop.f32.mrf.mxu0
        %v1896 = vadd.f32 %v1711, %v1895
        %v1897 = vpop.f32.mrf.mxu0
        %1898 = vmatprep.mubr.f32.mxu0 0.0
        %1899 = vmatmul.mubr.f32.gmra.mxu0 %v1727
        %v1900 = vpop.f32.mrf.mxu0
        %v1901 = vadd.f32 %v1711, %v1900
        %v1902 = vpop.f32.mrf.mxu0
        %1903 = vmatprep.mubr.f32.mxu0 0.0
        %1904 = vmatmul.mubr.f32.gmra.mxu0 %v1730
        %v1905 = vpop.f32.mrf.mxu0
        %v1906 = vadd.f32 %v1711, %v1905
        %v1907 = vpop.f32.mrf.mxu0
        %1908 = vmatprep.mubr.f32.mxu0 0.0
        %1909 = vmatmul.mubr.f32.gmra.mxu0 %v1733
        %v1910 = vpop.f32.mrf.mxu0
        %v1911 = vadd.f32 %v1711, %v1910
        %v1912 = vpop.f32.mrf.mxu0
        %1913 = vmatprep.mubr.f32.mxu0 0.0
        %1914 = vmatmul.mubr.f32.gmra.mxu0 %v1736
        %v1915 = vpop.f32.mrf.mxu0
        %v1916 = vadd.f32 %v1711, %v1915
        %v1917 = vpop.f32.mrf.mxu0
        %1918 = vmatprep.mubr.f32.mxu0 0.0
        %1919 = vmatmul.mubr.f32.gmra.mxu0 %v1739
        %v1920 = vpop.f32.mrf.mxu0
        %v1921 = vadd.f32 %v1711, %v1920
        %v1922 = vpop.f32.mrf.mxu0
        %1923 = vmatprep.mubr.f32.mxu0 0.0
        %1924 = vmatmul.mubr.f32.gmra.mxu0 %v1742
        %v1925 = vpop.f32.mrf.mxu0
        %v1926 = vadd.f32 %v1711, %v1925
        %v1927 = vpop.f32.mrf.mxu0
        %1928 = vmatprep.mubr.f32.mxu0 0.0
        %1929 = vmatmul.mubr.f32.gmra.mxu0 %v1745
        %v1930 = vpop.f32.mrf.mxu0
        %v1931 = vadd.f32 %v1711, %v1930
        %v1932 = vpop.f32.mrf.mxu0
        %1933 = vmatprep.mubr.f32.mxu0 0.0
        %1934 = vmatmul.mubr.f32.gmra.mxu0 %v1748
        %v1935 = vpop.f32.mrf.mxu0
        %v1936 = vadd.f32 %v1711, %v1935
        %v1937 = vpop.f32.mrf.mxu0
        %1938 = vmatprep.mubr.f32.mxu0 0.0
        %1939 = vmatmul.mubr.f32.gmra.mxu0 %v1751
        %v1940 = vpop.f32.mrf.mxu0
        %v1941 = vadd.f32 %v1711, %v1940
        %v1942 = vpop.f32.mrf.mxu0
        %1943 = vmatprep.mubr.f32.mxu0 0.0
        %1944 = vmatmul.mubr.f32.gmra.mxu0 %v1754
        %v1945 = vpop.f32.mrf.mxu0
        %v1946 = vadd.f32 %v1711, %v1945
        %v1947 = vpop.f32.mrf.mxu0
        %1948 = vmatprep.mubr.f32.mxu0 0.0
        %1949 = vmatmul.mubr.f32.gmra.mxu0 %v1757
        %v1950 = vpop.f32.mrf.mxu0
        %v1951 = vadd.f32 %v1711, %v1950
        %v1952 = vpop.f32.mrf.mxu0
        %1953 = vmatprep.mubr.f32.mxu0 0.0
        %1954 = vmatmul.mubr.f32.gmra.mxu0 %v1760
        %v1955 = vpop.f32.mrf.mxu0
        %v1956 = vadd.f32 %v1711, %v1955
        %v1957 = vpop.f32.mrf.mxu0
        %1958 = vmatprep.mubr.f32.mxu0 0.0
        %1959 = vmatmul.mubr.f32.gmra.mxu0 %v1763
        %v1960 = vpop.f32.mrf.mxu0
        %v1961 = vadd.f32 %v1711, %v1960
        %v1962 = vpop.f32.mrf.mxu0
        %1963 = vmatprep.mubr.f32.mxu0 0.0
        %1964 = vmatmul.mubr.f32.gmra.mxu0 %v1766
        %v1965 = vpop.f32.mrf.mxu0
        %v1966 = vadd.f32 %v1711, %v1965
        %v1967 = vpop.f32.mrf.mxu0
        %1968 = vmatprep.mubr.f32.mxu0 0.0
        %1969 = vmatmul.mubr.f32.gmra.mxu0 %v1769
        %v1970 = vpop.f32.mrf.mxu0
        %v1971 = vadd.f32 %v1711, %v1970
        %v1972 = vpop.f32.mrf.mxu0
        %1973 = vmatprep.mubr.f32.mxu0 0.0
        %1974 = vmatmul.mubr.f32.gmra.mxu0 %v1772
        %v1975 = vpop.f32.mrf.mxu0
        %v1976 = vadd.f32 %v1711, %v1975
        %v1977 = vpop.f32.mrf.mxu0
        %1978 = vmatprep.mubr.f32.mxu0 0.0
        %1979 = vmatmul.mubr.f32.gmra.mxu0 %v1775
        %v1980 = vpop.f32.mrf.mxu0
        %v1981 = vadd.f32 %v1711, %v1980
        %v1982 = vpop.f32.mrf.mxu0
        %1983 = vmatprep.mubr.f32.mxu0 0.0
        %1984 = vmatmul.mubr.f32.gmra.mxu0 %v1778
        %v1985 = vpop.f32.mrf.mxu0
        %v1986 = vadd.f32 %v1711, %v1985
        %v1987 = vpop.f32.mrf.mxu0
        %1988 = vmatprep.mubr.f32.mxu0 0.0
        %1989 = vmatmul.mubr.f32.gmra.mxu0 %v1781
        %v1990 = vpop.f32.mrf.mxu0
        %v1991 = vadd.f32 %v1711, %v1990
        %v1992 = vpop.f32.mrf.mxu0
        %1993 = vmatprep.mubr.f32.mxu0 0.0
        %1994 = vmatmul.mubr.f32.gmra.mxu0 %v1784
        %v1995 = vpop.f32.mrf.mxu0
        %v1996 = vadd.f32 %v1711, %v1995
        %v1997 = vpop.f32.mrf.mxu0
        %1998 = vmatprep.mubr.f32.mxu0 0.0
        %1999 = vmatmul.mubr.f32.gmra.mxu0 %v1787
        %v2000 = vpop.f32.mrf.mxu0
        %v2001 = vadd.f32 %v1711, %v2000
        %v2002 = vpop.f32.mrf.mxu0
        %2003 = vmatprep.mubr.f32.mxu0 0.0
        %2004 = vmatmul.mubr.f32.gmra.mxu0 %v1790
        %v2005 = vpop.f32.mrf.mxu0
        %v2006 = vadd.f32 %v1711, %v2005
        %v2007 = vpop.f32.mrf.mxu0
        %2008 = vmatprep.mubr.f32.mxu0 0.0
        %2009 = vmatmul.mubr.f32.gmra.mxu0 %v1793
        %v2010 = vpop.f32.mrf.mxu0
        %v2011 = vadd.f32 %v1711, %v2010
        %v2012 = vpop.f32.mrf.mxu0
        %2013 = vmatprep.mubr.f32.mxu0 0.0
        %2014 = vmatmul.mubr.f32.gmra.mxu0 %v1796
        %v2015 = vpop.f32.mrf.mxu0
        %v2016 = vadd.f32 %v1711, %v2015
        %v2017 = vpop.f32.mrf.mxu0
        %2018 = vmatprep.mubr.f32.mxu0 0.0
        %2019 = vmatmul.mubr.f32.gmra.mxu0 %v1799
        %v2020 = vpop.f32.mrf.mxu0
        %v2021 = vadd.f32 %v1711, %v2020
        %v2022 = vpop.f32.mrf.mxu0
        %2023 = vmatprep.mubr.f32.mxu0 0.0
        %2024 = vmatmul.mubr.f32.gmra.mxu0 %v1802
        %v2025 = vpop.f32.mrf.mxu0
        %v2026 = vadd.f32 %v1711, %v2025
        %v2027 = vpop.f32.mrf.mxu0
        %2028 = vmatprep.mubr.f32.mxu0 0.0
        %2029 = vmatmul.mubr.f32.gmra.mxu0 %v1805
        %v2030 = vpop.f32.mrf.mxu0
        %v2031 = vadd.f32 %v1711, %v2030
        %v2032 = vpop.f32.mrf.mxu0
        %2033 = vmatprep.mubr.f32.mxu0 0.0
        %2034 = vmatmul.mubr.f32.gmra.mxu0 %v1808
        %v2035 = vpop.f32.mrf.mxu0
        %v2036 = vadd.f32 %v1711, %v2035
        %v2037 = vpop.f32.mrf.mxu0
        %2038 = vdwg.mxu0
        %v2039 = vmax.f32 %v1881, 0.0
        %v2040 = vmax.f32 %v1886, 0.0
        %v2041 = vmax.f32 %v1891, 0.0
        %v2042 = vmax.f32 %v1896, 0.0
        %v2043 = vmax.f32 %v1901, 0.0
        %v2044 = vmax.f32 %v1906, 0.0
        %v2045 = vmax.f32 %v1911, 0.0
        %v2046 = vmax.f32 %v1916, 0.0
        %v2047 = vmax.f32 %v1921, 0.0
        %v2048 = vmax.f32 %v1926, 0.0
        %v2049 = vmax.f32 %v1931, 0.0
        %v2050 = vmax.f32 %v1936, 0.0
        %v2051 = vmax.f32 %v1941, 0.0
        %v2052 = vmax.f32 %v1946, 0.0
        %v2053 = vmax.f32 %v1951, 0.0
        %v2054 = vmax.f32 %v1956, 0.0
        %v2055 = vmax.f32 %v1961, 0.0
        %v2056 = vmax.f32 %v1966, 0.0
        %v2057 = vmax.f32 %v1971, 0.0
        %v2058 = vmax.f32 %v1976, 0.0
        %v2059 = vmax.f32 %v1981, 0.0
        %v2060 = vmax.f32 %v1986, 0.0
        %v2061 = vmax.f32 %v1991, 0.0
        %v2062 = vmax.f32 %v1996, 0.0
        %v2063 = vmax.f32 %v2001, 0.0
        %v2064 = vmax.f32 %v2006, 0.0
        %v2065 = vmax.f32 %v2011, 0.0
        %v2066 = vmax.f32 %v2016, 0.0
        %v2067 = vmax.f32 %v2021, 0.0
        %v2068 = vmax.f32 %v2026, 0.0
        %v2069 = vmax.f32 %v2031, 0.0
        %v2070 = vmax.f32 %v2036, 0.0
        %2071 = vst.msk [vmem:[#allocation3] sm:$0xff] %vm1476, 0.0
        %2072 = vst.msk [vmem:[#allocation3 + $0x8] sm:$0xff] %vm1476, 0.0
        %vm2073 = vcmask 58368
        %2074 = vst.msk [vmem:[#allocation3 + $0x10] sm:$0x3] %vm2073, 0.0
        %2075 = vst.msk [vmem:[#allocation3 + $0x18] sm:$0xff] %vm1476, 0.0
        %2076 = vst.msk [vmem:[#allocation3 + $0x20] sm:$0xff] %vm1476, 0.0
        %2077 = vst.msk [vmem:[#allocation3 + $0x28] sm:$0x3] %vm2073, 0.0
        %2078 = vst.msk [vmem:[#allocation3 + $0x30] sm:$0xff] %vm1476, 0.0
        %2079 = vst.msk [vmem:[#allocation3 + $0x38] sm:$0xff] %vm1476, 0.0
        %2080 = vst.msk [vmem:[#allocation3 + $0x40] sm:$0x3] %vm2073, 0.0
        %2081 = vst.msk [vmem:[#allocation3 + $0x48] sm:$0xff] %vm1476, 0.0
        %2082 = vst.msk [vmem:[#allocation3 + $0x50] sm:$0xff] %vm1476, 0.0
        %2083 = vst.msk [vmem:[#allocation3 + $0x58] sm:$0x3] %vm2073, 0.0
        %2084 = vst.msk [vmem:[#allocation3 + $0x60] sm:$0xff] %vm1476, 0.0
        %2085 = vst.msk [vmem:[#allocation3 + $0x68] sm:$0xff] %vm1476, 0.0
        %2086 = vst.msk [vmem:[#allocation3 + $0x70] sm:$0x3] %vm2073, 0.0
        %2087 = vst.msk [vmem:[#allocation3 + $0x78] sm:$0xff] %vm1476, 0.0
        %2088 = vst.msk [vmem:[#allocation3 + $0x80] sm:$0xff] %vm1476, 0.0
        %2089 = vst.msk [vmem:[#allocation3 + $0x88] sm:$0x3] %vm2073, 0.0
        %2090 = vst.msk [vmem:[#allocation3 + $0x90] sm:$0xff] %vm1476, 0.0
        %2091 = vst.msk [vmem:[#allocation3 + $0x98] sm:$0xff] %vm1476, 0.0
        %2092 = vst.msk [vmem:[#allocation3 + $0xa0] sm:$0x3] %vm2073, 0.0
        %2093 = vst.msk [vmem:[#allocation3 + $0xa8] sm:$0xff] %vm1476, 0.0
        %2094 = vst.msk [vmem:[#allocation3 + $0xb0] sm:$0xff] %vm1476, 0.0
        %2095 = vst.msk [vmem:[#allocation3 + $0xb8] sm:$0x3] %vm2073, 0.0
        %2096 = vst.msk [vmem:[#allocation3 + $0xc0] sm:$0xff] %vm1476, 0.0
        %2097 = vst.msk [vmem:[#allocation3 + $0xc8] sm:$0xff] %vm1476, 0.0
        %2098 = vst.msk [vmem:[#allocation3 + $0xd0] sm:$0x3] %vm2073, 0.0
        %2099 = vst.msk [vmem:[#allocation3 + $0xd8] sm:$0xff] %vm1476, 0.0
        %2100 = vst.msk [vmem:[#allocation3 + $0xe0] sm:$0xff] %vm1476, 0.0
        %2101 = vst.msk [vmem:[#allocation3 + $0xe8] sm:$0x3] %vm2073, 0.0
        %2102 = vst.msk [vmem:[#allocation3 + $0xf0] sm:$0xff] %vm1476, 0.0
        %2103 = vst.msk [vmem:[#allocation3 + $0xf8] sm:$0xff] %vm1476, 0.0
        %2104 = vst.msk [vmem:[#allocation3 + $0x100] sm:$0x3] %vm2073, 0.0
        %2105 = vst.msk [vmem:[#allocation3 + $0x108] sm:$0xff] %vm1476, 0.0
        %2106 = vst.msk [vmem:[#allocation3 + $0x110] sm:$0xff] %vm1476, 0.0
        %2107 = vst.msk [vmem:[#allocation3 + $0x118] sm:$0x3] %vm2073, 0.0
        %2108 = vst.msk [vmem:[#allocation3 + $0x120] sm:$0xff] %vm1476, 0.0
        %2109 = vst.msk [vmem:[#allocation3 + $0x128] sm:$0xff] %vm1476, 0.0
        %2110 = vst.msk [vmem:[#allocation3 + $0x130] sm:$0x3] %vm2073, 0.0
        %2111 = vst.msk [vmem:[#allocation3 + $0x138] sm:$0xff] %vm1476, 0.0
        %2112 = vst.msk [vmem:[#allocation3 + $0x140] sm:$0xff] %vm1476, 0.0
        %2113 = vst.msk [vmem:[#allocation3 + $0x148] sm:$0x3] %vm2073, 0.0
        %2114 = vst.msk [vmem:[#allocation3 + $0x150] sm:$0xff] %vm1476, 0.0
        %2115 = vst.msk [vmem:[#allocation3 + $0x158] sm:$0xff] %vm1476, 0.0
        %2116 = vst.msk [vmem:[#allocation3 + $0x160] sm:$0x3] %vm2073, 0.0
        %2117 = vst.msk [vmem:[#allocation3 + $0x168] sm:$0xff] %vm1476, 0.0
        %2118 = vst.msk [vmem:[#allocation3 + $0x170] sm:$0xff] %vm1476, 0.0
        %2119 = vst.msk [vmem:[#allocation3 + $0x178] sm:$0x3] %vm2073, 0.0
        %2120 = vst.msk [vmem:[#allocation3 + $0x180] sm:$0xff] %vm1476, 0.0
        %2121 = vst.msk [vmem:[#allocation3 + $0x188] sm:$0xff] %vm1476, 0.0
        %2122 = vst.msk [vmem:[#allocation3 + $0x190] sm:$0x3] %vm2073, 0.0
        %2123 = vst.msk [vmem:[#allocation3 + $0x198] sm:$0xff] %vm1476, 0.0
        %2124 = vst.msk [vmem:[#allocation3 + $0x1a0] sm:$0xff] %vm1476, 0.0
        %2125 = vst.msk [vmem:[#allocation3 + $0x1a8] sm:$0x3] %vm2073, 0.0
        %s2126 = scalar_lea.vmem [#allocation3], 24
        %2127 = vst.msk [vmem:[%s2126 + $0x1] sm:$0xff] %vm1476, %v2039
        %2128 = vst.msk [vmem:[%s2126 + $0x9] sm:$0xff] %vm1476, %v2040
        %2129 = vst.msk [vmem:[%s2126 + $0x19] sm:$0xff] %vm1476, %v2041
        %2130 = vst.msk [vmem:[%s2126 + $0x21] sm:$0xff] %vm1476, %v2042
        %2131 = vst.msk [vmem:[%s2126 + $0x31] sm:$0xff] %vm1476, %v2043
        %2132 = vst.msk [vmem:[%s2126 + $0x39] sm:$0xff] %vm1476, %v2044
        %2133 = vst.msk [vmem:[%s2126 + $0x49] sm:$0xff] %vm1476, %v2045
        %2134 = vst.msk [vmem:[%s2126 + $0x51] sm:$0xff] %vm1476, %v2046
        %2135 = vst.msk [vmem:[%s2126 + $0x61] sm:$0xff] %vm1476, %v2047
        %2136 = vst.msk [vmem:[%s2126 + $0x69] sm:$0xff] %vm1476, %v2048
        %2137 = vst.msk [vmem:[%s2126 + $0x79] sm:$0xff] %vm1476, %v2049
        %2138 = vst.msk [vmem:[%s2126 + $0x81] sm:$0xff] %vm1476, %v2050
        %2139 = vst.msk [vmem:[%s2126 + $0x91] sm:$0xff] %vm1476, %v2051
        %2140 = vst.msk [vmem:[%s2126 + $0x99] sm:$0xff] %vm1476, %v2052
        %2141 = vst.msk [vmem:[%s2126 + $0xa9] sm:$0xff] %vm1476, %v2053
        %2142 = vst.msk [vmem:[%s2126 + $0xb1] sm:$0xff] %vm1476, %v2054
        %2143 = vst.msk [vmem:[%s2126 + $0xc1] sm:$0xff] %vm1476, %v2055
        %2144 = vst.msk [vmem:[%s2126 + $0xc9] sm:$0xff] %vm1476, %v2056
        %2145 = vst.msk [vmem:[%s2126 + $0xd9] sm:$0xff] %vm1476, %v2057
        %2146 = vst.msk [vmem:[%s2126 + $0xe1] sm:$0xff] %vm1476, %v2058
        %2147 = vst.msk [vmem:[%s2126 + $0xf1] sm:$0xff] %vm1476, %v2059
        %2148 = vst.msk [vmem:[%s2126 + $0xf9] sm:$0xff] %vm1476, %v2060
        %2149 = vst.msk [vmem:[%s2126 + $0x109] sm:$0xff] %vm1476, %v2061
        %2150 = vst.msk [vmem:[%s2126 + $0x111] sm:$0xff] %vm1476, %v2062
        %2151 = vst.msk [vmem:[%s2126 + $0x121] sm:$0xff] %vm1476, %v2063
        %2152 = vst.msk [vmem:[%s2126 + $0x129] sm:$0xff] %vm1476, %v2064
        %2153 = vst.msk [vmem:[%s2126 + $0x139] sm:$0xff] %vm1476, %v2065
        %2154 = vst.msk [vmem:[%s2126 + $0x141] sm:$0xff] %vm1476, %v2066
        %2155 = vst.msk [vmem:[%s2126 + $0x151] sm:$0xff] %vm1476, %v2067
        %2156 = vst.msk [vmem:[%s2126 + $0x159] sm:$0xff] %vm1476, %v2068
        %2157 = vst.msk [vmem:[%s2126 + $0x169] sm:$0xff] %vm1476, %v2069
        %2158 = vst.msk [vmem:[%s2126 + $0x171] sm:$0xff] %vm1476, %v2070
        %v2159 = vld [vmem:[%s3] sm:$0xff]
        %v2160 = vld [vmem:[%s3 + $0x8] sm:$0xff]
        %v2161 = vld [vmem:[%s3 + $0x10] sm:$0xff]
        %v2162 = vld [vmem:[%s3 + $0x18] sm:$0xff]
        %v2163 = vld [vmem:[%s3 + $0x20] sm:$0xff]
        %v2164 = vld [vmem:[%s3 + $0x28] sm:$0xff]
        %v2165 = vld [vmem:[%s3 + $0x30] sm:$0xff]
        %v2166 = vld [vmem:[%s3 + $0x38] sm:$0xff]
        %v2167 = vld [vmem:[%s3 + $0x40] sm:$0xff]
        %v2168 = vld [vmem:[%s4] sm:$0x1]
        %v2169 = vld [vmem:[#allocation3] sm:$0xff]
        %v2170 = vld [vmem:[#allocation3 + $0x8] sm:$0xff]
        %v2171 = vld [vmem:[#allocation3 + $0x10] sm:$0x3]
        %v2172 = vld [vmem:[#allocation3 + $0x18] sm:$0xff]
        %v2173 = vld [vmem:[#allocation3 + $0x20] sm:$0xff]
        %v2174 = vld [vmem:[#allocation3 + $0x28] sm:$0x3]
        %v2175 = vld [vmem:[#allocation3 + $0x30] sm:$0xff]
        %v2176 = vld [vmem:[#allocation3 + $0x38] sm:$0xff]
        %v2177 = vld [vmem:[#allocation3 + $0x40] sm:$0x3]
        %v2178 = vld [vmem:[#allocation3 + $0x48] sm:$0xff]
        %v2179 = vld [vmem:[#allocation3 + $0x50] sm:$0xff]
        %v2180 = vld [vmem:[#allocation3 + $0x58] sm:$0x3]
        %v2181 = vld [vmem:[#allocation3 + $0x60] sm:$0xff]
        %v2182 = vld [vmem:[#allocation3 + $0x68] sm:$0xff]
        %v2183 = vld [vmem:[#allocation3 + $0x70] sm:$0x3]
        %v2184 = vld [vmem:[#allocation3 + $0x78] sm:$0xff]
        %v2185 = vld [vmem:[#allocation3 + $0x80] sm:$0xff]
        %v2186 = vld [vmem:[#allocation3 + $0x88] sm:$0x3]
        %v2187 = vld [vmem:[#allocation3 + $0x90] sm:$0xff]
        %v2188 = vld [vmem:[#allocation3 + $0x98] sm:$0xff]
        %v2189 = vld [vmem:[#allocation3 + $0xa0] sm:$0x3]
        %v2190 = vld [vmem:[#allocation3 + $0xa8] sm:$0xff]
        %v2191 = vld [vmem:[#allocation3 + $0xb0] sm:$0xff]
        %v2192 = vld [vmem:[#allocation3 + $0xb8] sm:$0x3]
        %v2193 = vld [vmem:[#allocation3 + $0xc0] sm:$0xff]
        %v2194 = vld [vmem:[#allocation3 + $0xc8] sm:$0xff]
        %v2195 = vld [vmem:[#allocation3 + $0xd0] sm:$0x3]
        %v2196 = vld [vmem:[#allocation3 + $0xd8] sm:$0xff]
        %v2197 = vld [vmem:[#allocation3 + $0xe0] sm:$0xff]
        %v2198 = vld [vmem:[#allocation3 + $0xe8] sm:$0x3]
        %v2199 = vld [vmem:[#allocation3 + $0xf0] sm:$0xff]
        %v2200 = vld [vmem:[#allocation3 + $0xf8] sm:$0xff]
        %v2201 = vld [vmem:[#allocation3 + $0x100] sm:$0x3]
        %v2202 = vld [vmem:[#allocation3 + $0x108] sm:$0xff]
        %v2203 = vld [vmem:[#allocation3 + $0x110] sm:$0xff]
        %v2204 = vld [vmem:[#allocation3 + $0x118] sm:$0x3]
        %v2205 = vld [vmem:[#allocation3 + $0x120] sm:$0xff]
        %v2206 = vld [vmem:[#allocation3 + $0x128] sm:$0xff]
        %v2207 = vld [vmem:[#allocation3 + $0x130] sm:$0x3]
        %v2208 = vld [vmem:[#allocation3 + $0x138] sm:$0xff]
        %v2209 = vld [vmem:[#allocation3 + $0x140] sm:$0xff]
        %v2210 = vld [vmem:[#allocation3 + $0x148] sm:$0x3]
        %v2211 = vld [vmem:[#allocation3 + $0x150] sm:$0xff]
        %v2212 = vld [vmem:[#allocation3 + $0x158] sm:$0xff]
        %v2213 = vld [vmem:[#allocation3 + $0x160] sm:$0x3]
        %v2214 = vld [vmem:[#allocation3 + $0x168] sm:$0xff]
        %v2215 = vld [vmem:[#allocation3 + $0x170] sm:$0xff]
        %v2216 = vld [vmem:[#allocation3 + $0x178] sm:$0x3]
        %v2217 = vld [vmem:[#allocation3 + $0x180] sm:$0xff]
        %v2218 = vld [vmem:[#allocation3 + $0x188] sm:$0xff]
        %v2219 = vld [vmem:[#allocation3 + $0x190] sm:$0x3]
        %v2220 = vld [vmem:[#allocation3 + $0x198] sm:$0xff]
        %v2221 = vld [vmem:[#allocation3 + $0x1a0] sm:$0xff]
        %v2222 = vld [vmem:[#allocation3 + $0x1a8] sm:$0x3]
        %v2271 = vrot.slane %v2169, 1
        %v2272 = vrot.slane %v2170, 1
        %v2273 = vsel %vm488, %v2271, %v2272
        %v2274 = vrot.slane %v2171, 1
        %v2275 = vsel %vm488, %v2272, %v2274
        %v2276 = vrot.slane %v2172, 1
        %v2277 = vrot.slane %v2173, 1
        %v2278 = vsel %vm488, %v2276, %v2277
        %v2279 = vrot.slane %v2174, 1
        %v2280 = vsel %vm488, %v2277, %v2279
        %v2281 = vrot.slane %v2175, 1
        %v2282 = vrot.slane %v2176, 1
        %v2283 = vsel %vm488, %v2281, %v2282
        %v2284 = vrot.slane %v2177, 1
        %v2285 = vsel %vm488, %v2282, %v2284
        %v2286 = vrot.slane %v2178, 1
        %v2287 = vrot.slane %v2179, 1
        %v2288 = vsel %vm488, %v2286, %v2287
        %v2289 = vrot.slane %v2180, 1
        %v2290 = vsel %vm488, %v2287, %v2289
        %v2291 = vrot.slane %v2181, 1
        %v2292 = vrot.slane %v2182, 1
        %v2293 = vsel %vm488, %v2291, %v2292
        %v2294 = vrot.slane %v2183, 1
        %v2295 = vsel %vm488, %v2292, %v2294
        %v2296 = vrot.slane %v2184, 1
        %v2297 = vrot.slane %v2185, 1
        %v2298 = vsel %vm488, %v2296, %v2297
        %v2299 = vrot.slane %v2186, 1
        %v2300 = vsel %vm488, %v2297, %v2299
        %v2301 = vrot.slane %v2187, 1
        %v2302 = vrot.slane %v2188, 1
        %v2303 = vsel %vm488, %v2301, %v2302
        %v2304 = vrot.slane %v2189, 1
        %v2305 = vsel %vm488, %v2302, %v2304
        %v2306 = vrot.slane %v2190, 1
        %v2307 = vrot.slane %v2191, 1
        %v2308 = vsel %vm488, %v2306, %v2307
        %v2309 = vrot.slane %v2192, 1
        %v2310 = vsel %vm488, %v2307, %v2309
        %v2311 = vrot.slane %v2193, 1
        %v2312 = vrot.slane %v2194, 1
        %v2313 = vsel %vm488, %v2311, %v2312
        %v2314 = vrot.slane %v2195, 1
        %v2315 = vsel %vm488, %v2312, %v2314
        %v2316 = vrot.slane %v2196, 1
        %v2317 = vrot.slane %v2197, 1
        %v2318 = vsel %vm488, %v2316, %v2317
        %v2319 = vrot.slane %v2198, 1
        %v2320 = vsel %vm488, %v2317, %v2319
        %v2321 = vrot.slane %v2199, 1
        %v2322 = vrot.slane %v2200, 1
        %v2323 = vsel %vm488, %v2321, %v2322
        %v2324 = vrot.slane %v2201, 1
        %v2325 = vsel %vm488, %v2322, %v2324
        %v2326 = vrot.slane %v2202, 1
        %v2327 = vrot.slane %v2203, 1
        %v2328 = vsel %vm488, %v2326, %v2327
        %v2329 = vrot.slane %v2204, 1
        %v2330 = vsel %vm488, %v2327, %v2329
        %v2331 = vrot.slane %v2205, 1
        %v2332 = vrot.slane %v2206, 1
        %v2333 = vsel %vm488, %v2331, %v2332
        %v2334 = vrot.slane %v2207, 1
        %v2335 = vsel %vm488, %v2332, %v2334
        %v2336 = vrot.slane %v2208, 1
        %v2337 = vrot.slane %v2209, 1
        %v2338 = vsel %vm488, %v2336, %v2337
        %v2339 = vrot.slane %v2210, 1
        %v2340 = vsel %vm488, %v2337, %v2339
        %v2341 = vrot.slane %v2211, 1
        %v2342 = vrot.slane %v2212, 1
        %v2343 = vsel %vm488, %v2341, %v2342
        %v2344 = vrot.slane %v2213, 1
        %v2345 = vsel %vm488, %v2342, %v2344
        %v2346 = vrot.slane %v2214, 1
        %v2347 = vrot.slane %v2215, 1
        %v2348 = vsel %vm488, %v2346, %v2347
        %v2349 = vrot.slane %v2216, 1
        %v2350 = vsel %vm488, %v2347, %v2349
        %2351 = vrot.lane.b32.xlu0 %v2273, 8
        %v2352 = vpop.permute.xlu0 %2351
        %2353 = vrot.lane.b32.xlu0 %v2275, 8
        %v2354 = vpop.permute.xlu0 %2353
        %2355 = vrot.lane.b32.xlu0 %v2278, 8
        %v2356 = vpop.permute.xlu0 %2355
        %2357 = vrot.lane.b32.xlu0 %v2280, 8
        %v2358 = vpop.permute.xlu0 %2357
        %2359 = vrot.lane.b32.xlu0 %v2283, 8
        %v2360 = vpop.permute.xlu0 %2359
        %2361 = vrot.lane.b32.xlu0 %v2285, 8
        %v2362 = vpop.permute.xlu0 %2361
        %2363 = vrot.lane.b32.xlu0 %v2288, 8
        %v2364 = vpop.permute.xlu0 %2363
        %2365 = vrot.lane.b32.xlu0 %v2290, 8
        %v2366 = vpop.permute.xlu0 %2365
        %2367 = vrot.lane.b32.xlu0 %v2293, 8
        %v2368 = vpop.permute.xlu0 %2367
        %2369 = vrot.lane.b32.xlu0 %v2295, 8
        %v2370 = vpop.permute.xlu0 %2369
        %2371 = vrot.lane.b32.xlu0 %v2298, 8
        %v2372 = vpop.permute.xlu0 %2371
        %2373 = vrot.lane.b32.xlu0 %v2300, 8
        %v2374 = vpop.permute.xlu0 %2373
        %2375 = vrot.lane.b32.xlu0 %v2303, 8
        %v2376 = vpop.permute.xlu0 %2375
        %2377 = vrot.lane.b32.xlu0 %v2305, 8
        %v2378 = vpop.permute.xlu0 %2377
        %2379 = vrot.lane.b32.xlu0 %v2308, 8
        %v2380 = vpop.permute.xlu0 %2379
        %2381 = vrot.lane.b32.xlu0 %v2310, 8
        %v2382 = vpop.permute.xlu0 %2381
        %2383 = vrot.lane.b32.xlu0 %v2313, 8
        %v2384 = vpop.permute.xlu0 %2383
        %2385 = vrot.lane.b32.xlu0 %v2315, 8
        %v2386 = vpop.permute.xlu0 %2385
        %2387 = vrot.lane.b32.xlu0 %v2318, 8
        %v2388 = vpop.permute.xlu0 %2387
        %2389 = vrot.lane.b32.xlu0 %v2320, 8
        %v2390 = vpop.permute.xlu0 %2389
        %2391 = vrot.lane.b32.xlu0 %v2323, 8
        %v2392 = vpop.permute.xlu0 %2391
        %2393 = vrot.lane.b32.xlu0 %v2325, 8
        %v2394 = vpop.permute.xlu0 %2393
        %2395 = vrot.lane.b32.xlu0 %v2328, 8
        %v2396 = vpop.permute.xlu0 %2395
        %2397 = vrot.lane.b32.xlu0 %v2330, 8
        %v2398 = vpop.permute.xlu0 %2397
        %2399 = vrot.lane.b32.xlu0 %v2333, 8
        %v2400 = vpop.permute.xlu0 %2399
        %2401 = vrot.lane.b32.xlu0 %v2335, 8
        %v2402 = vpop.permute.xlu0 %2401
        %2403 = vrot.lane.b32.xlu0 %v2338, 8
        %v2404 = vpop.permute.xlu0 %2403
        %2405 = vrot.lane.b32.xlu0 %v2340, 8
        %v2406 = vpop.permute.xlu0 %2405
        %2407 = vrot.lane.b32.xlu0 %v2343, 8
        %v2408 = vpop.permute.xlu0 %2407
        %2409 = vrot.lane.b32.xlu0 %v2345, 8
        %v2410 = vpop.permute.xlu0 %2409
        %2411 = vrot.lane.b32.xlu0 %v2348, 8
        %v2412 = vpop.permute.xlu0 %2411
        %2413 = vrot.lane.b32.xlu0 %v2350, 8
        %v2414 = vpop.permute.xlu0 %2413
        %v2447 = vrot.slane %v2169, 2
        %v2448 = vrot.slane %v2170, 2
        %v2449 = vsel %vm665, %v2447, %v2448
        %v2450 = vrot.slane %v2171, 2
        %v2451 = vsel %vm665, %v2448, %v2450
        %v2452 = vrot.slane %v2172, 2
        %v2453 = vrot.slane %v2173, 2
        %v2454 = vsel %vm665, %v2452, %v2453
        %v2455 = vrot.slane %v2174, 2
        %v2456 = vsel %vm665, %v2453, %v2455
        %v2457 = vrot.slane %v2175, 2
        %v2458 = vrot.slane %v2176, 2
        %v2459 = vsel %vm665, %v2457, %v2458
        %v2460 = vrot.slane %v2177, 2
        %v2461 = vsel %vm665, %v2458, %v2460
        %v2462 = vrot.slane %v2178, 2
        %v2463 = vrot.slane %v2179, 2
        %v2464 = vsel %vm665, %v2462, %v2463
        %v2465 = vrot.slane %v2180, 2
        %v2466 = vsel %vm665, %v2463, %v2465
        %v2467 = vrot.slane %v2181, 2
        %v2468 = vrot.slane %v2182, 2
        %v2469 = vsel %vm665, %v2467, %v2468
        %v2470 = vrot.slane %v2183, 2
        %v2471 = vsel %vm665, %v2468, %v2470
        %v2472 = vrot.slane %v2184, 2
        %v2473 = vrot.slane %v2185, 2
        %v2474 = vsel %vm665, %v2472, %v2473
        %v2475 = vrot.slane %v2186, 2
        %v2476 = vsel %vm665, %v2473, %v2475
        %v2477 = vrot.slane %v2187, 2
        %v2478 = vrot.slane %v2188, 2
        %v2479 = vsel %vm665, %v2477, %v2478
        %v2480 = vrot.slane %v2189, 2
        %v2481 = vsel %vm665, %v2478, %v2480
        %v2482 = vrot.slane %v2190, 2
        %v2483 = vrot.slane %v2191, 2
        %v2484 = vsel %vm665, %v2482, %v2483
        %v2485 = vrot.slane %v2192, 2
        %v2486 = vsel %vm665, %v2483, %v2485
        %v2487 = vrot.slane %v2193, 2
        %v2488 = vrot.slane %v2194, 2
        %v2489 = vsel %vm665, %v2487, %v2488
        %v2490 = vrot.slane %v2195, 2
        %v2491 = vsel %vm665, %v2488, %v2490
        %v2492 = vrot.slane %v2196, 2
        %v2493 = vrot.slane %v2197, 2
        %v2494 = vsel %vm665, %v2492, %v2493
        %v2495 = vrot.slane %v2198, 2
        %v2496 = vsel %vm665, %v2493, %v2495
        %v2497 = vrot.slane %v2199, 2
        %v2498 = vrot.slane %v2200, 2
        %v2499 = vsel %vm665, %v2497, %v2498
        %v2500 = vrot.slane %v2201, 2
        %v2501 = vsel %vm665, %v2498, %v2500
        %v2502 = vrot.slane %v2202, 2
        %v2503 = vrot.slane %v2203, 2
        %v2504 = vsel %vm665, %v2502, %v2503
        %v2505 = vrot.slane %v2204, 2
        %v2506 = vsel %vm665, %v2503, %v2505
        %v2507 = vrot.slane %v2205, 2
        %v2508 = vrot.slane %v2206, 2
        %v2509 = vsel %vm665, %v2507, %v2508
        %v2510 = vrot.slane %v2207, 2
        %v2511 = vsel %vm665, %v2508, %v2510
        %v2512 = vrot.slane %v2208, 2
        %v2513 = vrot.slane %v2209, 2
        %v2514 = vsel %vm665, %v2512, %v2513
        %v2515 = vrot.slane %v2210, 2
        %v2516 = vsel %vm665, %v2513, %v2515
        %v2517 = vrot.slane %v2211, 2
        %v2518 = vrot.slane %v2212, 2
        %v2519 = vsel %vm665, %v2517, %v2518
        %v2520 = vrot.slane %v2213, 2
        %v2521 = vsel %vm665, %v2518, %v2520
        %v2522 = vrot.slane %v2214, 2
        %v2523 = vrot.slane %v2215, 2
        %v2524 = vsel %vm665, %v2522, %v2523
        %v2525 = vrot.slane %v2216, 2
        %v2526 = vsel %vm665, %v2523, %v2525
        %2527 = vrot.lane.b32.xlu0 %v2449, 16
        %v2528 = vpop.permute.xlu0 %2527
        %2529 = vrot.lane.b32.xlu0 %v2451, 16
        %v2530 = vpop.permute.xlu0 %2529
        %2531 = vrot.lane.b32.xlu0 %v2454, 16
        %v2532 = vpop.permute.xlu0 %2531
        %2533 = vrot.lane.b32.xlu0 %v2456, 16
        %v2534 = vpop.permute.xlu0 %2533
        %2535 = vrot.lane.b32.xlu0 %v2459, 16
        %v2536 = vpop.permute.xlu0 %2535
        %2537 = vrot.lane.b32.xlu0 %v2461, 16
        %v2538 = vpop.permute.xlu0 %2537
        %2539 = vrot.lane.b32.xlu0 %v2464, 16
        %v2540 = vpop.permute.xlu0 %2539
        %2541 = vrot.lane.b32.xlu0 %v2466, 16
        %v2542 = vpop.permute.xlu0 %2541
        %2543 = vrot.lane.b32.xlu0 %v2469, 16
        %v2544 = vpop.permute.xlu0 %2543
        %2545 = vrot.lane.b32.xlu0 %v2471, 16
        %v2546 = vpop.permute.xlu0 %2545
        %2547 = vrot.lane.b32.xlu0 %v2474, 16
        %v2548 = vpop.permute.xlu0 %2547
        %2549 = vrot.lane.b32.xlu0 %v2476, 16
        %v2550 = vpop.permute.xlu0 %2549
        %2551 = vrot.lane.b32.xlu0 %v2479, 16
        %v2552 = vpop.permute.xlu0 %2551
        %2553 = vrot.lane.b32.xlu0 %v2481, 16
        %v2554 = vpop.permute.xlu0 %2553
        %2555 = vrot.lane.b32.xlu0 %v2484, 16
        %v2556 = vpop.permute.xlu0 %2555
        %2557 = vrot.lane.b32.xlu0 %v2486, 16
        %v2558 = vpop.permute.xlu0 %2557
        %2559 = vrot.lane.b32.xlu0 %v2489, 16
        %v2560 = vpop.permute.xlu0 %2559
        %2561 = vrot.lane.b32.xlu0 %v2491, 16
        %v2562 = vpop.permute.xlu0 %2561
        %2563 = vrot.lane.b32.xlu0 %v2494, 16
        %v2564 = vpop.permute.xlu0 %2563
        %2565 = vrot.lane.b32.xlu0 %v2496, 16
        %v2566 = vpop.permute.xlu0 %2565
        %2567 = vrot.lane.b32.xlu0 %v2499, 16
        %v2568 = vpop.permute.xlu0 %2567
        %2569 = vrot.lane.b32.xlu0 %v2501, 16
        %v2570 = vpop.permute.xlu0 %2569
        %2571 = vrot.lane.b32.xlu0 %v2504, 16
        %v2572 = vpop.permute.xlu0 %2571
        %2573 = vrot.lane.b32.xlu0 %v2506, 16
        %v2574 = vpop.permute.xlu0 %2573
        %2575 = vrot.lane.b32.xlu0 %v2509, 16
        %v2576 = vpop.permute.xlu0 %2575
        %2577 = vrot.lane.b32.xlu0 %v2511, 16
        %v2578 = vpop.permute.xlu0 %2577
        %2579 = vrot.lane.b32.xlu0 %v2514, 16
        %v2580 = vpop.permute.xlu0 %2579
        %2581 = vrot.lane.b32.xlu0 %v2516, 16
        %v2582 = vpop.permute.xlu0 %2581
        %2583 = vrot.lane.b32.xlu0 %v2519, 16
        %v2584 = vpop.permute.xlu0 %2583
        %2585 = vrot.lane.b32.xlu0 %v2521, 16
        %v2586 = vpop.permute.xlu0 %2585
        %2587 = vrot.lane.b32.xlu0 %v2524, 16
        %v2588 = vpop.permute.xlu0 %2587
        %2589 = vrot.lane.b32.xlu0 %v2526, 16
        %v2590 = vpop.permute.xlu0 %2589
        %2625 = vrot.lane.b32.xlu0 %v2172, 24
        %v2626 = vpop.permute.xlu0 %2625
        %2627 = vrot.lane.b32.xlu0 %v2173, 24
        %v2628 = vpop.permute.xlu0 %2627
        %2629 = vrot.lane.b32.xlu0 %v2175, 24
        %v2630 = vpop.permute.xlu0 %2629
        %2631 = vrot.lane.b32.xlu0 %v2176, 24
        %v2632 = vpop.permute.xlu0 %2631
        %2633 = vrot.lane.b32.xlu0 %v2178, 24
        %v2634 = vpop.permute.xlu0 %2633
        %2635 = vrot.lane.b32.xlu0 %v2179, 24
        %v2636 = vpop.permute.xlu0 %2635
        %2637 = vrot.lane.b32.xlu0 %v2181, 24
        %v2638 = vpop.permute.xlu0 %2637
        %2639 = vrot.lane.b32.xlu0 %v2182, 24
        %v2640 = vpop.permute.xlu0 %2639
        %2641 = vrot.lane.b32.xlu0 %v2184, 24
        %v2642 = vpop.permute.xlu0 %2641
        %2643 = vrot.lane.b32.xlu0 %v2185, 24
        %v2644 = vpop.permute.xlu0 %2643
        %2645 = vrot.lane.b32.xlu0 %v2187, 24
        %v2646 = vpop.permute.xlu0 %2645
        %2647 = vrot.lane.b32.xlu0 %v2188, 24
        %v2648 = vpop.permute.xlu0 %2647
        %2649 = vrot.lane.b32.xlu0 %v2190, 24
        %v2650 = vpop.permute.xlu0 %2649
        %2651 = vrot.lane.b32.xlu0 %v2191, 24
        %v2652 = vpop.permute.xlu0 %2651
        %2653 = vrot.lane.b32.xlu0 %v2193, 24
        %v2654 = vpop.permute.xlu0 %2653
        %2655 = vrot.lane.b32.xlu0 %v2194, 24
        %v2656 = vpop.permute.xlu0 %2655
        %2657 = vrot.lane.b32.xlu0 %v2196, 24
        %v2658 = vpop.permute.xlu0 %2657
        %2659 = vrot.lane.b32.xlu0 %v2197, 24
        %v2660 = vpop.permute.xlu0 %2659
        %2661 = vrot.lane.b32.xlu0 %v2199, 24
        %v2662 = vpop.permute.xlu0 %2661
        %2663 = vrot.lane.b32.xlu0 %v2200, 24
        %v2664 = vpop.permute.xlu0 %2663
        %2665 = vrot.lane.b32.xlu0 %v2202, 24
        %v2666 = vpop.permute.xlu0 %2665
        %2667 = vrot.lane.b32.xlu0 %v2203, 24
        %v2668 = vpop.permute.xlu0 %2667
        %2669 = vrot.lane.b32.xlu0 %v2205, 24
        %v2670 = vpop.permute.xlu0 %2669
        %2671 = vrot.lane.b32.xlu0 %v2206, 24
        %v2672 = vpop.permute.xlu0 %2671
        %2673 = vrot.lane.b32.xlu0 %v2208, 24
        %v2674 = vpop.permute.xlu0 %2673
        %2675 = vrot.lane.b32.xlu0 %v2209, 24
        %v2676 = vpop.permute.xlu0 %2675
        %2677 = vrot.lane.b32.xlu0 %v2211, 24
        %v2678 = vpop.permute.xlu0 %2677
        %2679 = vrot.lane.b32.xlu0 %v2212, 24
        %v2680 = vpop.permute.xlu0 %2679
        %2681 = vrot.lane.b32.xlu0 %v2214, 24
        %v2682 = vpop.permute.xlu0 %2681
        %2683 = vrot.lane.b32.xlu0 %v2215, 24
        %v2684 = vpop.permute.xlu0 %2683
        %2685 = vrot.lane.b32.xlu0 %v2217, 24
        %v2686 = vpop.permute.xlu0 %2685
        %2687 = vrot.lane.b32.xlu0 %v2218, 24
        %v2688 = vpop.permute.xlu0 %2687
        %v2722 = vrot.slane %v2217, 1
        %v2723 = vrot.slane %v2218, 1
        %v2724 = vsel %vm488, %v2722, %v2723
        %v2725 = vrot.slane %v2219, 1
        %v2726 = vsel %vm488, %v2723, %v2725
        %2727 = vrot.lane.b32.xlu0 %v2278, 32
        %v2728 = vpop.permute.xlu0 %2727
        %2729 = vrot.lane.b32.xlu0 %v2280, 32
        %v2730 = vpop.permute.xlu0 %2729
        %2731 = vrot.lane.b32.xlu0 %v2283, 32
        %v2732 = vpop.permute.xlu0 %2731
        %2733 = vrot.lane.b32.xlu0 %v2285, 32
        %v2734 = vpop.permute.xlu0 %2733
        %2735 = vrot.lane.b32.xlu0 %v2288, 32
        %v2736 = vpop.permute.xlu0 %2735
        %2737 = vrot.lane.b32.xlu0 %v2290, 32
        %v2738 = vpop.permute.xlu0 %2737
        %2739 = vrot.lane.b32.xlu0 %v2293, 32
        %v2740 = vpop.permute.xlu0 %2739
        %2741 = vrot.lane.b32.xlu0 %v2295, 32
        %v2742 = vpop.permute.xlu0 %2741
        %2743 = vrot.lane.b32.xlu0 %v2298, 32
        %v2744 = vpop.permute.xlu0 %2743
        %2745 = vrot.lane.b32.xlu0 %v2300, 32
        %v2746 = vpop.permute.xlu0 %2745
        %2747 = vrot.lane.b32.xlu0 %v2303, 32
        %v2748 = vpop.permute.xlu0 %2747
        %2749 = vrot.lane.b32.xlu0 %v2305, 32
        %v2750 = vpop.permute.xlu0 %2749
        %2751 = vrot.lane.b32.xlu0 %v2308, 32
        %v2752 = vpop.permute.xlu0 %2751
        %2753 = vrot.lane.b32.xlu0 %v2310, 32
        %v2754 = vpop.permute.xlu0 %2753
        %2755 = vrot.lane.b32.xlu0 %v2313, 32
        %v2756 = vpop.permute.xlu0 %2755
        %2757 = vrot.lane.b32.xlu0 %v2315, 32
        %v2758 = vpop.permute.xlu0 %2757
        %2759 = vrot.lane.b32.xlu0 %v2318, 32
        %v2760 = vpop.permute.xlu0 %2759
        %2761 = vrot.lane.b32.xlu0 %v2320, 32
        %v2762 = vpop.permute.xlu0 %2761
        %2763 = vrot.lane.b32.xlu0 %v2323, 32
        %v2764 = vpop.permute.xlu0 %2763
        %2765 = vrot.lane.b32.xlu0 %v2325, 32
        %v2766 = vpop.permute.xlu0 %2765
        %2767 = vrot.lane.b32.xlu0 %v2328, 32
        %v2768 = vpop.permute.xlu0 %2767
        %2769 = vrot.lane.b32.xlu0 %v2330, 32
        %v2770 = vpop.permute.xlu0 %2769
        %2771 = vrot.lane.b32.xlu0 %v2333, 32
        %v2772 = vpop.permute.xlu0 %2771
        %2773 = vrot.lane.b32.xlu0 %v2335, 32
        %v2774 = vpop.permute.xlu0 %2773
        %2775 = vrot.lane.b32.xlu0 %v2338, 32
        %v2776 = vpop.permute.xlu0 %2775
        %2777 = vrot.lane.b32.xlu0 %v2340, 32
        %v2778 = vpop.permute.xlu0 %2777
        %2779 = vrot.lane.b32.xlu0 %v2343, 32
        %v2780 = vpop.permute.xlu0 %2779
        %2781 = vrot.lane.b32.xlu0 %v2345, 32
        %v2782 = vpop.permute.xlu0 %2781
        %2783 = vrot.lane.b32.xlu0 %v2348, 32
        %v2784 = vpop.permute.xlu0 %2783
        %2785 = vrot.lane.b32.xlu0 %v2350, 32
        %v2786 = vpop.permute.xlu0 %2785
        %2787 = vrot.lane.b32.xlu0 %v2724, 32
        %v2788 = vpop.permute.xlu0 %2787
        %2789 = vrot.lane.b32.xlu0 %v2726, 32
        %v2790 = vpop.permute.xlu0 %2789
        %v2823 = vrot.slane %v2217, 2
        %v2824 = vrot.slane %v2218, 2
        %v2825 = vsel %vm665, %v2823, %v2824
        %v2826 = vrot.slane %v2219, 2
        %v2827 = vsel %vm665, %v2824, %v2826
        %2828 = vrot.lane.b32.xlu0 %v2454, 40
        %v2829 = vpop.permute.xlu0 %2828
        %2830 = vrot.lane.b32.xlu0 %v2456, 40
        %v2831 = vpop.permute.xlu0 %2830
        %2832 = vrot.lane.b32.xlu0 %v2459, 40
        %v2833 = vpop.permute.xlu0 %2832
        %2834 = vrot.lane.b32.xlu0 %v2461, 40
        %v2835 = vpop.permute.xlu0 %2834
        %2836 = vrot.lane.b32.xlu0 %v2464, 40
        %v2837 = vpop.permute.xlu0 %2836
        %2838 = vrot.lane.b32.xlu0 %v2466, 40
        %v2839 = vpop.permute.xlu0 %2838
        %2840 = vrot.lane.b32.xlu0 %v2469, 40
        %v2841 = vpop.permute.xlu0 %2840
        %2842 = vrot.lane.b32.xlu0 %v2471, 40
        %v2843 = vpop.permute.xlu0 %2842
        %2844 = vrot.lane.b32.xlu0 %v2474, 40
        %v2845 = vpop.permute.xlu0 %2844
        %2846 = vrot.lane.b32.xlu0 %v2476, 40
        %v2847 = vpop.permute.xlu0 %2846
        %2848 = vrot.lane.b32.xlu0 %v2479, 40
        %v2849 = vpop.permute.xlu0 %2848
        %2850 = vrot.lane.b32.xlu0 %v2481, 40
        %v2851 = vpop.permute.xlu0 %2850
        %2852 = vrot.lane.b32.xlu0 %v2484, 40
        %v2853 = vpop.permute.xlu0 %2852
        %2854 = vrot.lane.b32.xlu0 %v2486, 40
        %v2855 = vpop.permute.xlu0 %2854
        %2856 = vrot.lane.b32.xlu0 %v2489, 40
        %v2857 = vpop.permute.xlu0 %2856
        %2858 = vrot.lane.b32.xlu0 %v2491, 40
        %v2859 = vpop.permute.xlu0 %2858
        %2860 = vrot.lane.b32.xlu0 %v2494, 40
        %v2861 = vpop.permute.xlu0 %2860
        %2862 = vrot.lane.b32.xlu0 %v2496, 40
        %v2863 = vpop.permute.xlu0 %2862
        %2864 = vrot.lane.b32.xlu0 %v2499, 40
        %v2865 = vpop.permute.xlu0 %2864
        %2866 = vrot.lane.b32.xlu0 %v2501, 40
        %v2867 = vpop.permute.xlu0 %2866
        %2868 = vrot.lane.b32.xlu0 %v2504, 40
        %v2869 = vpop.permute.xlu0 %2868
        %2870 = vrot.lane.b32.xlu0 %v2506, 40
        %v2871 = vpop.permute.xlu0 %2870
        %2872 = vrot.lane.b32.xlu0 %v2509, 40
        %v2873 = vpop.permute.xlu0 %2872
        %2874 = vrot.lane.b32.xlu0 %v2511, 40
        %v2875 = vpop.permute.xlu0 %2874
        %2876 = vrot.lane.b32.xlu0 %v2514, 40
        %v2877 = vpop.permute.xlu0 %2876
        %2878 = vrot.lane.b32.xlu0 %v2516, 40
        %v2879 = vpop.permute.xlu0 %2878
        %2880 = vrot.lane.b32.xlu0 %v2519, 40
        %v2881 = vpop.permute.xlu0 %2880
        %2882 = vrot.lane.b32.xlu0 %v2521, 40
        %v2883 = vpop.permute.xlu0 %2882
        %2884 = vrot.lane.b32.xlu0 %v2524, 40
        %v2885 = vpop.permute.xlu0 %2884
        %2886 = vrot.lane.b32.xlu0 %v2526, 40
        %v2887 = vpop.permute.xlu0 %2886
        %2888 = vrot.lane.b32.xlu0 %v2825, 40
        %v2889 = vpop.permute.xlu0 %2888
        %2890 = vrot.lane.b32.xlu0 %v2827, 40
        %v2891 = vpop.permute.xlu0 %2890
        %2926 = vrot.lane.b32.xlu0 %v2175, 48
        %v2927 = vpop.permute.xlu0 %2926
        %2928 = vrot.lane.b32.xlu0 %v2176, 48
        %v2929 = vpop.permute.xlu0 %2928
        %2930 = vrot.lane.b32.xlu0 %v2178, 48
        %v2931 = vpop.permute.xlu0 %2930
        %2932 = vrot.lane.b32.xlu0 %v2179, 48
        %v2933 = vpop.permute.xlu0 %2932
        %2934 = vrot.lane.b32.xlu0 %v2181, 48
        %v2935 = vpop.permute.xlu0 %2934
        %2936 = vrot.lane.b32.xlu0 %v2182, 48
        %v2937 = vpop.permute.xlu0 %2936
        %2938 = vrot.lane.b32.xlu0 %v2184, 48
        %v2939 = vpop.permute.xlu0 %2938
        %2940 = vrot.lane.b32.xlu0 %v2185, 48
        %v2941 = vpop.permute.xlu0 %2940
        %2942 = vrot.lane.b32.xlu0 %v2187, 48
        %v2943 = vpop.permute.xlu0 %2942
        %2944 = vrot.lane.b32.xlu0 %v2188, 48
        %v2945 = vpop.permute.xlu0 %2944
        %2946 = vrot.lane.b32.xlu0 %v2190, 48
        %v2947 = vpop.permute.xlu0 %2946
        %2948 = vrot.lane.b32.xlu0 %v2191, 48
        %v2949 = vpop.permute.xlu0 %2948
        %2950 = vrot.lane.b32.xlu0 %v2193, 48
        %v2951 = vpop.permute.xlu0 %2950
        %2952 = vrot.lane.b32.xlu0 %v2194, 48
        %v2953 = vpop.permute.xlu0 %2952
        %2954 = vrot.lane.b32.xlu0 %v2196, 48
        %v2955 = vpop.permute.xlu0 %2954
        %2956 = vrot.lane.b32.xlu0 %v2197, 48
        %v2957 = vpop.permute.xlu0 %2956
        %2958 = vrot.lane.b32.xlu0 %v2199, 48
        %v2959 = vpop.permute.xlu0 %2958
        %2960 = vrot.lane.b32.xlu0 %v2200, 48
        %v2961 = vpop.permute.xlu0 %2960
        %2962 = vrot.lane.b32.xlu0 %v2202, 48
        %v2963 = vpop.permute.xlu0 %2962
        %2964 = vrot.lane.b32.xlu0 %v2203, 48
        %v2965 = vpop.permute.xlu0 %2964
        %2966 = vrot.lane.b32.xlu0 %v2205, 48
        %v2967 = vpop.permute.xlu0 %2966
        %2968 = vrot.lane.b32.xlu0 %v2206, 48
        %v2969 = vpop.permute.xlu0 %2968
        %2970 = vrot.lane.b32.xlu0 %v2208, 48
        %v2971 = vpop.permute.xlu0 %2970
        %2972 = vrot.lane.b32.xlu0 %v2209, 48
        %v2973 = vpop.permute.xlu0 %2972
        %2974 = vrot.lane.b32.xlu0 %v2211, 48
        %v2975 = vpop.permute.xlu0 %2974
        %2976 = vrot.lane.b32.xlu0 %v2212, 48
        %v2977 = vpop.permute.xlu0 %2976
        %2978 = vrot.lane.b32.xlu0 %v2214, 48
        %v2979 = vpop.permute.xlu0 %2978
        %2980 = vrot.lane.b32.xlu0 %v2215, 48
        %v2981 = vpop.permute.xlu0 %2980
        %2982 = vrot.lane.b32.xlu0 %v2217, 48
        %v2983 = vpop.permute.xlu0 %2982
        %2984 = vrot.lane.b32.xlu0 %v2218, 48
        %v2985 = vpop.permute.xlu0 %2984
        %2986 = vrot.lane.b32.xlu0 %v2220, 48
        %v2987 = vpop.permute.xlu0 %2986
        %2988 = vrot.lane.b32.xlu0 %v2221, 48
        %v2989 = vpop.permute.xlu0 %2988
        %v3023 = vrot.slane %v2220, 1
        %v3024 = vrot.slane %v2221, 1
        %v3025 = vsel %vm488, %v3023, %v3024
        %v3026 = vrot.slane %v2222, 1
        %v3027 = vsel %vm488, %v3024, %v3026
        %3028 = vrot.lane.b32.xlu0 %v2283, 56
        %v3029 = vpop.permute.xlu0 %3028
        %3030 = vrot.lane.b32.xlu0 %v2285, 56
        %v3031 = vpop.permute.xlu0 %3030
        %3032 = vrot.lane.b32.xlu0 %v2288, 56
        %v3033 = vpop.permute.xlu0 %3032
        %3034 = vrot.lane.b32.xlu0 %v2290, 56
        %v3035 = vpop.permute.xlu0 %3034
        %3036 = vrot.lane.b32.xlu0 %v2293, 56
        %v3037 = vpop.permute.xlu0 %3036
        %3038 = vrot.lane.b32.xlu0 %v2295, 56
        %v3039 = vpop.permute.xlu0 %3038
        %3040 = vrot.lane.b32.xlu0 %v2298, 56
        %v3041 = vpop.permute.xlu0 %3040
        %3042 = vrot.lane.b32.xlu0 %v2300, 56
        %v3043 = vpop.permute.xlu0 %3042
        %3044 = vrot.lane.b32.xlu0 %v2303, 56
        %v3045 = vpop.permute.xlu0 %3044
        %3046 = vrot.lane.b32.xlu0 %v2305, 56
        %v3047 = vpop.permute.xlu0 %3046
        %3048 = vrot.lane.b32.xlu0 %v2308, 56
        %v3049 = vpop.permute.xlu0 %3048
        %3050 = vrot.lane.b32.xlu0 %v2310, 56
        %v3051 = vpop.permute.xlu0 %3050
        %3052 = vrot.lane.b32.xlu0 %v2313, 56
        %v3053 = vpop.permute.xlu0 %3052
        %3054 = vrot.lane.b32.xlu0 %v2315, 56
        %v3055 = vpop.permute.xlu0 %3054
        %3056 = vrot.lane.b32.xlu0 %v2318, 56
        %v3057 = vpop.permute.xlu0 %3056
        %3058 = vrot.lane.b32.xlu0 %v2320, 56
        %v3059 = vpop.permute.xlu0 %3058
        %3060 = vrot.lane.b32.xlu0 %v2323, 56
        %v3061 = vpop.permute.xlu0 %3060
        %3062 = vrot.lane.b32.xlu0 %v2325, 56
        %v3063 = vpop.permute.xlu0 %3062
        %3064 = vrot.lane.b32.xlu0 %v2328, 56
        %v3065 = vpop.permute.xlu0 %3064
        %3066 = vrot.lane.b32.xlu0 %v2330, 56
        %v3067 = vpop.permute.xlu0 %3066
        %3068 = vrot.lane.b32.xlu0 %v2333, 56
        %v3069 = vpop.permute.xlu0 %3068
        %3070 = vrot.lane.b32.xlu0 %v2335, 56
        %v3071 = vpop.permute.xlu0 %3070
        %3072 = vrot.lane.b32.xlu0 %v2338, 56
        %v3073 = vpop.permute.xlu0 %3072
        %3074 = vrot.lane.b32.xlu0 %v2340, 56
        %v3075 = vpop.permute.xlu0 %3074
        %3076 = vrot.lane.b32.xlu0 %v2343, 56
        %v3077 = vpop.permute.xlu0 %3076
        %3078 = vrot.lane.b32.xlu0 %v2345, 56
        %v3079 = vpop.permute.xlu0 %3078
        %3080 = vrot.lane.b32.xlu0 %v2348, 56
        %v3081 = vpop.permute.xlu0 %3080
        %3082 = vrot.lane.b32.xlu0 %v2350, 56
        %v3083 = vpop.permute.xlu0 %3082
        %3084 = vrot.lane.b32.xlu0 %v2724, 56
        %v3085 = vpop.permute.xlu0 %3084
        %3086 = vrot.lane.b32.xlu0 %v2726, 56
        %v3087 = vpop.permute.xlu0 %3086
        %3088 = vrot.lane.b32.xlu0 %v3025, 56
        %v3089 = vpop.permute.xlu0 %3088
        %3090 = vrot.lane.b32.xlu0 %v3027, 56
        %v3091 = vpop.permute.xlu0 %3090
        %v3124 = vrot.slane %v2220, 2
        %v3125 = vrot.slane %v2221, 2
        %v3126 = vsel %vm665, %v3124, %v3125
        %v3127 = vrot.slane %v2222, 2
        %v3128 = vsel %vm665, %v3125, %v3127
        %3129 = vrot.lane.b32.xlu0 %v2459, 64
        %v3130 = vpop.permute.xlu0 %3129
        %3131 = vrot.lane.b32.xlu0 %v2461, 64
        %v3132 = vpop.permute.xlu0 %3131
        %3133 = vrot.lane.b32.xlu0 %v2464, 64
        %v3134 = vpop.permute.xlu0 %3133
        %3135 = vrot.lane.b32.xlu0 %v2466, 64
        %v3136 = vpop.permute.xlu0 %3135
        %3137 = vrot.lane.b32.xlu0 %v2469, 64
        %v3138 = vpop.permute.xlu0 %3137
        %3139 = vrot.lane.b32.xlu0 %v2471, 64
        %v3140 = vpop.permute.xlu0 %3139
        %3141 = vrot.lane.b32.xlu0 %v2474, 64
        %v3142 = vpop.permute.xlu0 %3141
        %3143 = vrot.lane.b32.xlu0 %v2476, 64
        %v3144 = vpop.permute.xlu0 %3143
        %3145 = vrot.lane.b32.xlu0 %v2479, 64
        %v3146 = vpop.permute.xlu0 %3145
        %3147 = vrot.lane.b32.xlu0 %v2481, 64
        %v3148 = vpop.permute.xlu0 %3147
        %3149 = vrot.lane.b32.xlu0 %v2484, 64
        %v3150 = vpop.permute.xlu0 %3149
        %3151 = vrot.lane.b32.xlu0 %v2486, 64
        %v3152 = vpop.permute.xlu0 %3151
        %3153 = vrot.lane.b32.xlu0 %v2489, 64
        %v3154 = vpop.permute.xlu0 %3153
        %3155 = vrot.lane.b32.xlu0 %v2491, 64
        %v3156 = vpop.permute.xlu0 %3155
        %3157 = vrot.lane.b32.xlu0 %v2494, 64
        %v3158 = vpop.permute.xlu0 %3157
        %3159 = vrot.lane.b32.xlu0 %v2496, 64
        %v3160 = vpop.permute.xlu0 %3159
        %3161 = vrot.lane.b32.xlu0 %v2499, 64
        %v3162 = vpop.permute.xlu0 %3161
        %3163 = vrot.lane.b32.xlu0 %v2501, 64
        %v3164 = vpop.permute.xlu0 %3163
        %3165 = vrot.lane.b32.xlu0 %v2504, 64
        %v3166 = vpop.permute.xlu0 %3165
        %3167 = vrot.lane.b32.xlu0 %v2506, 64
        %v3168 = vpop.permute.xlu0 %3167
        %3169 = vrot.lane.b32.xlu0 %v2509, 64
        %v3170 = vpop.permute.xlu0 %3169
        %3171 = vrot.lane.b32.xlu0 %v2511, 64
        %v3172 = vpop.permute.xlu0 %3171
        %3173 = vrot.lane.b32.xlu0 %v2514, 64
        %v3174 = vpop.permute.xlu0 %3173
        %3175 = vrot.lane.b32.xlu0 %v2516, 64
        %v3176 = vpop.permute.xlu0 %3175
        %3177 = vrot.lane.b32.xlu0 %v2519, 64
        %v3178 = vpop.permute.xlu0 %3177
        %3179 = vrot.lane.b32.xlu0 %v2521, 64
        %v3180 = vpop.permute.xlu0 %3179
        %3181 = vrot.lane.b32.xlu0 %v2524, 64
        %v3182 = vpop.permute.xlu0 %3181
        %3183 = vrot.lane.b32.xlu0 %v2526, 64
        %v3184 = vpop.permute.xlu0 %3183
        %3185 = vrot.lane.b32.xlu0 %v2825, 64
        %v3186 = vpop.permute.xlu0 %3185
        %3187 = vrot.lane.b32.xlu0 %v2827, 64
        %v3188 = vpop.permute.xlu0 %3187
        %3189 = vrot.lane.b32.xlu0 %v3126, 64
        %v3190 = vpop.permute.xlu0 %3189
        %3191 = vrot.lane.b32.xlu0 %v3128, 64
        %v3192 = vpop.permute.xlu0 %3191
        %v3225 = vsel %vm1476, %v2169, %v2352
        %v3226 = vsel %vm1476, %v2170, %v2354
        %v3227 = vsel %vm1476, %v2172, %v2356
        %v3228 = vsel %vm1476, %v2173, %v2358
        %v3229 = vsel %vm1476, %v2175, %v2360
        %v3230 = vsel %vm1476, %v2176, %v2362
        %v3231 = vsel %vm1476, %v2178, %v2364
        %v3232 = vsel %vm1476, %v2179, %v2366
        %v3233 = vsel %vm1476, %v2181, %v2368
        %v3234 = vsel %vm1476, %v2182, %v2370
        %v3235 = vsel %vm1476, %v2184, %v2372
        %v3236 = vsel %vm1476, %v2185, %v2374
        %v3237 = vsel %vm1476, %v2187, %v2376
        %v3238 = vsel %vm1476, %v2188, %v2378
        %v3239 = vsel %vm1476, %v2190, %v2380
        %v3240 = vsel %vm1476, %v2191, %v2382
        %v3241 = vsel %vm1476, %v2193, %v2384
        %v3242 = vsel %vm1476, %v2194, %v2386
        %v3243 = vsel %vm1476, %v2196, %v2388
        %v3244 = vsel %vm1476, %v2197, %v2390
        %v3245 = vsel %vm1476, %v2199, %v2392
        %v3246 = vsel %vm1476, %v2200, %v2394
        %v3247 = vsel %vm1476, %v2202, %v2396
        %v3248 = vsel %vm1476, %v2203, %v2398
        %v3249 = vsel %vm1476, %v2205, %v2400
        %v3250 = vsel %vm1476, %v2206, %v2402
        %v3251 = vsel %vm1476, %v2208, %v2404
        %v3252 = vsel %vm1476, %v2209, %v2406
        %v3253 = vsel %vm1476, %v2211, %v2408
        %v3254 = vsel %vm1476, %v2212, %v2410
        %v3255 = vsel %vm1476, %v2214, %v2412
        %v3256 = vsel %vm1476, %v2215, %v2414
        %v3257 = vsel %vm1542, %v3225, %v2528
        %v3258 = vsel %vm1542, %v3226, %v2530
        %v3259 = vsel %vm1542, %v3227, %v2532
        %v3260 = vsel %vm1542, %v3228, %v2534
        %v3261 = vsel %vm1542, %v3229, %v2536
        %v3262 = vsel %vm1542, %v3230, %v2538
        %v3263 = vsel %vm1542, %v3231, %v2540
        %v3264 = vsel %vm1542, %v3232, %v2542
        %v3265 = vsel %vm1542, %v3233, %v2544
        %v3266 = vsel %vm1542, %v3234, %v2546
        %v3267 = vsel %vm1542, %v3235, %v2548
        %v3268 = vsel %vm1542, %v3236, %v2550
        %v3269 = vsel %vm1542, %v3237, %v2552
        %v3270 = vsel %vm1542, %v3238, %v2554
        %v3271 = vsel %vm1542, %v3239, %v2556
        %v3272 = vsel %vm1542, %v3240, %v2558
        %v3273 = vsel %vm1542, %v3241, %v2560
        %v3274 = vsel %vm1542, %v3242, %v2562
        %v3275 = vsel %vm1542, %v3243, %v2564
        %v3276 = vsel %vm1542, %v3244, %v2566
        %v3277 = vsel %vm1542, %v3245, %v2568
        %v3278 = vsel %vm1542, %v3246, %v2570
        %v3279 = vsel %vm1542, %v3247, %v2572
        %v3280 = vsel %vm1542, %v3248, %v2574
        %v3281 = vsel %vm1542, %v3249, %v2576
        %v3282 = vsel %vm1542, %v3250, %v2578
        %v3283 = vsel %vm1542, %v3251, %v2580
        %v3284 = vsel %vm1542, %v3252, %v2582
        %v3285 = vsel %vm1542, %v3253, %v2584
        %v3286 = vsel %vm1542, %v3254, %v2586
        %v3287 = vsel %vm1542, %v3255, %v2588
        %v3288 = vsel %vm1542, %v3256, %v2590
        %v3289 = vsel %vm1608, %v3257, %v2626
        %v3290 = vsel %vm1608, %v3258, %v2628
        %v3291 = vsel %vm1608, %v3259, %v2630
        %v3292 = vsel %vm1608, %v3260, %v2632
        %v3293 = vsel %vm1608, %v3261, %v2634
        %v3294 = vsel %vm1608, %v3262, %v2636
        %v3295 = vsel %vm1608, %v3263, %v2638
        %v3296 = vsel %vm1608, %v3264, %v2640
        %v3297 = vsel %vm1608, %v3265, %v2642
        %v3298 = vsel %vm1608, %v3266, %v2644
        %v3299 = vsel %vm1608, %v3267, %v2646
        %v3300 = vsel %vm1608, %v3268, %v2648
        %v3301 = vsel %vm1608, %v3269, %v2650
        %v3302 = vsel %vm1608, %v3270, %v2652
        %v3303 = vsel %vm1608, %v3271, %v2654
        %v3304 = vsel %vm1608, %v3272, %v2656
        %v3305 = vsel %vm1608, %v3273, %v2658
        %v3306 = vsel %vm1608, %v3274, %v2660
        %v3307 = vsel %vm1608, %v3275, %v2662
        %v3308 = vsel %vm1608, %v3276, %v2664
        %v3309 = vsel %vm1608, %v3277, %v2666
        %v3310 = vsel %vm1608, %v3278, %v2668
        %v3311 = vsel %vm1608, %v3279, %v2670
        %v3312 = vsel %vm1608, %v3280, %v2672
        %v3313 = vsel %vm1608, %v3281, %v2674
        %v3314 = vsel %vm1608, %v3282, %v2676
        %v3315 = vsel %vm1608, %v3283, %v2678
        %v3316 = vsel %vm1608, %v3284, %v2680
        %v3317 = vsel %vm1608, %v3285, %v2682
        %v3318 = vsel %vm1608, %v3286, %v2684
        %v3319 = vsel %vm1608, %v3287, %v2686
        %v3320 = vsel %vm1608, %v3288, %v2688
        %v3321 = vsel %vm1674, %v3289, %v2728
        %v3322 = vsel %vm1674, %v3290, %v2730
        %v3323 = vsel %vm1674, %v3291, %v2732
        %v3324 = vsel %vm1674, %v3292, %v2734
        %v3325 = vsel %vm1674, %v3293, %v2736
        %v3326 = vsel %vm1674, %v3294, %v2738
        %v3327 = vsel %vm1674, %v3295, %v2740
        %v3328 = vsel %vm1674, %v3296, %v2742
        %v3329 = vsel %vm1674, %v3297, %v2744
        %v3330 = vsel %vm1674, %v3298, %v2746
        %v3331 = vsel %vm1674, %v3299, %v2748
        %v3332 = vsel %vm1674, %v3300, %v2750
        %v3333 = vsel %vm1674, %v3301, %v2752
        %v3334 = vsel %vm1674, %v3302, %v2754
        %v3335 = vsel %vm1674, %v3303, %v2756
        %v3336 = vsel %vm1674, %v3304, %v2758
        %v3337 = vsel %vm1674, %v3305, %v2760
        %v3338 = vsel %vm1674, %v3306, %v2762
        %v3339 = vsel %vm1674, %v3307, %v2764
        %v3340 = vsel %vm1674, %v3308, %v2766
        %v3341 = vsel %vm1674, %v3309, %v2768
        %v3342 = vsel %vm1674, %v3310, %v2770
        %v3343 = vsel %vm1674, %v3311, %v2772
        %v3344 = vsel %vm1674, %v3312, %v2774
        %v3345 = vsel %vm1674, %v3313, %v2776
        %v3346 = vsel %vm1674, %v3314, %v2778
        %v3347 = vsel %vm1674, %v3315, %v2780
        %v3348 = vsel %vm1674, %v3316, %v2782
        %v3349 = vsel %vm1674, %v3317, %v2784
        %v3350 = vsel %vm1674, %v3318, %v2786
        %v3351 = vsel %vm1674, %v3319, %v2788
        %v3352 = vsel %vm1674, %v3320, %v2790
        %vm3353 = vcmask 326656
        %v3354 = vsel %vm3353, %v3321, %v2829
        %v3355 = vsel %vm3353, %v3322, %v2831
        %v3356 = vsel %vm3353, %v3323, %v2833
        %v3357 = vsel %vm3353, %v3324, %v2835
        %v3358 = vsel %vm3353, %v3325, %v2837
        %v3359 = vsel %vm3353, %v3326, %v2839
        %v3360 = vsel %vm3353, %v3327, %v2841
        %v3361 = vsel %vm3353, %v3328, %v2843
        %v3362 = vsel %vm3353, %v3329, %v2845
        %v3363 = vsel %vm3353, %v3330, %v2847
        %v3364 = vsel %vm3353, %v3331, %v2849
        %v3365 = vsel %vm3353, %v3332, %v2851
        %v3366 = vsel %vm3353, %v3333, %v2853
        %v3367 = vsel %vm3353, %v3334, %v2855
        %v3368 = vsel %vm3353, %v3335, %v2857
        %v3369 = vsel %vm3353, %v3336, %v2859
        %v3370 = vsel %vm3353, %v3337, %v2861
        %v3371 = vsel %vm3353, %v3338, %v2863
        %v3372 = vsel %vm3353, %v3339, %v2865
        %v3373 = vsel %vm3353, %v3340, %v2867
        %v3374 = vsel %vm3353, %v3341, %v2869
        %v3375 = vsel %vm3353, %v3342, %v2871
        %v3376 = vsel %vm3353, %v3343, %v2873
        %v3377 = vsel %vm3353, %v3344, %v2875
        %v3378 = vsel %vm3353, %v3345, %v2877
        %v3379 = vsel %vm3353, %v3346, %v2879
        %v3380 = vsel %vm3353, %v3347, %v2881
        %v3381 = vsel %vm3353, %v3348, %v2883
        %v3382 = vsel %vm3353, %v3349, %v2885
        %v3383 = vsel %vm3353, %v3350, %v2887
        %v3384 = vsel %vm3353, %v3351, %v2889
        %v3385 = vsel %vm3353, %v3352, %v2891
        %vm3386 = vcmask 392192
        %v3387 = vsel %vm3386, %v3354, %v2927
        %v3388 = vsel %vm3386, %v3355, %v2929
        %v3389 = vsel %vm3386, %v3356, %v2931
        %v3390 = vsel %vm3386, %v3357, %v2933
        %v3391 = vsel %vm3386, %v3358, %v2935
        %v3392 = vsel %vm3386, %v3359, %v2937
        %v3393 = vsel %vm3386, %v3360, %v2939
        %v3394 = vsel %vm3386, %v3361, %v2941
        %v3395 = vsel %vm3386, %v3362, %v2943
        %v3396 = vsel %vm3386, %v3363, %v2945
        %v3397 = vsel %vm3386, %v3364, %v2947
        %v3398 = vsel %vm3386, %v3365, %v2949
        %v3399 = vsel %vm3386, %v3366, %v2951
        %v3400 = vsel %vm3386, %v3367, %v2953
        %v3401 = vsel %vm3386, %v3368, %v2955
        %v3402 = vsel %vm3386, %v3369, %v2957
        %v3403 = vsel %vm3386, %v3370, %v2959
        %v3404 = vsel %vm3386, %v3371, %v2961
        %v3405 = vsel %vm3386, %v3372, %v2963
        %v3406 = vsel %vm3386, %v3373, %v2965
        %v3407 = vsel %vm3386, %v3374, %v2967
        %v3408 = vsel %vm3386, %v3375, %v2969
        %v3409 = vsel %vm3386, %v3376, %v2971
        %v3410 = vsel %vm3386, %v3377, %v2973
        %v3411 = vsel %vm3386, %v3378, %v2975
        %v3412 = vsel %vm3386, %v3379, %v2977
        %v3413 = vsel %vm3386, %v3380, %v2979
        %v3414 = vsel %vm3386, %v3381, %v2981
        %v3415 = vsel %vm3386, %v3382, %v2983
        %v3416 = vsel %vm3386, %v3383, %v2985
        %v3417 = vsel %vm3386, %v3384, %v2987
        %v3418 = vsel %vm3386, %v3385, %v2989
        %vm3419 = vcmask 457728
        %v3420 = vsel %vm3419, %v3387, %v3029
        %v3421 = vsel %vm3419, %v3388, %v3031
        %v3422 = vsel %vm3419, %v3389, %v3033
        %v3423 = vsel %vm3419, %v3390, %v3035
        %v3424 = vsel %vm3419, %v3391, %v3037
        %v3425 = vsel %vm3419, %v3392, %v3039
        %v3426 = vsel %vm3419, %v3393, %v3041
        %v3427 = vsel %vm3419, %v3394, %v3043
        %v3428 = vsel %vm3419, %v3395, %v3045
        %v3429 = vsel %vm3419, %v3396, %v3047
        %v3430 = vsel %vm3419, %v3397, %v3049
        %v3431 = vsel %vm3419, %v3398, %v3051
        %v3432 = vsel %vm3419, %v3399, %v3053
        %v3433 = vsel %vm3419, %v3400, %v3055
        %v3434 = vsel %vm3419, %v3401, %v3057
        %v3435 = vsel %vm3419, %v3402, %v3059
        %v3436 = vsel %vm3419, %v3403, %v3061
        %v3437 = vsel %vm3419, %v3404, %v3063
        %v3438 = vsel %vm3419, %v3405, %v3065
        %v3439 = vsel %vm3419, %v3406, %v3067
        %v3440 = vsel %vm3419, %v3407, %v3069
        %v3441 = vsel %vm3419, %v3408, %v3071
        %v3442 = vsel %vm3419, %v3409, %v3073
        %v3443 = vsel %vm3419, %v3410, %v3075
        %v3444 = vsel %vm3419, %v3411, %v3077
        %v3445 = vsel %vm3419, %v3412, %v3079
        %v3446 = vsel %vm3419, %v3413, %v3081
        %v3447 = vsel %vm3419, %v3414, %v3083
        %v3448 = vsel %vm3419, %v3415, %v3085
        %v3449 = vsel %vm3419, %v3416, %v3087
        %v3450 = vsel %vm3419, %v3417, %v3089
        %v3451 = vsel %vm3419, %v3418, %v3091
        %vm3452 = vcmask 523264
        %v3453 = vsel %vm3452, %v3420, %v3130
        %v3454 = vsel %vm3452, %v3421, %v3132
        %v3455 = vsel %vm3452, %v3422, %v3134
        %v3456 = vsel %vm3452, %v3423, %v3136
        %v3457 = vsel %vm3452, %v3424, %v3138
        %v3458 = vsel %vm3452, %v3425, %v3140
        %v3459 = vsel %vm3452, %v3426, %v3142
        %v3460 = vsel %vm3452, %v3427, %v3144
        %v3461 = vsel %vm3452, %v3428, %v3146
        %v3462 = vsel %vm3452, %v3429, %v3148
        %v3463 = vsel %vm3452, %v3430, %v3150
        %v3464 = vsel %vm3452, %v3431, %v3152
        %v3465 = vsel %vm3452, %v3432, %v3154
        %v3466 = vsel %vm3452, %v3433, %v3156
        %v3467 = vsel %vm3452, %v3434, %v3158
        %v3468 = vsel %vm3452, %v3435, %v3160
        %v3469 = vsel %vm3452, %v3436, %v3162
        %v3470 = vsel %vm3452, %v3437, %v3164
        %v3471 = vsel %vm3452, %v3438, %v3166
        %v3472 = vsel %vm3452, %v3439, %v3168
        %v3473 = vsel %vm3452, %v3440, %v3170
        %v3474 = vsel %vm3452, %v3441, %v3172
        %v3475 = vsel %vm3452, %v3442, %v3174
        %v3476 = vsel %vm3452, %v3443, %v3176
        %v3477 = vsel %vm3452, %v3444, %v3178
        %v3478 = vsel %vm3452, %v3445, %v3180
        %v3479 = vsel %vm3452, %v3446, %v3182
        %v3480 = vsel %vm3452, %v3447, %v3184
        %v3481 = vsel %vm3452, %v3448, %v3186
        %v3482 = vsel %vm3452, %v3449, %v3188
        %v3483 = vsel %vm3452, %v3450, %v3190
        %v3484 = vsel %vm3452, %v3451, %v3192
        %v3486 = vlaneseq
        %v3487 = vshrl.u32 %v3486, 7
        %v3488 = vsub.s32 0, %v3487
        %v3489 = vrot.slane %v2168, %v3488
        %vm3491 = vcmask 588800
        %v3493 = vsel %vm3491, %v3453, 0
        %v3496 = vsel %vm3491, %v3454, 0
        %v3499 = vsel %vm3491, %v3455, 0
        %v3502 = vsel %vm3491, %v3456, 0
        %v3505 = vsel %vm3491, %v3457, 0
        %v3508 = vsel %vm3491, %v3458, 0
        %v3511 = vsel %vm3491, %v3459, 0
        %v3514 = vsel %vm3491, %v3460, 0
        %v3517 = vsel %vm3491, %v3461, 0
        %v3520 = vsel %vm3491, %v3462, 0
        %v3523 = vsel %vm3491, %v3463, 0
        %v3526 = vsel %vm3491, %v3464, 0
        %v3529 = vsel %vm3491, %v3465, 0
        %v3532 = vsel %vm3491, %v3466, 0
        %v3535 = vsel %vm3491, %v3467, 0
        %v3538 = vsel %vm3491, %v3468, 0
        %v3541 = vsel %vm3491, %v3469, 0
        %v3544 = vsel %vm3491, %v3470, 0
        %v3547 = vsel %vm3491, %v3471, 0
        %v3550 = vsel %vm3491, %v3472, 0
        %v3553 = vsel %vm3491, %v3473, 0
        %v3556 = vsel %vm3491, %v3474, 0
        %v3559 = vsel %vm3491, %v3475, 0
        %v3562 = vsel %vm3491, %v3476, 0
        %v3565 = vsel %vm3491, %v3477, 0
        %v3568 = vsel %vm3491, %v3478, 0
        %v3571 = vsel %vm3491, %v3479, 0
        %v3574 = vsel %vm3491, %v3480, 0
        %v3577 = vsel %vm3491, %v3481, 0
        %v3580 = vsel %vm3491, %v3482, 0
        %v3583 = vsel %vm3491, %v3483, 0
        %v3586 = vsel %vm3491, %v3484, 0
        %3588 = vmatprep.subr.mxu0 0.0
        %3589 = vmatpush1.msra.mxu0 0.0
        %3590 = vmatprep.subr.mxu0 0.0
        %3591 = vmatpush1.msra.mxu0 0.0
        %3592 = vmatprep.subr.mxu0 0.0
        %3593 = vmatpush1.msra.mxu0 0.0
        %3594 = vmatprep.subr.mxu0 0.0
        %3595 = vmatpush1.msra.mxu0 0.0
        %3596 = vmatprep.subr.mxu0 0.0
        %3597 = vmatpush1.msra.mxu0 0.0
        %3598 = vmatprep.subr.mxu0 0.0
        %3599 = vmatpush1.msra.mxu0 0.0
        %3600 = vmatprep.subr.mxu0 0.0
        %3601 = vmatpush1.msra.mxu0 0.0
        %3602 = vmatprep.subr.mxu0 0.0
        %3603 = vmatpush1.msra.mxu0 %v2167
        %3604 = vmatprep.subr.mxu0 0.0
        %3605 = vmatpush1.msra.mxu0 %v2166
        %3606 = vmatprep.subr.mxu0 0.0
        %3607 = vmatpush1.msra.mxu0 %v2165
        %3608 = vmatprep.subr.mxu0 0.0
        %3609 = vmatpush1.msra.mxu0 %v2164
        %3610 = vmatprep.subr.mxu0 0.0
        %3611 = vmatpush1.msra.mxu0 %v2163
        %3612 = vmatprep.subr.mxu0 0.0
        %3613 = vmatpush1.msra.mxu0 %v2162
        %3614 = vmatprep.subr.mxu0 0.0
        %3615 = vmatpush1.msra.mxu0 %v2161
        %3616 = vmatprep.subr.mxu0 0.0
        %3617 = vmatpush1.msra.mxu0 %v2160
        %3618 = vmatprep.subr.mxu0 0.0
        %3619 = vmatpush1.msra.mxu0 %v2159
        %3620 = vmatprep.subr.mxu0 0.0
        %3621 = vmatpush2.msra.mxu0 0.0
        %3622 = vmatprep.subr.mxu0 0.0
        %3623 = vmatpush2.msra.mxu0 0.0
        %3624 = vmatprep.subr.mxu0 0.0
        %3625 = vmatpush2.msra.mxu0 0.0
        %3626 = vmatprep.subr.mxu0 0.0
        %3627 = vmatpush2.msra.mxu0 0.0
        %3628 = vmatprep.subr.mxu0 0.0
        %3629 = vmatpush2.msra.mxu0 0.0
        %3630 = vmatprep.subr.mxu0 0.0
        %3631 = vmatpush2.msra.mxu0 0.0
        %3632 = vmatprep.subr.mxu0 0.0
        %3633 = vmatpush2.msra.mxu0 0.0
        %3634 = vmatprep.subr.mxu0 0.0
        %3635 = vmatpush2.msra.mxu0 0.0
        %3636 = vmatprep.subr.mxu0 0.0
        %3637 = vmatpush2.msra.mxu0 0.0
        %3638 = vmatprep.subr.mxu0 0.0
        %3639 = vmatpush2.msra.mxu0 0.0
        %3640 = vmatprep.subr.mxu0 0.0
        %3641 = vmatpush2.msra.mxu0 0.0
        %3642 = vmatprep.subr.mxu0 0.0
        %3643 = vmatpush2.msra.mxu0 0.0
        %3644 = vmatprep.subr.mxu0 0.0
        %3645 = vmatpush2.msra.mxu0 0.0
        %3646 = vmatprep.subr.mxu0 0.0
        %3647 = vmatpush2.msra.mxu0 0.0
        %3648 = vmatprep.subr.mxu0 0.0
        %3649 = vmatpush2.msra.mxu0 0.0
        %3650 = vmatprep.subr.mxu0 0.0
        %3651 = vmatpush2.msra.mxu0 0.0
        %3652 = vmatprep.mubr.f32.mxu0 0.0
        %3653 = vmatmul.mubr.f32.gmra.mxu0 %v3493
        %v3654 = vpop.f32.mrf.mxu0
        %v3655 = vadd.f32 %v3489, %v3654
        %v3656 = vpop.f32.mrf.mxu0
        %3657 = vmatprep.mubr.f32.mxu0 0.0
        %3658 = vmatmul.mubr.f32.gmra.mxu0 %v3496
        %v3659 = vpop.f32.mrf.mxu0
        %v3660 = vadd.f32 %v3489, %v3659
        %v3661 = vpop.f32.mrf.mxu0
        %3662 = vmatprep.mubr.f32.mxu0 0.0
        %3663 = vmatmul.mubr.f32.gmra.mxu0 %v3499
        %v3664 = vpop.f32.mrf.mxu0
        %v3665 = vadd.f32 %v3489, %v3664
        %v3666 = vpop.f32.mrf.mxu0
        %3667 = vmatprep.mubr.f32.mxu0 0.0
        %3668 = vmatmul.mubr.f32.gmra.mxu0 %v3502
        %v3669 = vpop.f32.mrf.mxu0
        %v3670 = vadd.f32 %v3489, %v3669
        %v3671 = vpop.f32.mrf.mxu0
        %3672 = vmatprep.mubr.f32.mxu0 0.0
        %3673 = vmatmul.mubr.f32.gmra.mxu0 %v3505
        %v3674 = vpop.f32.mrf.mxu0
        %v3675 = vadd.f32 %v3489, %v3674
        %v3676 = vpop.f32.mrf.mxu0
        %3677 = vmatprep.mubr.f32.mxu0 0.0
        %3678 = vmatmul.mubr.f32.gmra.mxu0 %v3508
        %v3679 = vpop.f32.mrf.mxu0
        %v3680 = vadd.f32 %v3489, %v3679
        %v3681 = vpop.f32.mrf.mxu0
        %3682 = vmatprep.mubr.f32.mxu0 0.0
        %3683 = vmatmul.mubr.f32.gmra.mxu0 %v3511
        %v3684 = vpop.f32.mrf.mxu0
        %v3685 = vadd.f32 %v3489, %v3684
        %v3686 = vpop.f32.mrf.mxu0
        %3687 = vmatprep.mubr.f32.mxu0 0.0
        %3688 = vmatmul.mubr.f32.gmra.mxu0 %v3514
        %v3689 = vpop.f32.mrf.mxu0
        %v3690 = vadd.f32 %v3489, %v3689
        %v3691 = vpop.f32.mrf.mxu0
        %3692 = vmatprep.mubr.f32.mxu0 0.0
        %3693 = vmatmul.mubr.f32.gmra.mxu0 %v3517
        %v3694 = vpop.f32.mrf.mxu0
        %v3695 = vadd.f32 %v3489, %v3694
        %v3696 = vpop.f32.mrf.mxu0
        %3697 = vmatprep.mubr.f32.mxu0 0.0
        %3698 = vmatmul.mubr.f32.gmra.mxu0 %v3520
        %v3699 = vpop.f32.mrf.mxu0
        %v3700 = vadd.f32 %v3489, %v3699
        %v3701 = vpop.f32.mrf.mxu0
        %3702 = vmatprep.mubr.f32.mxu0 0.0
        %3703 = vmatmul.mubr.f32.gmra.mxu0 %v3523
        %v3704 = vpop.f32.mrf.mxu0
        %v3705 = vadd.f32 %v3489, %v3704
        %v3706 = vpop.f32.mrf.mxu0
        %3707 = vmatprep.mubr.f32.mxu0 0.0
        %3708 = vmatmul.mubr.f32.gmra.mxu0 %v3526
        %v3709 = vpop.f32.mrf.mxu0
        %v3710 = vadd.f32 %v3489, %v3709
        %v3711 = vpop.f32.mrf.mxu0
        %3712 = vmatprep.mubr.f32.mxu0 0.0
        %3713 = vmatmul.mubr.f32.gmra.mxu0 %v3529
        %v3714 = vpop.f32.mrf.mxu0
        %v3715 = vadd.f32 %v3489, %v3714
        %v3716 = vpop.f32.mrf.mxu0
        %3717 = vmatprep.mubr.f32.mxu0 0.0
        %3718 = vmatmul.mubr.f32.gmra.mxu0 %v3532
        %v3719 = vpop.f32.mrf.mxu0
        %v3720 = vadd.f32 %v3489, %v3719
        %v3721 = vpop.f32.mrf.mxu0
        %3722 = vmatprep.mubr.f32.mxu0 0.0
        %3723 = vmatmul.mubr.f32.gmra.mxu0 %v3535
        %v3724 = vpop.f32.mrf.mxu0
        %v3725 = vadd.f32 %v3489, %v3724
        %v3726 = vpop.f32.mrf.mxu0
        %3727 = vmatprep.mubr.f32.mxu0 0.0
        %3728 = vmatmul.mubr.f32.gmra.mxu0 %v3538
        %v3729 = vpop.f32.mrf.mxu0
        %v3730 = vadd.f32 %v3489, %v3729
        %v3731 = vpop.f32.mrf.mxu0
        %3732 = vmatprep.mubr.f32.mxu0 0.0
        %3733 = vmatmul.mubr.f32.gmra.mxu0 %v3541
        %v3734 = vpop.f32.mrf.mxu0
        %v3735 = vadd.f32 %v3489, %v3734
        %v3736 = vpop.f32.mrf.mxu0
        %3737 = vmatprep.mubr.f32.mxu0 0.0
        %3738 = vmatmul.mubr.f32.gmra.mxu0 %v3544
        %v3739 = vpop.f32.mrf.mxu0
        %v3740 = vadd.f32 %v3489, %v3739
        %v3741 = vpop.f32.mrf.mxu0
        %3742 = vmatprep.mubr.f32.mxu0 0.0
        %3743 = vmatmul.mubr.f32.gmra.mxu0 %v3547
        %v3744 = vpop.f32.mrf.mxu0
        %v3745 = vadd.f32 %v3489, %v3744
        %v3746 = vpop.f32.mrf.mxu0
        %3747 = vmatprep.mubr.f32.mxu0 0.0
        %3748 = vmatmul.mubr.f32.gmra.mxu0 %v3550
        %v3749 = vpop.f32.mrf.mxu0
        %v3750 = vadd.f32 %v3489, %v3749
        %v3751 = vpop.f32.mrf.mxu0
        %3752 = vmatprep.mubr.f32.mxu0 0.0
        %3753 = vmatmul.mubr.f32.gmra.mxu0 %v3553
        %v3754 = vpop.f32.mrf.mxu0
        %v3755 = vadd.f32 %v3489, %v3754
        %v3756 = vpop.f32.mrf.mxu0
        %3757 = vmatprep.mubr.f32.mxu0 0.0
        %3758 = vmatmul.mubr.f32.gmra.mxu0 %v3556
        %v3759 = vpop.f32.mrf.mxu0
        %v3760 = vadd.f32 %v3489, %v3759
        %v3761 = vpop.f32.mrf.mxu0
        %3762 = vmatprep.mubr.f32.mxu0 0.0
        %3763 = vmatmul.mubr.f32.gmra.mxu0 %v3559
        %v3764 = vpop.f32.mrf.mxu0
        %v3765 = vadd.f32 %v3489, %v3764
        %v3766 = vpop.f32.mrf.mxu0
        %3767 = vmatprep.mubr.f32.mxu0 0.0
        %3768 = vmatmul.mubr.f32.gmra.mxu0 %v3562
        %v3769 = vpop.f32.mrf.mxu0
        %v3770 = vadd.f32 %v3489, %v3769
        %v3771 = vpop.f32.mrf.mxu0
        %3772 = vmatprep.mubr.f32.mxu0 0.0
        %3773 = vmatmul.mubr.f32.gmra.mxu0 %v3565
        %v3774 = vpop.f32.mrf.mxu0
        %v3775 = vadd.f32 %v3489, %v3774
        %v3776 = vpop.f32.mrf.mxu0
        %3777 = vmatprep.mubr.f32.mxu0 0.0
        %3778 = vmatmul.mubr.f32.gmra.mxu0 %v3568
        %v3779 = vpop.f32.mrf.mxu0
        %v3780 = vadd.f32 %v3489, %v3779
        %v3781 = vpop.f32.mrf.mxu0
        %3782 = vmatprep.mubr.f32.mxu0 0.0
        %3783 = vmatmul.mubr.f32.gmra.mxu0 %v3571
        %v3784 = vpop.f32.mrf.mxu0
        %v3785 = vadd.f32 %v3489, %v3784
        %v3786 = vpop.f32.mrf.mxu0
        %3787 = vmatprep.mubr.f32.mxu0 0.0
        %3788 = vmatmul.mubr.f32.gmra.mxu0 %v3574
        %v3789 = vpop.f32.mrf.mxu0
        %v3790 = vadd.f32 %v3489, %v3789
        %v3791 = vpop.f32.mrf.mxu0
        %3792 = vmatprep.mubr.f32.mxu0 0.0
        %3793 = vmatmul.mubr.f32.gmra.mxu0 %v3577
        %v3794 = vpop.f32.mrf.mxu0
        %v3795 = vadd.f32 %v3489, %v3794
        %v3796 = vpop.f32.mrf.mxu0
        %3797 = vmatprep.mubr.f32.mxu0 0.0
        %3798 = vmatmul.mubr.f32.gmra.mxu0 %v3580
        %v3799 = vpop.f32.mrf.mxu0
        %v3800 = vadd.f32 %v3489, %v3799
        %v3801 = vpop.f32.mrf.mxu0
        %3802 = vmatprep.mubr.f32.mxu0 0.0
        %3803 = vmatmul.mubr.f32.gmra.mxu0 %v3583
        %v3804 = vpop.f32.mrf.mxu0
        %v3805 = vadd.f32 %v3489, %v3804
        %v3806 = vpop.f32.mrf.mxu0
        %3807 = vmatprep.mubr.f32.mxu0 0.0
        %3808 = vmatmul.mubr.f32.gmra.mxu0 %v3586
        %v3809 = vpop.f32.mrf.mxu0
        %v3810 = vadd.f32 %v3489, %v3809
        %v3811 = vpop.f32.mrf.mxu0
        %3812 = vdwg.mxu0
        %v3813 = vmax.f32 %v3655, 0.0
        %v3814 = vmax.f32 %v3660, 0.0
        %v3815 = vmax.f32 %v3665, 0.0
        %v3816 = vmax.f32 %v3670, 0.0
        %v3817 = vmax.f32 %v3675, 0.0
        %v3818 = vmax.f32 %v3680, 0.0
        %v3819 = vmax.f32 %v3685, 0.0
        %v3820 = vmax.f32 %v3690, 0.0
        %v3821 = vmax.f32 %v3695, 0.0
        %v3822 = vmax.f32 %v3700, 0.0
        %v3823 = vmax.f32 %v3705, 0.0
        %v3824 = vmax.f32 %v3710, 0.0
        %v3825 = vmax.f32 %v3715, 0.0
        %v3826 = vmax.f32 %v3720, 0.0
        %v3827 = vmax.f32 %v3725, 0.0
        %v3828 = vmax.f32 %v3730, 0.0
        %v3829 = vmax.f32 %v3735, 0.0
        %v3830 = vmax.f32 %v3740, 0.0
        %v3831 = vmax.f32 %v3745, 0.0
        %v3832 = vmax.f32 %v3750, 0.0
        %v3833 = vmax.f32 %v3755, 0.0
        %v3834 = vmax.f32 %v3760, 0.0
        %v3835 = vmax.f32 %v3765, 0.0
        %v3836 = vmax.f32 %v3770, 0.0
        %v3837 = vmax.f32 %v3775, 0.0
        %v3838 = vmax.f32 %v3780, 0.0
        %v3839 = vmax.f32 %v3785, 0.0
        %v3840 = vmax.f32 %v3790, 0.0
        %v3841 = vmax.f32 %v3795, 0.0
        %v3842 = vmax.f32 %v3800, 0.0
        %v3843 = vmax.f32 %v3805, 0.0
        %v3844 = vmax.f32 %v3810, 0.0
        %3845 = vxpose.xlu0.b32.start [1/16] %v3813, 128
        %3846 = vxpose.xlu0.b32.cont [2/16] %v3814, 128
        %3847 = vxpose.xlu0.b32.cont [3/16] %v3815, 128
        %3848 = vxpose.xlu0.b32.cont [4/16] %v3816, 128
        %3849 = vxpose.xlu0.b32.cont [5/16] %v3817, 128
        %3850 = vxpose.xlu0.b32.cont [6/16] %v3818, 128
        %3851 = vxpose.xlu0.b32.cont [7/16] %v3819, 128
        %3852 = vxpose.xlu0.b32.cont [8/16] %v3820, 128
        %3853 = vxpose.xlu0.b32.cont [9/16] %v3821, 128
        %3854 = vxpose.xlu0.b32.cont [10/16] %v3822, 128
        %3855 = vxpose.xlu0.b32.cont [11/16] %v3823, 128
        %3856 = vxpose.xlu0.b32.cont [12/16] %v3824, 128
        %3857 = vxpose.xlu0.b32.cont [13/16] %v3825, 128
        %3858 = vxpose.xlu0.b32.cont [14/16] %v3826, 128
        %3859 = vxpose.xlu0.b32.cont [15/16] %v3827, 128
        %3860 = vxpose.xlu0.b32.end [16/16] %v3828, 128
        %v3861 = vpop.trf.xlu0
        %v3862 = vpop.trf.xlu0
        %v3863 = vpop.trf.xlu0
        %v3864 = vpop.trf.xlu0
        %v3865 = vpop.trf.xlu0
        %v3866 = vpop.trf.xlu0
        %v3867 = vpop.trf.xlu0
        %v3868 = vpop.trf.xlu0
        %v3869 = vpop.trf.xlu0
        %v3870 = vpop.trf.xlu0
        %v3871 = vpop.trf.xlu0
        %v3872 = vpop.trf.xlu0
        %v3873 = vpop.trf.xlu0
        %v3874 = vpop.trf.xlu0
        %v3875 = vpop.trf.xlu0
        %v3876 = vpop.trf.xlu0
        %3877 = vxpose.xlu0.b32.start [1/16] %v3829, 128
        %3878 = vxpose.xlu0.b32.cont [2/16] %v3830, 128
        %3879 = vxpose.xlu0.b32.cont [3/16] %v3831, 128
        %3880 = vxpose.xlu0.b32.cont [4/16] %v3832, 128
        %3881 = vxpose.xlu0.b32.cont [5/16] %v3833, 128
        %3882 = vxpose.xlu0.b32.cont [6/16] %v3834, 128
        %3883 = vxpose.xlu0.b32.cont [7/16] %v3835, 128
        %3884 = vxpose.xlu0.b32.cont [8/16] %v3836, 128
        %3885 = vxpose.xlu0.b32.cont [9/16] %v3837, 128
        %3886 = vxpose.xlu0.b32.cont [10/16] %v3838, 128
        %3887 = vxpose.xlu0.b32.cont [11/16] %v3839, 128
        %3888 = vxpose.xlu0.b32.cont [12/16] %v3840, 128
        %3889 = vxpose.xlu0.b32.cont [13/16] %v3841, 128
        %3890 = vxpose.xlu0.b32.cont [14/16] %v3842, 128
        %3891 = vxpose.xlu0.b32.cont [15/16] %v3843, 128
        %3892 = vxpose.xlu0.b32.end [16/16] %v3844, 128
        %v3893 = vpop.trf.xlu0
        %v3894 = vpop.trf.xlu0
        %v3895 = vpop.trf.xlu0
        %v3896 = vpop.trf.xlu0
        %v3897 = vpop.trf.xlu0
        %v3898 = vpop.trf.xlu0
        %v3899 = vpop.trf.xlu0
        %v3900 = vpop.trf.xlu0
        %v3901 = vpop.trf.xlu0
        %v3902 = vpop.trf.xlu0
        %v3903 = vpop.trf.xlu0
        %v3904 = vpop.trf.xlu0
        %v3905 = vpop.trf.xlu0
        %v3906 = vpop.trf.xlu0
        %v3907 = vpop.trf.xlu0
        %v3908 = vpop.trf.xlu0
        %3909 = vst [vmem:[%s217] sm:$0xff] %v3861
        %3910 = vst [vmem:[%s217 + $0x8] sm:$0xff] %v3893
        %s3911 = sand.u32 %s137, 1
        %s3912 = scalar_lea.sflag [#allocation5], %s3911
        %s3913 = sand.u32 %s137, 1
        %s3914 = smul.addr %s3913, 16
        %s3915 = scalar_lea.vmem [#allocation4], %s3914
        // Predicated region
        $region41: #{tpu_custom_call.1} parent=39 // pred_check
          %p3916 = pneg %p147
        $region42: #{tpu_custom_call.1} parent=39 // pred_check_branch
          %3918 = sbr.rel (%p3916) target = $region44
        $region43: #{tpu_custom_call.1} parent=39 // pred_region
          %s3920 = ssub.s32 256, 256
          %3921 = vsyncadd %s3912, %s3920
          %s3922 = smul.addr %s19, 2
          %s3923 = smul.addr %s3922, 128
          %s3924 = scalar_lea.hbm %s5, %s3923
          %s3926 = sshll.u32 %s3915, 4
          %s3927 = int_to_ptr.vmem [resolvable:$true] %s3926
          %3929 = dma.vmem_to_hbm [thread:$0]  %s3927, 256, %s3924, %s3912
        $region44: #{tpu_custom_call.1} parent=39 // pred_fallthru
          _
      $region40: #{tpu_custom_call.1} parent=5 // pred_fallthru
        _
      %p3930 = scmp.le.s32.totalorder 2, %s14
      // Predicated region
      $region45: #{tpu_custom_call.1} parent=5 // pred_check
        %p3931 = pneg %p3930
      $region46: #{tpu_custom_call.1} parent=5 // pred_check_branch
        %3933 = sbr.rel (%p3931) target = $region48
      $region47: #{tpu_custom_call.1} parent=5 // pred_region
        %s3934 = ssub.s32 %s14, 2
        // Predicated region
        $region49: #{tpu_custom_call.1} parent=47 // pred_check
          %p3935 = pneg %p153
        $region50: #{tpu_custom_call.1} parent=47 // pred_check_branch
          %3937 = sbr.rel (%p3935) target = $region52
        $region51: #{tpu_custom_call.1} parent=47 // pred_region
          %s3938 = sand.u32 %s138, 1
          %s3939 = scalar_lea.sflag [#allocation5], %s3938
          %s3940 = sand.u32 %s138, 1
          %s3941 = smul.addr %s3940, 16
          %s3942 = scalar_lea.vmem [#allocation4], %s3941
          %3943 = dma.done %s3939, 256
        $region52: #{tpu_custom_call.1} parent=47 // pred_fallthru
          _
      $region48: #{tpu_custom_call.1} parent=5 // pred_fallthru
        _
    $region6: #{tpu_custom_call.1} parent=1 // loop_footer
      %s18 = sadd.s32 1, %s14
    $region7: #{tpu_custom_call.1} parent=1 // loop_footer_branch
      %13 = sbr.rel target = $region3
    $region8: #{tpu_custom_call.1} parent=1 // loop_exit
      _
    %3944 = vsyncpa [#allocation5], 1
    %s3945 = scalar_lea.sflag [#allocation5], 1
    %3946 = vsyncpa %s3945, 1

</llo_original>
